<compile_context>
chip_gen: v6e
topology: v6e:2x2x1
jax: 0.10.0
libtpu: 0.0.40
codegen_flags: <defaults>
</compile_context>

<pallas_src>
import functools

import jax
import jax.numpy as jnp
from jax.experimental import pallas as pl
from jax.experimental.pallas import tpu as pltpu


# ----------------------------- configuration --------------------------------
C, H_IMG, W_IMG = 2, 8, 8          # C*H*W = 128 -> lane-dense in/out tiles
INPUT_DIM = C * H_IMG * W_IMG      # 128
HIDDEN = 256                       # fixed at 256 in the PyTorch module
EMBED_DIM = 128
MEMORY_SIZE = 32
TOPK = 5
TILE_B = 512                       # batch rows per grid step (safe v5e/v6e/v7x)
EPS = 1e-12                        # F.normalize eps


# ------------------------------- kernel -------------------------------------
def _hard_attn_mem_ae_kernel(x_ref, w1_ref, b1_ref, w2f_ref, b2f_ref,
                             w3f_ref, b3_ref, w4_ref, b4_ref, out_ref,
                             *, topk, embed_dim, matmul_dtype):
    """One batch tile: encoder -> normalize/sim (fused) -> hard top-k attention
    -> memory readout + decoder first Linear (fused) -> decoder tail."""

    def linear(a, w_ref, b_ref):
        # Weights are already resident in matmul_dtype; cast the activation at
        # the dot, accumulate in f32 on the MXU, add the f32 bias.
        return jnp.dot(a.astype(matmul_dtype), w_ref[...],
                       preferred_element_type=jnp.float32) + b_ref[...]

    x = x_ref[...]                                                  # (TB, Din)

    # ---- encoder layer 1: Linear -> ReLU
    h1 = jnp.maximum(linear(x, w1_ref, b1_ref), 0.0)                # (TB, 256)

    # ---- fused encoder layer 2 + cosine-similarity projection:
    #      zz[:, :E] = h1 @ w2 + b2                      (= z)
    #      zz[:, E:] = h1 @ (w2 @ mem_n.T) + b2 @ mem_n.T (= z @ mem_n.T)
    zz = linear(h1, w2f_ref, b2f_ref)                               # (TB, E+M)
    z = zz[:, :embed_dim]                                           # (TB, E)
    sim_raw = zz[:, embed_dim:]                                     # (TB, M)

    # F.normalize: z_norm = z / max(|z|, eps)  ->  sim = sim_raw / max(|z|, eps)
    z_sq = jnp.sum(z * z, axis=1, keepdims=True)
    sim = sim_raw * jax.lax.rsqrt(jnp.maximum(z_sq, EPS * EPS))     # (TB, M)

    # ---- hard top-k: extract the row max `topk` times, scatter the values
    #      into zeros (matches torch.topk + scatter_, incl. leftmost-tie order).
    tb, m = sim.shape
    col = jax.lax.broadcasted_iota(jnp.int32, (tb, m), 1)
    work = sim
    attn = jnp.zeros_like(sim)
    for _ in range(topk):
        cur_max = jnp.max(work, axis=1, keepdims=True)
        is_max = work == cur_max
        sel_idx = jnp.min(jnp.where(is_max, col, m), axis=1, keepdims=True)
        sel = col == sel_idx
        attn = jnp.where(sel, cur_max, attn)
        work = jnp.where(sel, -jnp.inf, work)

    # ---- softmax over the FULL memory axis (non-top-k slots contribute
    #      exp(0); inherited from the PyTorch module).  Exact divide (no approx
    #      reciprocal) to preserve the strict f32 check.
    a_max = jnp.max(attn, axis=1, keepdims=True)
    e = jnp.exp(attn - a_max)
    attn_sm = e / jnp.sum(e, axis=1, keepdims=True)                 # (TB, M)

    # ---- fused memory readout + decoder layer 1:
    #      relu((attn_sm @ mem) @ w3 + b3) == relu(attn_sm @ (mem @ w3) + b3)
    h3 = jnp.maximum(linear(attn_sm, w3f_ref, b3_ref), 0.0)         # (TB, 256)

    # ---- decoder tail: Linear -> Sigmoid
    logits = linear(h3, w4_ref, b4_ref)                             # (TB, Din)
    out_ref[...] = jax.nn.sigmoid(logits)


# ------------------------------- wrapper -------------------------------------
@functools.partial(jax.jit, static_argnames=("topk", "tile_b", "matmul_dtype"))
def hard_attention_memory_ae(x, params, topk=TOPK, tile_b=TILE_B,
                             matmul_dtype=jnp.float32):
    """x: (B, C, H, W) float32 -> reconstruction of the same shape."""
    b = x.shape[0]
    mm_dtype = jnp.dtype(matmul_dtype)
    x_flat = x.reshape(b, -1).astype(jnp.float32)
    d_in = x_flat.shape[1]

    # ---- tile / grid selection: big tiles (pipeline-overhead amortization),
    #      shrink for small batches, keep the tile count even when >1 (v7x).
    b128 = ((b + 127) // 128) * 128
    tile = min(tile_b, b128)
    n_tiles = (b128 + tile - 1) // tile
    if n_tiles > 1 and n_tiles % 2 == 1 and tile % 256 == 0:
        tile //= 2
        n_tiles = (b128 + tile - 1) // tile
    b_pad = n_tiles * tile

    # stream x in the matmul dtype on the reduced-precision path (halves the
    # only per-tile input DMA; identical to the in-kernel astype).
    if mm_dtype != jnp.float32:
        x_flat = x_flat.astype(mm_dtype)
    if b_pad != b:
        x_flat = jnp.pad(x_flat, ((0, b_pad - b), (0, 0)))

    mem = params["memory"].astype(jnp.float32)
    m, embed = mem.shape
    hidden = params["w1"].shape[1]

    # ---- batch-independent preprocessing, hoisted out of the kernel ---------
    mem_n = mem / jnp.maximum(
        jnp.sqrt(jnp.sum(mem * mem, axis=1, keepdims=True)), EPS)
    # fusion #1: fold the normalized memory into the encoder's second Linear
    w2f = jnp.concatenate([params["w2"], params["w2"] @ mem_n.T], axis=1)
    b2f = jnp.concatenate([params["b2"], params["b2"] @ mem_n.T], axis=1)
    # fusion #2: fold the raw memory readout into the decoder's first Linear
    w3f = mem @ params["w3"]

    wcast = lambda w: w.astype(mm_dtype)        # weights resident in matmul dtype
    operands = (x_flat,
                wcast(params["w1"]), params["b1"],
                wcast(w2f), b2f,
                wcast(w3f), params["b3"],
                wcast(params["w4"]), params["b4"])

    # x / out stream per batch tile; every other operand uses a constant block
    # index -> DMA'd into VMEM once and reused across the whole grid.
    resident = lambda a: pl.BlockSpec(a.shape, lambda i: (0, 0))
    in_specs = [pl.BlockSpec((tile, d_in), lambda i: (i, 0))]
    in_specs += [resident(a) for a in operands[1:]]
    out_specs = pl.BlockSpec((tile, d_in), lambda i: (i, 0))

    flops_per_row = 2 * (d_in * hidden + hidden * (embed + m)
                         + m * hidden + hidden * d_in)
    in_bytes = sum(int(a.size) * a.dtype.itemsize for a in operands)
    out_bytes = b_pad * d_in * 4
    cost = pl.CostEstimate(
        flops=int(flops_per_row * b_pad),
        transcendentals=int(b_pad * (m + d_in + 1)),
        bytes_accessed=int(in_bytes + out_bytes),
    )

    kernel = functools.partial(_hard_attn_mem_ae_kernel,
                               topk=topk, embed_dim=embed, matmul_dtype=mm_dtype)

    out_flat = pl.pallas_call(
        kernel,
        out_shape=jax.ShapeDtypeStruct((b_pad, d_in), jnp.float32),
        grid=(n_tiles,),
        in_specs=in_specs,
        out_specs=out_specs,
        compiler_params=pltpu.CompilerParams(
            dimension_semantics=("parallel",)),   # batch tiles are independent
        cost_estimate=cost,
    )(*operands)

    return out_flat[:b].reshape(x.shape)


# ------------------------------ reference ------------------------------------
def reference_forward(x, params, topk=TOPK):
    """Pure-JAX f32 reference mirroring the PyTorch module (un-fused)."""
    b = x.shape[0]
    xf = x.reshape(b, -1).astype(jnp.float32)
    h1 = jnp.maximum(xf @ params["w1"] + params["b1"], 0.0)
    z = h1 @ params["w2"] + params["b2"]
    z_norm = z / jnp.maximum(jnp.linalg.norm(z, axis=1, keepdims=True), EPS)
    mem = params["memory"]
    mem_norm = mem / jnp.maximum(jnp.linalg.norm(mem, axis=1, keepdims=True), EPS)
    sim = z_norm @ mem_norm.T
    vals, idx = jax.lax.top_k(sim, topk)
    attn = jnp.zeros_like(sim).at[jnp.arange(b)[:, None], idx].set(vals)
    attn = jax.nn.softmax(attn, axis=1)
    z_mem = attn @ mem
    h3 = jnp.maximum(z_mem @ params["w3"] + params["b3"], 0.0)
    out = jax.nn.sigmoid(h3 @ params["w4"] + params["b4"])
    return out.reshape(x.shape)


# --------------------------------- main ---------------------------------------
if __name__ == "__main__":
    key = jax.random.PRNGKey(0)
    keys = jax.random.split(key, 11)

    def lin(kw, kb, fan_in, fan_out):
        # deterministic synthetic init (roughly PyTorch Linear scale)
        bound = 1.0 / jnp.sqrt(fan_in)
        w = jax.random.uniform(kw, (fan_in, fan_out), jnp.float32, -bound, bound)
        bb = jax.random.uniform(kb, (1, fan_out), jnp.float32, -bound, bound)
        return w, bb

    w1, b1 = lin(keys[0], keys[1], INPUT_DIM, HIDDEN)
    w2, b2 = lin(keys[2], keys[3], HIDDEN, EMBED_DIM)
    w3, b3 = lin(keys[4], keys[5], EMBED_DIM, HIDDEN)
    w4, b4 = lin(keys[6], keys[7], HIDDEN, INPUT_DIM)
    memory = jax.random.normal(keys[8], (MEMORY_SIZE, EMBED_DIM), jnp.float32)

    params = dict(w1=w1, b1=b1, w2=w2, b2=b2, memory=memory,
                  w3=w3, b3=b3, w4=w4, b4=b4)

    # --- f32 check at a small batch (padded to one tile) ----------------------
    #     (tolerance slightly looser than bit-exact: the fused weights change
    #      the floating-point association of two matmuls)
    x_small = jax.random.uniform(keys[9], (8, C, H_IMG, W_IMG), jnp.float32)
    y_pal = jax.block_until_ready(hard_attention_memory_ae(x_small, params))
    y_ref = reference_forward(x_small, params)
    assert y_pal.shape == x_small.shape
    err_f32 = float(jnp.max(jnp.abs(y_pal - y_ref)))
    assert err_f32 < 1e-4, err_f32

    # --- larger batch, bf16 matmul operands, multi-tile grid (even tile count) -
    x_big = jax.random.uniform(keys[10], (2 * TILE_B, C, H_IMG, W_IMG), jnp.float32)
    y_pal_bf = jax.block_until_ready(
        hard_attention_memory_ae(x_big, params, matmul_dtype=jnp.bfloat16))
    y_ref_f32 = reference_forward(x_big, params)
    assert y_pal_bf.shape == x_big.shape
    err_bf16 = float(jnp.max(jnp.abs(y_pal_bf - y_ref_f32)))
    assert err_bf16 < 5e-2, err_bf16

    print("KERNEL_OK")
</pallas_src>

<mosaic_0001>
module attributes {stable_mosaic.version = 11 : i64} {
  func.func @_hard_attn_mem_ae_kernel(%arg0: i32, %arg1: memref<128x128xf32, #tpu.memory_space<vmem>>, %arg2: memref<128x256xf32, #tpu.memory_space<vmem>>, %arg3: memref<1x256xf32, #tpu.memory_space<vmem>>, %arg4: memref<256x160xf32, #tpu.memory_space<vmem>>, %arg5: memref<1x160xf32, #tpu.memory_space<vmem>>, %arg6: memref<32x256xf32, #tpu.memory_space<vmem>>, %arg7: memref<1x256xf32, #tpu.memory_space<vmem>>, %arg8: memref<256x128xf32, #tpu.memory_space<vmem>>, %arg9: memref<1x128xf32, #tpu.memory_space<vmem>>, %arg10: memref<128x128xf32, #tpu.memory_space<vmem>>) attributes {dimension_semantics = [#tpu.dimension_semantics<parallel>], iteration_bounds = array<i64: 1>, scalar_prefetch = 0 : i64, scratch_operands = 0 : i64, tpu.core_type = #tpu.core_type<tc>, window_params = [{transform_indices = @transform_0, window_bounds = array<i64: 128, 128>}, {pipeline_mode = #tpu.pipeline_mode<synchronous>, transform_indices = @transform_1, window_bounds = array<i64: 128, 256>}, {pipeline_mode = #tpu.pipeline_mode<synchronous>, transform_indices = @transform_2, window_bounds = array<i64: 1, 256>}, {pipeline_mode = #tpu.pipeline_mode<synchronous>, transform_indices = @transform_3, window_bounds = array<i64: 256, 160>}, {pipeline_mode = #tpu.pipeline_mode<synchronous>, transform_indices = @transform_4, window_bounds = array<i64: 1, 160>}, {pipeline_mode = #tpu.pipeline_mode<synchronous>, transform_indices = @transform_5, window_bounds = array<i64: 32, 256>}, {pipeline_mode = #tpu.pipeline_mode<synchronous>, transform_indices = @transform_6, window_bounds = array<i64: 1, 256>}, {pipeline_mode = #tpu.pipeline_mode<synchronous>, transform_indices = @transform_7, window_bounds = array<i64: 256, 128>}, {pipeline_mode = #tpu.pipeline_mode<synchronous>, transform_indices = @transform_8, window_bounds = array<i64: 1, 128>}, {transform_indices = @transform_9, window_bounds = array<i64: 128, 128>}]} {
    %c0 = arith.constant 0 : index
    %c0_0 = arith.constant 0 : index
    %0 = vector.load %arg1[%c0, %c0_0] : memref<128x128xf32, #tpu.memory_space<vmem>>, vector<128x128xf32>
    %c0_1 = arith.constant 0 : index
    %c0_2 = arith.constant 0 : index
    %1 = vector.load %arg2[%c0_1, %c0_2] : memref<128x256xf32, #tpu.memory_space<vmem>>, vector<128x256xf32>
    %cst = arith.constant dense<0.000000e+00> : vector<128x256xf32>
    %2 = tpu.matmul %0, %1, %cst {dimension_numbers = #tpu.dot_dimension_numbers<[1], [0], [0], [1], [0, 0, 1, 1], [], []>} : vector<128x128xf32>, vector<128x256xf32>, vector<128x256xf32> -> vector<128x256xf32>
    %c0_3 = arith.constant 0 : index
    %c0_4 = arith.constant 0 : index
    %3 = vector.load %arg3[%c0_3, %c0_4] : memref<1x256xf32, #tpu.memory_space<vmem>>, vector<1x256xf32>
    %4 = vector.broadcast %3 : vector<1x256xf32> to vector<128x256xf32>
    %5 = arith.addf %2, %4 : vector<128x256xf32>
    %cst_5 = arith.constant 0.000000e+00 : f32
    %6 = vector.broadcast %cst_5 : f32 to vector<128x256xf32>
    %7 = arith.maximumf %5, %6 : vector<128x256xf32>
    %c0_6 = arith.constant 0 : index
    %c0_7 = arith.constant 0 : index
    %8 = vector.load %arg4[%c0_6, %c0_7] : memref<256x160xf32, #tpu.memory_space<vmem>>, vector<256x160xf32>
    %cst_8 = arith.constant dense<0.000000e+00> : vector<128x160xf32>
    %9 = tpu.matmul %7, %8, %cst_8 {dimension_numbers = #tpu.dot_dimension_numbers<[1], [0], [0], [1], [0, 0, 1, 1], [], []>} : vector<128x256xf32>, vector<256x160xf32>, vector<128x160xf32> -> vector<128x160xf32>
    %c0_9 = arith.constant 0 : index
    %c0_10 = arith.constant 0 : index
    %10 = vector.load %arg5[%c0_9, %c0_10] : memref<1x160xf32, #tpu.memory_space<vmem>>, vector<1x160xf32>
    %11 = vector.broadcast %10 : vector<1x160xf32> to vector<128x160xf32>
    %12 = arith.addf %9, %11 : vector<128x160xf32>
    %13 = vector.extract_strided_slice %12 {offsets = [0, 0], sizes = [128, 128], strides = [1, 1]} : vector<128x160xf32> to vector<128x128xf32>
    %14 = vector.extract_strided_slice %12 {offsets = [0, 128], sizes = [128, 32], strides = [1, 1]} : vector<128x160xf32> to vector<128x32xf32>
    %15 = arith.mulf %13, %13 : vector<128x128xf32>
    %cst_11 = arith.constant dense<0.000000e+00> : vector<128xf32>
    %16 = vector.multi_reduction <add>, %15, %cst_11 [1] : vector<128x128xf32> to vector<128xf32>
    %17 = vector.shape_cast %16 : vector<128xf32> to vector<128x1xf32>
    %cst_12 = arith.constant 1.000000e-24 : f32
    %18 = vector.broadcast %cst_12 : f32 to vector<128x1xf32>
    %19 = arith.maximumf %17, %18 : vector<128x1xf32>
    %20 = math.rsqrt %19 : vector<128x1xf32>
    %21 = vector.broadcast %20 : vector<128x1xf32> to vector<128x32xf32>
    %22 = arith.mulf %14, %21 : vector<128x32xf32>
    %23 = tpu.iota {dimensions = array<i32: 1>} : vector<128x32xi32>
    %cst_13 = arith.constant 0.000000e+00 : f32
    %24 = vector.broadcast %cst_13 : f32 to vector<128x32xf32>
    %cst_14 = arith.constant dense<0xFF800000> : vector<128xf32>
    %25 = vector.multi_reduction <maximumf>, %22, %cst_14 [1] : vector<128x32xf32> to vector<128xf32>
    %26 = vector.shape_cast %25 : vector<128xf32> to vector<128x1xf32>
    %27 = vector.broadcast %26 : vector<128x1xf32> to vector<128x32xf32>
    %28 = arith.cmpf oeq, %22, %27 : vector<128x32xf32>
    %c32_i32 = arith.constant 32 : i32
    %29 = vector.broadcast %c32_i32 : i32 to vector<128x32xi32>
    %30 = arith.select %28, %23, %29 : vector<128x32xi1>, vector<128x32xi32>
    %cst_15 = arith.constant dense<2147483647> : vector<128xi32>
    %31 = vector.multi_reduction <minsi>, %30, %cst_15 [1] : vector<128x32xi32> to vector<128xi32>
    %32 = vector.shape_cast %31 : vector<128xi32> to vector<128x1xi32>
    %33 = vector.broadcast %32 : vector<128x1xi32> to vector<128x32xi32>
    %34 = arith.cmpi eq, %23, %33 : vector<128x32xi32>
    %35 = vector.shape_cast %26 : vector<128x1xf32> to vector<128x1xf32>
    %36 = vector.broadcast %35 : vector<128x1xf32> to vector<128x32xf32>
    %37 = arith.select %34, %36, %24 : vector<128x32xi1>, vector<128x32xf32>
    %cst_16 = arith.constant 0xFF800000 : f32
    %38 = vector.broadcast %cst_16 : f32 to vector<128x32xf32>
    %39 = arith.select %34, %38, %22 : vector<128x32xi1>, vector<128x32xf32>
    %cst_17 = arith.constant dense<0xFF800000> : vector<128xf32>
    %40 = vector.multi_reduction <maximumf>, %39, %cst_17 [1] : vector<128x32xf32> to vector<128xf32>
    %41 = vector.shape_cast %40 : vector<128xf32> to vector<128x1xf32>
    %42 = vector.broadcast %41 : vector<128x1xf32> to vector<128x32xf32>
    %43 = arith.cmpf oeq, %39, %42 : vector<128x32xf32>
    %c32_i32_18 = arith.constant 32 : i32
    %44 = vector.broadcast %c32_i32_18 : i32 to vector<128x32xi32>
    %45 = arith.select %43, %23, %44 : vector<128x32xi1>, vector<128x32xi32>
    %cst_19 = arith.constant dense<2147483647> : vector<128xi32>
    %46 = vector.multi_reduction <minsi>, %45, %cst_19 [1] : vector<128x32xi32> to vector<128xi32>
    %47 = vector.shape_cast %46 : vector<128xi32> to vector<128x1xi32>
    %48 = vector.broadcast %47 : vector<128x1xi32> to vector<128x32xi32>
    %49 = arith.cmpi eq, %23, %48 : vector<128x32xi32>
    %50 = vector.shape_cast %41 : vector<128x1xf32> to vector<128x1xf32>
    %51 = vector.broadcast %50 : vector<128x1xf32> to vector<128x32xf32>
    %52 = arith.select %49, %51, %37 : vector<128x32xi1>, vector<128x32xf32>
    %cst_20 = arith.constant 0xFF800000 : f32
    %53 = vector.broadcast %cst_20 : f32 to vector<128x32xf32>
    %54 = arith.select %49, %53, %39 : vector<128x32xi1>, vector<128x32xf32>
    %cst_21 = arith.constant dense<0xFF800000> : vector<128xf32>
    %55 = vector.multi_reduction <maximumf>, %54, %cst_21 [1] : vector<128x32xf32> to vector<128xf32>
    %56 = vector.shape_cast %55 : vector<128xf32> to vector<128x1xf32>
    %57 = vector.broadcast %56 : vector<128x1xf32> to vector<128x32xf32>
    %58 = arith.cmpf oeq, %54, %57 : vector<128x32xf32>
    %c32_i32_22 = arith.constant 32 : i32
    %59 = vector.broadcast %c32_i32_22 : i32 to vector<128x32xi32>
    %60 = arith.select %58, %23, %59 : vector<128x32xi1>, vector<128x32xi32>
    %cst_23 = arith.constant dense<2147483647> : vector<128xi32>
    %61 = vector.multi_reduction <minsi>, %60, %cst_23 [1] : vector<128x32xi32> to vector<128xi32>
    %62 = vector.shape_cast %61 : vector<128xi32> to vector<128x1xi32>
    %63 = vector.broadcast %62 : vector<128x1xi32> to vector<128x32xi32>
    %64 = arith.cmpi eq, %23, %63 : vector<128x32xi32>
    %65 = vector.shape_cast %56 : vector<128x1xf32> to vector<128x1xf32>
    %66 = vector.broadcast %65 : vector<128x1xf32> to vector<128x32xf32>
    %67 = arith.select %64, %66, %52 : vector<128x32xi1>, vector<128x32xf32>
    %cst_24 = arith.constant 0xFF800000 : f32
    %68 = vector.broadcast %cst_24 : f32 to vector<128x32xf32>
    %69 = arith.select %64, %68, %54 : vector<128x32xi1>, vector<128x32xf32>
    %cst_25 = arith.constant dense<0xFF800000> : vector<128xf32>
    %70 = vector.multi_reduction <maximumf>, %69, %cst_25 [1] : vector<128x32xf32> to vector<128xf32>
    %71 = vector.shape_cast %70 : vector<128xf32> to vector<128x1xf32>
    %72 = vector.broadcast %71 : vector<128x1xf32> to vector<128x32xf32>
    %73 = arith.cmpf oeq, %69, %72 : vector<128x32xf32>
    %c32_i32_26 = arith.constant 32 : i32
    %74 = vector.broadcast %c32_i32_26 : i32 to vector<128x32xi32>
    %75 = arith.select %73, %23, %74 : vector<128x32xi1>, vector<128x32xi32>
    %cst_27 = arith.constant dense<2147483647> : vector<128xi32>
    %76 = vector.multi_reduction <minsi>, %75, %cst_27 [1] : vector<128x32xi32> to vector<128xi32>
    %77 = vector.shape_cast %76 : vector<128xi32> to vector<128x1xi32>
    %78 = vector.broadcast %77 : vector<128x1xi32> to vector<128x32xi32>
    %79 = arith.cmpi eq, %23, %78 : vector<128x32xi32>
    %80 = vector.shape_cast %71 : vector<128x1xf32> to vector<128x1xf32>
    %81 = vector.broadcast %80 : vector<128x1xf32> to vector<128x32xf32>
    %82 = arith.select %79, %81, %67 : vector<128x32xi1>, vector<128x32xf32>
    %cst_28 = arith.constant 0xFF800000 : f32
    %83 = vector.broadcast %cst_28 : f32 to vector<128x32xf32>
    %84 = arith.select %79, %83, %69 : vector<128x32xi1>, vector<128x32xf32>
    %cst_29 = arith.constant dense<0xFF800000> : vector<128xf32>
    %85 = vector.multi_reduction <maximumf>, %84, %cst_29 [1] : vector<128x32xf32> to vector<128xf32>
    %86 = vector.shape_cast %85 : vector<128xf32> to vector<128x1xf32>
    %87 = vector.broadcast %86 : vector<128x1xf32> to vector<128x32xf32>
    %88 = arith.cmpf oeq, %84, %87 : vector<128x32xf32>
    %c32_i32_30 = arith.constant 32 : i32
    %89 = vector.broadcast %c32_i32_30 : i32 to vector<128x32xi32>
    %90 = arith.select %88, %23, %89 : vector<128x32xi1>, vector<128x32xi32>
    %cst_31 = arith.constant dense<2147483647> : vector<128xi32>
    %91 = vector.multi_reduction <minsi>, %90, %cst_31 [1] : vector<128x32xi32> to vector<128xi32>
    %92 = vector.shape_cast %91 : vector<128xi32> to vector<128x1xi32>
    %93 = vector.broadcast %92 : vector<128x1xi32> to vector<128x32xi32>
    %94 = arith.cmpi eq, %23, %93 : vector<128x32xi32>
    %95 = vector.shape_cast %86 : vector<128x1xf32> to vector<128x1xf32>
    %96 = vector.broadcast %95 : vector<128x1xf32> to vector<128x32xf32>
    %97 = arith.select %94, %96, %82 : vector<128x32xi1>, vector<128x32xf32>
    %cst_32 = arith.constant dense<0xFF800000> : vector<128xf32>
    %98 = vector.multi_reduction <maximumf>, %97, %cst_32 [1] : vector<128x32xf32> to vector<128xf32>
    %99 = vector.shape_cast %98 : vector<128xf32> to vector<128x1xf32>
    %100 = vector.broadcast %99 : vector<128x1xf32> to vector<128x32xf32>
    %101 = arith.subf %97, %100 : vector<128x32xf32>
    %102 = math.exp %101 : vector<128x32xf32>
    %cst_33 = arith.constant dense<0.000000e+00> : vector<128xf32>
    %103 = vector.multi_reduction <add>, %102, %cst_33 [1] : vector<128x32xf32> to vector<128xf32>
    %104 = vector.shape_cast %103 : vector<128xf32> to vector<128x1xf32>
    %105 = vector.broadcast %104 : vector<128x1xf32> to vector<128x32xf32>
    %106 = arith.divf %102, %105 : vector<128x32xf32>
    %c0_34 = arith.constant 0 : index
    %c0_35 = arith.constant 0 : index
    %107 = vector.load %arg6[%c0_34, %c0_35] : memref<32x256xf32, #tpu.memory_space<vmem>>, vector<32x256xf32>
    %cst_36 = arith.constant dense<0.000000e+00> : vector<128x256xf32>
    %108 = tpu.matmul %106, %107, %cst_36 {dimension_numbers = #tpu.dot_dimension_numbers<[1], [0], [0], [1], [0, 0, 1, 1], [], []>} : vector<128x32xf32>, vector<32x256xf32>, vector<128x256xf32> -> vector<128x256xf32>
    %c0_37 = arith.constant 0 : index
    %c0_38 = arith.constant 0 : index
    %109 = vector.load %arg7[%c0_37, %c0_38] : memref<1x256xf32, #tpu.memory_space<vmem>>, vector<1x256xf32>
    %110 = vector.broadcast %109 : vector<1x256xf32> to vector<128x256xf32>
    %111 = arith.addf %108, %110 : vector<128x256xf32>
    %cst_39 = arith.constant 0.000000e+00 : f32
    %112 = vector.broadcast %cst_39 : f32 to vector<128x256xf32>
    %113 = arith.maximumf %111, %112 : vector<128x256xf32>
    %c0_40 = arith.constant 0 : index
    %c0_41 = arith.constant 0 : index
    %114 = vector.load %arg8[%c0_40, %c0_41] : memref<256x128xf32, #tpu.memory_space<vmem>>, vector<256x128xf32>
    %cst_42 = arith.constant dense<0.000000e+00> : vector<128x128xf32>
    %115 = tpu.matmul %113, %114, %cst_42 {dimension_numbers = #tpu.dot_dimension_numbers<[1], [0], [0], [1], [0, 0, 1, 1], [], []>} : vector<128x256xf32>, vector<256x128xf32>, vector<128x128xf32> -> vector<128x128xf32>
    %c0_43 = arith.constant 0 : index
    %c0_44 = arith.constant 0 : index
    %116 = vector.load %arg9[%c0_43, %c0_44] : memref<1x128xf32, #tpu.memory_space<vmem>>, vector<1x128xf32>
    %117 = vector.broadcast %116 : vector<1x128xf32> to vector<128x128xf32>
    %118 = arith.addf %115, %117 : vector<128x128xf32>
    %119 = arith.negf %118 : vector<128x128xf32>
    %120 = math.exp %119 : vector<128x128xf32>
    %cst_45 = arith.constant 1.000000e+00 : f32
    %121 = vector.broadcast %cst_45 : f32 to vector<128x128xf32>
    %122 = arith.addf %121, %120 : vector<128x128xf32>
    %123 = arith.divf %121, %122 : vector<128x128xf32>
    %c0_46 = arith.constant 0 : index
    %c0_47 = arith.constant 0 : index
    %124 = vector.load %arg10[%c0_46, %c0_47] : memref<128x128xf32, #tpu.memory_space<vmem>>, vector<128x128xf32>
    tpu.vector_store %arg10[%c0_46, %c0_47], %123 {strides = array<i32>} : memref<128x128xf32, #tpu.memory_space<vmem>>, vector<128x128xf32>,
    return
  }
  func.func @transform_0(%arg0: i32) -> (i32, i32) {
    %c0_i32 = arith.constant 0 : i32
    %c0_i32_0 = arith.constant 0 : i32
    return %arg0, %c0_i32 : i32, i32
  }
  func.func @transform_1(%arg0: i32) -> (i32, i32) {
    %c0_i32 = arith.constant 0 : i32
    %c0_i32_0 = arith.constant 0 : i32
    %c0_i32_1 = arith.constant 0 : i32
    return %c0_i32, %c0_i32_0 : i32, i32
  }
  func.func @transform_2(%arg0: i32) -> (i32, i32) {
    %c0_i32 = arith.constant 0 : i32
    %c0_i32_0 = arith.constant 0 : i32
    %c0_i32_1 = arith.constant 0 : i32
    return %c0_i32, %c0_i32_0 : i32, i32
  }
  func.func @transform_3(%arg0: i32) -> (i32, i32) {
    %c0_i32 = arith.constant 0 : i32
    %c0_i32_0 = arith.constant 0 : i32
    %c0_i32_1 = arith.constant 0 : i32
    return %c0_i32, %c0_i32_0 : i32, i32
  }
  func.func @transform_4(%arg0: i32) -> (i32, i32) {
    %c0_i32 = arith.constant 0 : i32
    %c0_i32_0 = arith.constant 0 : i32
    %c0_i32_1 = arith.constant 0 : i32
    return %c0_i32, %c0_i32_0 : i32, i32
  }
  func.func @transform_5(%arg0: i32) -> (i32, i32) {
    %c0_i32 = arith.constant 0 : i32
    %c0_i32_0 = arith.constant 0 : i32
    %c0_i32_1 = arith.constant 0 : i32
    return %c0_i32, %c0_i32_0 : i32, i32
  }
  func.func @transform_6(%arg0: i32) -> (i32, i32) {
    %c0_i32 = arith.constant 0 : i32
    %c0_i32_0 = arith.constant 0 : i32
    %c0_i32_1 = arith.constant 0 : i32
    return %c0_i32, %c0_i32_0 : i32, i32
  }
  func.func @transform_7(%arg0: i32) -> (i32, i32) {
    %c0_i32 = arith.constant 0 : i32
    %c0_i32_0 = arith.constant 0 : i32
    %c0_i32_1 = arith.constant 0 : i32
    return %c0_i32, %c0_i32_0 : i32, i32
  }
  func.func @transform_8(%arg0: i32) -> (i32, i32) {
    %c0_i32 = arith.constant 0 : i32
    %c0_i32_0 = arith.constant 0 : i32
    %c0_i32_1 = arith.constant 0 : i32
    return %c0_i32, %c0_i32_0 : i32, i32
  }
  func.func @transform_9(%arg0: i32) -> (i32, i32) {
    %c0_i32 = arith.constant 0 : i32
    %c0_i32_0 = arith.constant 0 : i32
    return %arg0, %c0_i32 : i32, i32
  }
}

</mosaic_0001>

<llo_original>
// kernel: hard_attention_memory_ae.1
$region0: #{hard_attention_memory_ae.1}
  #allocation0 [shape = 'u32[]', space=smem, size = 0x4, offset = 0x4, fixed_abs, tag = 'smem constant byte address 0x4 - core index']
  #allocation1 [shape = 'u32[144,128]{1,0:T(1,128)}', space=vmem, size = 0x12000, scoped, tag = 'internal scratch']
  %s0 = inlined_call_operand.vmem [shape: f32[128,128], index: 0, kind: input, shape index: {}]
  %s1 = inlined_call_operand.vmem [shape: f32[128,256], index: 1, kind: input, shape index: {}]
  %s2 = inlined_call_operand.vmem [shape: f32[1,256], index: 2, kind: input, shape index: {}]
  %s3 = inlined_call_operand.vmem [shape: f32[256,160], index: 3, kind: input, shape index: {}]
  %s4 = inlined_call_operand.vmem [shape: f32[1,160], index: 4, kind: input, shape index: {}]
  %s5 = inlined_call_operand.vmem [shape: f32[32,256], index: 5, kind: input, shape index: {}]
  %s6 = inlined_call_operand.vmem [shape: f32[1,256], index: 6, kind: input, shape index: {}]
  %s7 = inlined_call_operand.vmem [shape: f32[256,128], index: 7, kind: input, shape index: {}]
  %s8 = inlined_call_operand.vmem [shape: f32[1,128], index: 8, kind: input, shape index: {}]
  %s9 = inlined_call_operand.vmem [shape: f32[128,128], index: 9, kind: output, shape index: {}]
  %s10 = sld [smem:[#allocation0]]
  $region46: #{hard_attention_memory_ae.1} parent=0
    _
  %s12 = ssub.s32 1, %s10
  %s13 = scalar_select 0, %s12, %s10
  // Predicated region
  $region2: #{hard_attention_memory_ae.1} parent=0 // pred_check
    _
  $region3: #{hard_attention_memory_ae.1} parent=0 // pred_check_branch
    %15 = sbr.rel (0) target = $region5
  $region4: #{hard_attention_memory_ae.1} parent=0 // pred_region
    _
  $region5: #{hard_attention_memory_ae.1} parent=0 // pred_fallthru
    _
  // Predicated region
  $region6: #{hard_attention_memory_ae.1} parent=0 // pred_check
    _
  $region7: #{hard_attention_memory_ae.1} parent=0 // pred_check_branch
    %17 = sbr.rel (0) target = $region9
  $region8: #{hard_attention_memory_ae.1} parent=0 // pred_region
    _
  $region9: #{hard_attention_memory_ae.1} parent=0 // pred_fallthru
    _
  // Predicated region
  $region10: #{hard_attention_memory_ae.1} parent=0 // pred_check
    _
  $region11: #{hard_attention_memory_ae.1} parent=0 // pred_check_branch
    %19 = sbr.rel (0) target = $region13
  $region12: #{hard_attention_memory_ae.1} parent=0 // pred_region
    _
  $region13: #{hard_attention_memory_ae.1} parent=0 // pred_fallthru
    _
  // Predicated region
  $region14: #{hard_attention_memory_ae.1} parent=0 // pred_check
    _
  $region15: #{hard_attention_memory_ae.1} parent=0 // pred_check_branch
    %21 = sbr.rel (0) target = $region17
  $region16: #{hard_attention_memory_ae.1} parent=0 // pred_region
    _
  $region17: #{hard_attention_memory_ae.1} parent=0 // pred_fallthru
    _
  // Predicated region
  $region18: #{hard_attention_memory_ae.1} parent=0 // pred_check
    _
  $region19: #{hard_attention_memory_ae.1} parent=0 // pred_check_branch
    %23 = sbr.rel (0) target = $region21
  $region20: #{hard_attention_memory_ae.1} parent=0 // pred_region
    _
  $region21: #{hard_attention_memory_ae.1} parent=0 // pred_fallthru
    _
  // Predicated region
  $region22: #{hard_attention_memory_ae.1} parent=0 // pred_check
    _
  $region23: #{hard_attention_memory_ae.1} parent=0 // pred_check_branch
    %25 = sbr.rel (0) target = $region25
  $region24: #{hard_attention_memory_ae.1} parent=0 // pred_region
    _
  $region25: #{hard_attention_memory_ae.1} parent=0 // pred_fallthru
    _
  // Predicated region
  $region26: #{hard_attention_memory_ae.1} parent=0 // pred_check
    _
  $region27: #{hard_attention_memory_ae.1} parent=0 // pred_check_branch
    %27 = sbr.rel (0) target = $region29
  $region28: #{hard_attention_memory_ae.1} parent=0 // pred_region
    _
  $region29: #{hard_attention_memory_ae.1} parent=0 // pred_fallthru
    _
  // Predicated region
  $region30: #{hard_attention_memory_ae.1} parent=0 // pred_check
    _
  $region31: #{hard_attention_memory_ae.1} parent=0 // pred_check_branch
    %29 = sbr.rel (0) target = $region33
  $region32: #{hard_attention_memory_ae.1} parent=0 // pred_region
    _
  $region33: #{hard_attention_memory_ae.1} parent=0 // pred_fallthru
    _
  // Predicated region
  $region34: #{hard_attention_memory_ae.1} parent=0 // pred_check
    _
  $region35: #{hard_attention_memory_ae.1} parent=0 // pred_check_branch
    %31 = sbr.rel (0) target = $region37
  $region36: #{hard_attention_memory_ae.1} parent=0 // pred_region
    _
  $region37: #{hard_attention_memory_ae.1} parent=0 // pred_fallthru
    _
  %v32 = vld [vmem:[%s0] sm:$0xff]
  %v33 = vld [vmem:[%s0 + $0x8] sm:$0xff]
  %v34 = vld [vmem:[%s0 + $0x10] sm:$0xff]
  %v35 = vld [vmem:[%s0 + $0x18] sm:$0xff]
  %v36 = vld [vmem:[%s0 + $0x20] sm:$0xff]
  %v37 = vld [vmem:[%s0 + $0x28] sm:$0xff]
  %v38 = vld [vmem:[%s0 + $0x30] sm:$0xff]
  %v39 = vld [vmem:[%s0 + $0x38] sm:$0xff]
  %v40 = vld [vmem:[%s0 + $0x40] sm:$0xff]
  %v41 = vld [vmem:[%s0 + $0x48] sm:$0xff]
  %v42 = vld [vmem:[%s0 + $0x50] sm:$0xff]
  %v43 = vld [vmem:[%s0 + $0x58] sm:$0xff]
  %v44 = vld [vmem:[%s0 + $0x60] sm:$0xff]
  %v45 = vld [vmem:[%s0 + $0x68] sm:$0xff]
  %v46 = vld [vmem:[%s0 + $0x70] sm:$0xff]
  %v47 = vld [vmem:[%s0 + $0x78] sm:$0xff]
  %v48 = vld [vmem:[%s1] sm:$0xff]
  %v49 = vld [vmem:[%s1 + $0x8] sm:$0xff]
  %v50 = vld [vmem:[%s1 + $0x10] sm:$0xff]
  %v51 = vld [vmem:[%s1 + $0x18] sm:$0xff]
  %v52 = vld [vmem:[%s1 + $0x20] sm:$0xff]
  %v53 = vld [vmem:[%s1 + $0x28] sm:$0xff]
  %v54 = vld [vmem:[%s1 + $0x30] sm:$0xff]
  %v55 = vld [vmem:[%s1 + $0x38] sm:$0xff]
  %v56 = vld [vmem:[%s1 + $0x40] sm:$0xff]
  %v57 = vld [vmem:[%s1 + $0x48] sm:$0xff]
  %v58 = vld [vmem:[%s1 + $0x50] sm:$0xff]
  %v59 = vld [vmem:[%s1 + $0x58] sm:$0xff]
  %v60 = vld [vmem:[%s1 + $0x60] sm:$0xff]
  %v61 = vld [vmem:[%s1 + $0x68] sm:$0xff]
  %v62 = vld [vmem:[%s1 + $0x70] sm:$0xff]
  %v63 = vld [vmem:[%s1 + $0x78] sm:$0xff]
  %v64 = vld [vmem:[%s1 + $0x80] sm:$0xff]
  %v65 = vld [vmem:[%s1 + $0x88] sm:$0xff]
  %v66 = vld [vmem:[%s1 + $0x90] sm:$0xff]
  %v67 = vld [vmem:[%s1 + $0x98] sm:$0xff]
  %v68 = vld [vmem:[%s1 + $0xa0] sm:$0xff]
  %v69 = vld [vmem:[%s1 + $0xa8] sm:$0xff]
  %v70 = vld [vmem:[%s1 + $0xb0] sm:$0xff]
  %v71 = vld [vmem:[%s1 + $0xb8] sm:$0xff]
  %v72 = vld [vmem:[%s1 + $0xc0] sm:$0xff]
  %v73 = vld [vmem:[%s1 + $0xc8] sm:$0xff]
  %v74 = vld [vmem:[%s1 + $0xd0] sm:$0xff]
  %v75 = vld [vmem:[%s1 + $0xd8] sm:$0xff]
  %v76 = vld [vmem:[%s1 + $0xe0] sm:$0xff]
  %v77 = vld [vmem:[%s1 + $0xe8] sm:$0xff]
  %v78 = vld [vmem:[%s1 + $0xf0] sm:$0xff]
  %v79 = vld [vmem:[%s1 + $0xf8] sm:$0xff]
  %v80 = vld [vmem:[%s2] sm:$0x3]
  %v82 = vlaneseq
  %v83 = vshrl.u32 %v82, 7
  %v84 = vsub.s32 0, %v83
  %v85 = vrot.slane %v80, %v84
  %v86 = vlaneseq
  %v87 = vshrl.u32 %v86, 7
  %v88 = vsub.s32 1, %v87
  %v89 = vrot.slane %v80, %v88
  %92 = vmatprep.subr.mxu0 %v79
  %93 = vmatpush1.msra.mxu0 %v78
  %94 = vmatprep.subr.mxu0 %v77
  %95 = vmatpush1.msra.mxu0 %v76
  %96 = vmatprep.subr.mxu0 %v75
  %97 = vmatpush1.msra.mxu0 %v74
  %98 = vmatprep.subr.mxu0 %v73
  %99 = vmatpush1.msra.mxu0 %v72
  %100 = vmatprep.subr.mxu0 %v71
  %101 = vmatpush1.msra.mxu0 %v70
  %102 = vmatprep.subr.mxu0 %v69
  %103 = vmatpush1.msra.mxu0 %v68
  %104 = vmatprep.subr.mxu0 %v67
  %105 = vmatpush1.msra.mxu0 %v66
  %106 = vmatprep.subr.mxu0 %v65
  %107 = vmatpush1.msra.mxu0 %v64
  %108 = vmatprep.subr.mxu0 %v63
  %109 = vmatpush1.msra.mxu0 %v62
  %110 = vmatprep.subr.mxu0 %v61
  %111 = vmatpush1.msra.mxu0 %v60
  %112 = vmatprep.subr.mxu0 %v59
  %113 = vmatpush1.msra.mxu0 %v58
  %114 = vmatprep.subr.mxu0 %v57
  %115 = vmatpush1.msra.mxu0 %v56
  %116 = vmatprep.subr.mxu0 %v55
  %117 = vmatpush1.msra.mxu0 %v54
  %118 = vmatprep.subr.mxu0 %v53
  %119 = vmatpush1.msra.mxu0 %v52
  %120 = vmatprep.subr.mxu0 %v51
  %121 = vmatpush1.msra.mxu0 %v50
  %122 = vmatprep.subr.mxu0 %v49
  %123 = vmatpush1.msra.mxu0 %v48
  %124 = vmatprep.subr.mxu0 0.0
  %125 = vmatpush2.msra.mxu0 0.0
  %126 = vmatprep.subr.mxu0 0.0
  %127 = vmatpush2.msra.mxu0 0.0
  %128 = vmatprep.subr.mxu0 0.0
  %129 = vmatpush2.msra.mxu0 0.0
  %130 = vmatprep.subr.mxu0 0.0
  %131 = vmatpush2.msra.mxu0 0.0
  %132 = vmatprep.subr.mxu0 0.0
  %133 = vmatpush2.msra.mxu0 0.0
  %134 = vmatprep.subr.mxu0 0.0
  %135 = vmatpush2.msra.mxu0 0.0
  %136 = vmatprep.subr.mxu0 0.0
  %137 = vmatpush2.msra.mxu0 0.0
  %138 = vmatprep.subr.mxu0 0.0
  %139 = vmatpush2.msra.mxu0 0.0
  %140 = vmatprep.subr.mxu0 0.0
  %141 = vmatpush2.msra.mxu0 0.0
  %142 = vmatprep.subr.mxu0 0.0
  %143 = vmatpush2.msra.mxu0 0.0
  %144 = vmatprep.subr.mxu0 0.0
  %145 = vmatpush2.msra.mxu0 0.0
  %146 = vmatprep.subr.mxu0 0.0
  %147 = vmatpush2.msra.mxu0 0.0
  %148 = vmatprep.subr.mxu0 0.0
  %149 = vmatpush2.msra.mxu0 0.0
  %150 = vmatprep.subr.mxu0 0.0
  %151 = vmatpush2.msra.mxu0 0.0
  %152 = vmatprep.subr.mxu0 0.0
  %153 = vmatpush2.msra.mxu0 0.0
  %154 = vmatprep.subr.mxu0 0.0
  %155 = vmatpush2.msra.mxu0 0.0
  %156 = vmatprep.mubr.f32.mxu0 0.0
  %157 = vmatmul.mubr.f32.gmra.mxu0 %v32
  %v158 = vpop.f32.mrf.mxu0
  %v159 = vadd.f32 %v85, %v158
  %v160 = vpop.f32.mrf.mxu0
  %v161 = vadd.f32 %v89, %v160
  %162 = vmatprep.mubr.f32.mxu0 0.0
  %163 = vmatmul.mubr.f32.gmra.mxu0 %v33
  %v164 = vpop.f32.mrf.mxu0
  %v165 = vadd.f32 %v85, %v164
  %v166 = vpop.f32.mrf.mxu0
  %v167 = vadd.f32 %v89, %v166
  %168 = vmatprep.mubr.f32.mxu0 0.0
  %169 = vmatmul.mubr.f32.gmra.mxu0 %v34
  %v170 = vpop.f32.mrf.mxu0
  %v171 = vadd.f32 %v85, %v170
  %v172 = vpop.f32.mrf.mxu0
  %v173 = vadd.f32 %v89, %v172
  %174 = vmatprep.mubr.f32.mxu0 0.0
  %175 = vmatmul.mubr.f32.gmra.mxu0 %v35
  %v176 = vpop.f32.mrf.mxu0
  %v177 = vadd.f32 %v85, %v176
  %v178 = vpop.f32.mrf.mxu0
  %v179 = vadd.f32 %v89, %v178
  %180 = vmatprep.mubr.f32.mxu0 0.0
  %181 = vmatmul.mubr.f32.gmra.mxu0 %v36
  %v182 = vpop.f32.mrf.mxu0
  %v183 = vadd.f32 %v85, %v182
  %v184 = vpop.f32.mrf.mxu0
  %v185 = vadd.f32 %v89, %v184
  %186 = vmatprep.mubr.f32.mxu0 0.0
  %187 = vmatmul.mubr.f32.gmra.mxu0 %v37
  %v188 = vpop.f32.mrf.mxu0
  %v189 = vadd.f32 %v85, %v188
  %v190 = vpop.f32.mrf.mxu0
  %v191 = vadd.f32 %v89, %v190
  %192 = vmatprep.mubr.f32.mxu0 0.0
  %193 = vmatmul.mubr.f32.gmra.mxu0 %v38
  %v194 = vpop.f32.mrf.mxu0
  %v195 = vadd.f32 %v85, %v194
  %v196 = vpop.f32.mrf.mxu0
  %v197 = vadd.f32 %v89, %v196
  %198 = vmatprep.mubr.f32.mxu0 0.0
  %199 = vmatmul.mubr.f32.gmra.mxu0 %v39
  %v200 = vpop.f32.mrf.mxu0
  %v201 = vadd.f32 %v85, %v200
  %v202 = vpop.f32.mrf.mxu0
  %v203 = vadd.f32 %v89, %v202
  %204 = vmatprep.mubr.f32.mxu0 0.0
  %205 = vmatmul.mubr.f32.gmra.mxu0 %v40
  %v206 = vpop.f32.mrf.mxu0
  %v207 = vadd.f32 %v85, %v206
  %v208 = vpop.f32.mrf.mxu0
  %v209 = vadd.f32 %v89, %v208
  %210 = vmatprep.mubr.f32.mxu0 0.0
  %211 = vmatmul.mubr.f32.gmra.mxu0 %v41
  %v212 = vpop.f32.mrf.mxu0
  %v213 = vadd.f32 %v85, %v212
  %v214 = vpop.f32.mrf.mxu0
  %v215 = vadd.f32 %v89, %v214
  %216 = vmatprep.mubr.f32.mxu0 0.0
  %217 = vmatmul.mubr.f32.gmra.mxu0 %v42
  %v218 = vpop.f32.mrf.mxu0
  %v219 = vadd.f32 %v85, %v218
  %v220 = vpop.f32.mrf.mxu0
  %v221 = vadd.f32 %v89, %v220
  %222 = vmatprep.mubr.f32.mxu0 0.0
  %223 = vmatmul.mubr.f32.gmra.mxu0 %v43
  %v224 = vpop.f32.mrf.mxu0
  %v225 = vadd.f32 %v85, %v224
  %v226 = vpop.f32.mrf.mxu0
  %v227 = vadd.f32 %v89, %v226
  %228 = vmatprep.mubr.f32.mxu0 0.0
  %229 = vmatmul.mubr.f32.gmra.mxu0 %v44
  %v230 = vpop.f32.mrf.mxu0
  %v231 = vadd.f32 %v85, %v230
  %v232 = vpop.f32.mrf.mxu0
  %v233 = vadd.f32 %v89, %v232
  %234 = vmatprep.mubr.f32.mxu0 0.0
  %235 = vmatmul.mubr.f32.gmra.mxu0 %v45
  %v236 = vpop.f32.mrf.mxu0
  %v237 = vadd.f32 %v85, %v236
  %v238 = vpop.f32.mrf.mxu0
  %v239 = vadd.f32 %v89, %v238
  %240 = vmatprep.mubr.f32.mxu0 0.0
  %241 = vmatmul.mubr.f32.gmra.mxu0 %v46
  %v242 = vpop.f32.mrf.mxu0
  %v243 = vadd.f32 %v85, %v242
  %v244 = vpop.f32.mrf.mxu0
  %v245 = vadd.f32 %v89, %v244
  %246 = vmatprep.mubr.f32.mxu0 0.0
  %247 = vmatmul.mubr.f32.gmra.mxu0 %v47
  %v248 = vpop.f32.mrf.mxu0
  %v249 = vadd.f32 %v85, %v248
  %v250 = vpop.f32.mrf.mxu0
  %v251 = vadd.f32 %v89, %v250
  %252 = vdwg.mxu0
  %v253 = vmax.f32 %v159, 0.0
  %v254 = vmax.f32 %v161, 0.0
  %v255 = vmax.f32 %v165, 0.0
  %v256 = vmax.f32 %v167, 0.0
  %v257 = vmax.f32 %v171, 0.0
  %v258 = vmax.f32 %v173, 0.0
  %v259 = vmax.f32 %v177, 0.0
  %v260 = vmax.f32 %v179, 0.0
  %v261 = vmax.f32 %v183, 0.0
  %v262 = vmax.f32 %v185, 0.0
  %v263 = vmax.f32 %v189, 0.0
  %v264 = vmax.f32 %v191, 0.0
  %v265 = vmax.f32 %v195, 0.0
  %v266 = vmax.f32 %v197, 0.0
  %v267 = vmax.f32 %v201, 0.0
  %v268 = vmax.f32 %v203, 0.0
  %v269 = vmax.f32 %v207, 0.0
  %v270 = vmax.f32 %v209, 0.0
  %v271 = vmax.f32 %v213, 0.0
  %v272 = vmax.f32 %v215, 0.0
  %v273 = vmax.f32 %v219, 0.0
  %v274 = vmax.f32 %v221, 0.0
  %v275 = vmax.f32 %v225, 0.0
  %v276 = vmax.f32 %v227, 0.0
  %v277 = vmax.f32 %v231, 0.0
  %v278 = vmax.f32 %v233, 0.0
  %v279 = vmax.f32 %v237, 0.0
  %v280 = vmax.f32 %v239, 0.0
  %v281 = vmax.f32 %v243, 0.0
  %v282 = vmax.f32 %v245, 0.0
  %v283 = vmax.f32 %v249, 0.0
  %v284 = vmax.f32 %v251, 0.0
  %v285 = vld [vmem:[%s3] sm:$0xff]
  %v286 = vld [vmem:[%s3 + $0x8] sm:$0xff]
  %v287 = vld [vmem:[%s3 + $0x10] sm:$0xff]
  %v288 = vld [vmem:[%s3 + $0x18] sm:$0xff]
  %v289 = vld [vmem:[%s3 + $0x20] sm:$0xff]
  %v290 = vld [vmem:[%s3 + $0x28] sm:$0xff]
  %v291 = vld [vmem:[%s3 + $0x30] sm:$0xff]
  %v292 = vld [vmem:[%s3 + $0x38] sm:$0xff]
  %v293 = vld [vmem:[%s3 + $0x40] sm:$0xff]
  %v294 = vld [vmem:[%s3 + $0x48] sm:$0xff]
  %v295 = vld [vmem:[%s3 + $0x50] sm:$0xff]
  %v296 = vld [vmem:[%s3 + $0x58] sm:$0xff]
  %v297 = vld [vmem:[%s3 + $0x60] sm:$0xff]
  %v298 = vld [vmem:[%s3 + $0x68] sm:$0xff]
  %v299 = vld [vmem:[%s3 + $0x70] sm:$0xff]
  %v300 = vld [vmem:[%s3 + $0x78] sm:$0xff]
  %v301 = vld [vmem:[%s3 + $0x80] sm:$0xff]
  %v302 = vld [vmem:[%s3 + $0x88] sm:$0xff]
  %v303 = vld [vmem:[%s3 + $0x90] sm:$0xff]
  %v304 = vld [vmem:[%s3 + $0x98] sm:$0xff]
  %v305 = vld [vmem:[%s3 + $0xa0] sm:$0xff]
  %v306 = vld [vmem:[%s3 + $0xa8] sm:$0xff]
  %v307 = vld [vmem:[%s3 + $0xb0] sm:$0xff]
  %v308 = vld [vmem:[%s3 + $0xb8] sm:$0xff]
  %v309 = vld [vmem:[%s3 + $0xc0] sm:$0xff]
  %v310 = vld [vmem:[%s3 + $0xc8] sm:$0xff]
  %v311 = vld [vmem:[%s3 + $0xd0] sm:$0xff]
  %v312 = vld [vmem:[%s3 + $0xd8] sm:$0xff]
  %v313 = vld [vmem:[%s3 + $0xe0] sm:$0xff]
  %v314 = vld [vmem:[%s3 + $0xe8] sm:$0xff]
  %v315 = vld [vmem:[%s3 + $0xf0] sm:$0xff]
  %v316 = vld [vmem:[%s3 + $0xf8] sm:$0xff]
  %v317 = vld [vmem:[%s3 + $0x100] sm:$0xff]
  %v318 = vld [vmem:[%s3 + $0x108] sm:$0xff]
  %v319 = vld [vmem:[%s3 + $0x110] sm:$0xff]
  %v320 = vld [vmem:[%s3 + $0x118] sm:$0xff]
  %v321 = vld [vmem:[%s3 + $0x120] sm:$0xff]
  %v322 = vld [vmem:[%s3 + $0x128] sm:$0xff]
  %v323 = vld [vmem:[%s3 + $0x130] sm:$0xff]
  %v324 = vld [vmem:[%s3 + $0x138] sm:$0xff]
  %v325 = vld [vmem:[%s3 + $0x140] sm:$0xff]
  %v326 = vld [vmem:[%s3 + $0x148] sm:$0xff]
  %v327 = vld [vmem:[%s3 + $0x150] sm:$0xff]
  %v328 = vld [vmem:[%s3 + $0x158] sm:$0xff]
  %v329 = vld [vmem:[%s3 + $0x160] sm:$0xff]
  %v330 = vld [vmem:[%s3 + $0x168] sm:$0xff]
  %v331 = vld [vmem:[%s3 + $0x170] sm:$0xff]
  %v332 = vld [vmem:[%s3 + $0x178] sm:$0xff]
  %v333 = vld [vmem:[%s3 + $0x180] sm:$0xff]
  %v334 = vld [vmem:[%s3 + $0x188] sm:$0xff]
  %v335 = vld [vmem:[%s3 + $0x190] sm:$0xff]
  %v336 = vld [vmem:[%s3 + $0x198] sm:$0xff]
  %v337 = vld [vmem:[%s3 + $0x1a0] sm:$0xff]
  %v338 = vld [vmem:[%s3 + $0x1a8] sm:$0xff]
  %v339 = vld [vmem:[%s3 + $0x1b0] sm:$0xff]
  %v340 = vld [vmem:[%s3 + $0x1b8] sm:$0xff]
  %v341 = vld [vmem:[%s3 + $0x1c0] sm:$0xff]
  %v342 = vld [vmem:[%s3 + $0x1c8] sm:$0xff]
  %v343 = vld [vmem:[%s3 + $0x1d0] sm:$0xff]
  %v344 = vld [vmem:[%s3 + $0x1d8] sm:$0xff]
  %v345 = vld [vmem:[%s3 + $0x1e0] sm:$0xff]
  %v346 = vld [vmem:[%s3 + $0x1e8] sm:$0xff]
  %v347 = vld [vmem:[%s3 + $0x1f0] sm:$0xff]
  %v348 = vld [vmem:[%s3 + $0x1f8] sm:$0xff]
  %v349 = vld [vmem:[%s4] sm:$0x3]
  %v351 = vlaneseq
  %v352 = vshrl.u32 %v351, 7
  %v353 = vsub.s32 0, %v352
  %v354 = vrot.slane %v349, %v353
  %v355 = vlaneseq
  %v356 = vshrl.u32 %v355, 7
  %v357 = vsub.s32 1, %v356
  %v358 = vrot.slane %v349, %v357
  %361 = vmatprep.subr.mxu0 %v316
  %362 = vmatpush1.msra.mxu0 %v315
  %363 = vmatprep.subr.mxu0 %v314
  %364 = vmatpush1.msra.mxu0 %v313
  %365 = vmatprep.subr.mxu0 %v312
  %366 = vmatpush1.msra.mxu0 %v311
  %367 = vmatprep.subr.mxu0 %v310
  %368 = vmatpush1.msra.mxu0 %v309
  %369 = vmatprep.subr.mxu0 %v308
  %370 = vmatpush1.msra.mxu0 %v307
  %371 = vmatprep.subr.mxu0 %v306
  %372 = vmatpush1.msra.mxu0 %v305
  %373 = vmatprep.subr.mxu0 %v304
  %374 = vmatpush1.msra.mxu0 %v303
  %375 = vmatprep.subr.mxu0 %v302
  %376 = vmatpush1.msra.mxu0 %v301
  %377 = vmatprep.subr.mxu0 %v300
  %378 = vmatpush1.msra.mxu0 %v299
  %379 = vmatprep.subr.mxu0 %v298
  %380 = vmatpush1.msra.mxu0 %v297
  %381 = vmatprep.subr.mxu0 %v296
  %382 = vmatpush1.msra.mxu0 %v295
  %383 = vmatprep.subr.mxu0 %v294
  %384 = vmatpush1.msra.mxu0 %v293
  %385 = vmatprep.subr.mxu0 %v292
  %386 = vmatpush1.msra.mxu0 %v291
  %387 = vmatprep.subr.mxu0 %v290
  %388 = vmatpush1.msra.mxu0 %v289
  %389 = vmatprep.subr.mxu0 %v288
  %390 = vmatpush1.msra.mxu0 %v287
  %391 = vmatprep.subr.mxu0 %v286
  %392 = vmatpush1.msra.mxu0 %v285
  %393 = vmatprep.subr.mxu0 %v348
  %394 = vmatpush2.msra.mxu0 %v347
  %395 = vmatprep.subr.mxu0 %v346
  %396 = vmatpush2.msra.mxu0 %v345
  %397 = vmatprep.subr.mxu0 %v344
  %398 = vmatpush2.msra.mxu0 %v343
  %399 = vmatprep.subr.mxu0 %v342
  %400 = vmatpush2.msra.mxu0 %v341
  %401 = vmatprep.subr.mxu0 %v340
  %402 = vmatpush2.msra.mxu0 %v339
  %403 = vmatprep.subr.mxu0 %v338
  %404 = vmatpush2.msra.mxu0 %v337
  %405 = vmatprep.subr.mxu0 %v336
  %406 = vmatpush2.msra.mxu0 %v335
  %407 = vmatprep.subr.mxu0 %v334
  %408 = vmatpush2.msra.mxu0 %v333
  %409 = vmatprep.subr.mxu0 %v332
  %410 = vmatpush2.msra.mxu0 %v331
  %411 = vmatprep.subr.mxu0 %v330
  %412 = vmatpush2.msra.mxu0 %v329
  %413 = vmatprep.subr.mxu0 %v328
  %414 = vmatpush2.msra.mxu0 %v327
  %415 = vmatprep.subr.mxu0 %v326
  %416 = vmatpush2.msra.mxu0 %v325
  %417 = vmatprep.subr.mxu0 %v324
  %418 = vmatpush2.msra.mxu0 %v323
  %419 = vmatprep.subr.mxu0 %v322
  %420 = vmatpush2.msra.mxu0 %v321
  %421 = vmatprep.subr.mxu0 %v320
  %422 = vmatpush2.msra.mxu0 %v319
  %423 = vmatprep.subr.mxu0 %v318
  %424 = vmatpush2.msra.mxu0 %v317
  %425 = vmatprep.mubr.f32.mxu0 %v254
  %426 = vmatmul.mubr.f32.gmra.mxu0 %v253
  %v427 = vpop.f32.mrf.mxu0
  %v428 = vadd.f32 %v354, %v427
  %v429 = vpop.f32.mrf.mxu0
  %v430 = vadd.f32 %v358, %v429
  %431 = vmatprep.mubr.f32.mxu0 %v256
  %432 = vmatmul.mubr.f32.gmra.mxu0 %v255
  %v433 = vpop.f32.mrf.mxu0
  %v434 = vadd.f32 %v354, %v433
  %v435 = vpop.f32.mrf.mxu0
  %v436 = vadd.f32 %v358, %v435
  %437 = vmatprep.mubr.f32.mxu0 %v258
  %438 = vmatmul.mubr.f32.gmra.mxu0 %v257
  %v439 = vpop.f32.mrf.mxu0
  %v440 = vadd.f32 %v354, %v439
  %v441 = vpop.f32.mrf.mxu0
  %v442 = vadd.f32 %v358, %v441
  %443 = vmatprep.mubr.f32.mxu0 %v260
  %444 = vmatmul.mubr.f32.gmra.mxu0 %v259
  %v445 = vpop.f32.mrf.mxu0
  %v446 = vadd.f32 %v354, %v445
  %v447 = vpop.f32.mrf.mxu0
  %v448 = vadd.f32 %v358, %v447
  %449 = vmatprep.mubr.f32.mxu0 %v262
  %450 = vmatmul.mubr.f32.gmra.mxu0 %v261
  %v451 = vpop.f32.mrf.mxu0
  %v452 = vadd.f32 %v354, %v451
  %v453 = vpop.f32.mrf.mxu0
  %v454 = vadd.f32 %v358, %v453
  %455 = vmatprep.mubr.f32.mxu0 %v264
  %456 = vmatmul.mubr.f32.gmra.mxu0 %v263
  %v457 = vpop.f32.mrf.mxu0
  %v458 = vadd.f32 %v354, %v457
  %v459 = vpop.f32.mrf.mxu0
  %v460 = vadd.f32 %v358, %v459
  %461 = vmatprep.mubr.f32.mxu0 %v266
  %462 = vmatmul.mubr.f32.gmra.mxu0 %v265
  %v463 = vpop.f32.mrf.mxu0
  %v464 = vadd.f32 %v354, %v463
  %v465 = vpop.f32.mrf.mxu0
  %v466 = vadd.f32 %v358, %v465
  %467 = vmatprep.mubr.f32.mxu0 %v268
  %468 = vmatmul.mubr.f32.gmra.mxu0 %v267
  %v469 = vpop.f32.mrf.mxu0
  %v470 = vadd.f32 %v354, %v469
  %v471 = vpop.f32.mrf.mxu0
  %v472 = vadd.f32 %v358, %v471
  %473 = vmatprep.mubr.f32.mxu0 %v270
  %474 = vmatmul.mubr.f32.gmra.mxu0 %v269
  %v475 = vpop.f32.mrf.mxu0
  %v476 = vadd.f32 %v354, %v475
  %v477 = vpop.f32.mrf.mxu0
  %v478 = vadd.f32 %v358, %v477
  %479 = vmatprep.mubr.f32.mxu0 %v272
  %480 = vmatmul.mubr.f32.gmra.mxu0 %v271
  %v481 = vpop.f32.mrf.mxu0
  %v482 = vadd.f32 %v354, %v481
  %v483 = vpop.f32.mrf.mxu0
  %v484 = vadd.f32 %v358, %v483
  %485 = vmatprep.mubr.f32.mxu0 %v274
  %486 = vmatmul.mubr.f32.gmra.mxu0 %v273
  %v487 = vpop.f32.mrf.mxu0
  %v488 = vadd.f32 %v354, %v487
  %v489 = vpop.f32.mrf.mxu0
  %v490 = vadd.f32 %v358, %v489
  %491 = vmatprep.mubr.f32.mxu0 %v276
  %492 = vmatmul.mubr.f32.gmra.mxu0 %v275
  %v493 = vpop.f32.mrf.mxu0
  %v494 = vadd.f32 %v354, %v493
  %v495 = vpop.f32.mrf.mxu0
  %v496 = vadd.f32 %v358, %v495
  %497 = vmatprep.mubr.f32.mxu0 %v278
  %498 = vmatmul.mubr.f32.gmra.mxu0 %v277
  %v499 = vpop.f32.mrf.mxu0
  %v500 = vadd.f32 %v354, %v499
  %v501 = vpop.f32.mrf.mxu0
  %v502 = vadd.f32 %v358, %v501
  %503 = vmatprep.mubr.f32.mxu0 %v280
  %504 = vmatmul.mubr.f32.gmra.mxu0 %v279
  %v505 = vpop.f32.mrf.mxu0
  %v506 = vadd.f32 %v354, %v505
  %v507 = vpop.f32.mrf.mxu0
  %v508 = vadd.f32 %v358, %v507
  %509 = vmatprep.mubr.f32.mxu0 %v282
  %510 = vmatmul.mubr.f32.gmra.mxu0 %v281
  %v511 = vpop.f32.mrf.mxu0
  %v512 = vadd.f32 %v354, %v511
  %v513 = vpop.f32.mrf.mxu0
  %v514 = vadd.f32 %v358, %v513
  %515 = vmatprep.mubr.f32.mxu0 %v284
  %516 = vmatmul.mubr.f32.gmra.mxu0 %v283
  %v517 = vpop.f32.mrf.mxu0
  %v518 = vadd.f32 %v354, %v517
  %v519 = vpop.f32.mrf.mxu0
  %v520 = vadd.f32 %v358, %v519
  %521 = vdwg.mxu0
  %v522 = vmul.f32 %v428, %v428
  %v523 = vmul.f32 %v434, %v434
  %v524 = vmul.f32 %v440, %v440
  %v525 = vmul.f32 %v446, %v446
  %v526 = vmul.f32 %v452, %v452
  %v527 = vmul.f32 %v458, %v458
  %v528 = vmul.f32 %v464, %v464
  %v529 = vmul.f32 %v470, %v470
  %v530 = vmul.f32 %v476, %v476
  %v531 = vmul.f32 %v482, %v482
  %v532 = vmul.f32 %v488, %v488
  %v533 = vmul.f32 %v494, %v494
  %v534 = vmul.f32 %v500, %v500
  %v535 = vmul.f32 %v506, %v506
  %v536 = vmul.f32 %v512, %v512
  %v537 = vmul.f32 %v518, %v518
  %538 = vadd.xlane.f32.xlu0 %v522
  %v539 = vpop.xlane.xlu0 %538
  %540 = vadd.xlane.f32.xlu0 %v523
  %v541 = vpop.xlane.xlu0 %540
  %542 = vadd.xlane.f32.xlu0 %v524
  %v543 = vpop.xlane.xlu0 %542
  %544 = vadd.xlane.f32.xlu0 %v525
  %v545 = vpop.xlane.xlu0 %544
  %546 = vadd.xlane.f32.xlu0 %v526
  %v547 = vpop.xlane.xlu0 %546
  %548 = vadd.xlane.f32.xlu0 %v527
  %v549 = vpop.xlane.xlu0 %548
  %550 = vadd.xlane.f32.xlu0 %v528
  %v551 = vpop.xlane.xlu0 %550
  %552 = vadd.xlane.f32.xlu0 %v529
  %v553 = vpop.xlane.xlu0 %552
  %554 = vadd.xlane.f32.xlu0 %v530
  %v555 = vpop.xlane.xlu0 %554
  %556 = vadd.xlane.f32.xlu0 %v531
  %v557 = vpop.xlane.xlu0 %556
  %558 = vadd.xlane.f32.xlu0 %v532
  %v559 = vpop.xlane.xlu0 %558
  %560 = vadd.xlane.f32.xlu0 %v533
  %v561 = vpop.xlane.xlu0 %560
  %562 = vadd.xlane.f32.xlu0 %v534
  %v563 = vpop.xlane.xlu0 %562
  %564 = vadd.xlane.f32.xlu0 %v535
  %v565 = vpop.xlane.xlu0 %564
  %566 = vadd.xlane.f32.xlu0 %v536
  %v567 = vpop.xlane.xlu0 %566
  %568 = vadd.xlane.f32.xlu0 %v537
  %v569 = vpop.xlane.xlu0 %568
  %v570 = vmax.f32 %v539, 1e-24
  %v571 = vmax.f32 %v541, 1e-24
  %v572 = vmax.f32 %v543, 1e-24
  %v573 = vmax.f32 %v545, 1e-24
  %v574 = vmax.f32 %v547, 1e-24
  %v575 = vmax.f32 %v549, 1e-24
  %v576 = vmax.f32 %v551, 1e-24
  %v577 = vmax.f32 %v553, 1e-24
  %v578 = vmax.f32 %v555, 1e-24
  %v579 = vmax.f32 %v557, 1e-24
  %v580 = vmax.f32 %v559, 1e-24
  %v581 = vmax.f32 %v561, 1e-24
  %v582 = vmax.f32 %v563, 1e-24
  %v583 = vmax.f32 %v565, 1e-24
  %v584 = vmax.f32 %v567, 1e-24
  %v585 = vmax.f32 %v569, 1e-24
  %v586 = vrsqrt.pop %v570
  %v587 = vrsqrt.pop %v571
  %v588 = vrsqrt.pop %v572
  %v589 = vrsqrt.pop %v573
  %v590 = vrsqrt.pop %v574
  %v591 = vrsqrt.pop %v575
  %v592 = vrsqrt.pop %v576
  %v593 = vrsqrt.pop %v577
  %v594 = vrsqrt.pop %v578
  %v595 = vrsqrt.pop %v579
  %v596 = vrsqrt.pop %v580
  %v597 = vrsqrt.pop %v581
  %v598 = vrsqrt.pop %v582
  %v599 = vrsqrt.pop %v583
  %v600 = vrsqrt.pop %v584
  %v601 = vrsqrt.pop %v585
  %v602 = vmul.f32 %v430, %v586
  %v603 = vmul.f32 %v436, %v587
  %v604 = vmul.f32 %v442, %v588
  %v605 = vmul.f32 %v448, %v589
  %v606 = vmul.f32 %v454, %v590
  %v607 = vmul.f32 %v460, %v591
  %v608 = vmul.f32 %v466, %v592
  %v609 = vmul.f32 %v472, %v593
  %v610 = vmul.f32 %v478, %v594
  %v611 = vmul.f32 %v484, %v595
  %v612 = vmul.f32 %v490, %v596
  %v613 = vmul.f32 %v496, %v597
  %v614 = vmul.f32 %v502, %v598
  %v615 = vmul.f32 %v508, %v599
  %v616 = vmul.f32 %v514, %v600
  %v617 = vmul.f32 %v520, %v601
  %v618 = vlaneseq
  %v619 = vand.u32 %v618, 127
  %vm620 = vcmask 261120
  %v621 = vsel %vm620, %v602, -inf
  %622 = vmax.xlane.f32.xlu0 %v621
  %v623 = vpop.xlane.xlu0 %622
  %v624 = vsel %vm620, %v603, -inf
  %625 = vmax.xlane.f32.xlu0 %v624
  %v626 = vpop.xlane.xlu0 %625
  %v627 = vsel %vm620, %v604, -inf
  %628 = vmax.xlane.f32.xlu0 %v627
  %v629 = vpop.xlane.xlu0 %628
  %v630 = vsel %vm620, %v605, -inf
  %631 = vmax.xlane.f32.xlu0 %v630
  %v632 = vpop.xlane.xlu0 %631
  %v633 = vsel %vm620, %v606, -inf
  %634 = vmax.xlane.f32.xlu0 %v633
  %v635 = vpop.xlane.xlu0 %634
  %v636 = vsel %vm620, %v607, -inf
  %637 = vmax.xlane.f32.xlu0 %v636
  %v638 = vpop.xlane.xlu0 %637
  %v639 = vsel %vm620, %v608, -inf
  %640 = vmax.xlane.f32.xlu0 %v639
  %v641 = vpop.xlane.xlu0 %640
  %v642 = vsel %vm620, %v609, -inf
  %643 = vmax.xlane.f32.xlu0 %v642
  %v644 = vpop.xlane.xlu0 %643
  %v645 = vsel %vm620, %v610, -inf
  %646 = vmax.xlane.f32.xlu0 %v645
  %v647 = vpop.xlane.xlu0 %646
  %v648 = vsel %vm620, %v611, -inf
  %649 = vmax.xlane.f32.xlu0 %v648
  %v650 = vpop.xlane.xlu0 %649
  %v651 = vsel %vm620, %v612, -inf
  %652 = vmax.xlane.f32.xlu0 %v651
  %v653 = vpop.xlane.xlu0 %652
  %v654 = vsel %vm620, %v613, -inf
  %655 = vmax.xlane.f32.xlu0 %v654
  %v656 = vpop.xlane.xlu0 %655
  %v657 = vsel %vm620, %v614, -inf
  %658 = vmax.xlane.f32.xlu0 %v657
  %v659 = vpop.xlane.xlu0 %658
  %v660 = vsel %vm620, %v615, -inf
  %661 = vmax.xlane.f32.xlu0 %v660
  %v662 = vpop.xlane.xlu0 %661
  %v663 = vsel %vm620, %v616, -inf
  %664 = vmax.xlane.f32.xlu0 %v663
  %v665 = vpop.xlane.xlu0 %664
  %v666 = vsel %vm620, %v617, -inf
  %667 = vmax.xlane.f32.xlu0 %v666
  %v668 = vpop.xlane.xlu0 %667
  %vm669 = vcmp.eq.f32.partialorder %v602, %v623
  %vm670 = vcmp.eq.f32.partialorder %v603, %v626
  %vm671 = vcmp.eq.f32.partialorder %v604, %v629
  %vm672 = vcmp.eq.f32.partialorder %v605, %v632
  %vm673 = vcmp.eq.f32.partialorder %v606, %v635
  %vm674 = vcmp.eq.f32.partialorder %v607, %v638
  %vm675 = vcmp.eq.f32.partialorder %v608, %v641
  %vm676 = vcmp.eq.f32.partialorder %v609, %v644
  %vm677 = vcmp.eq.f32.partialorder %v610, %v647
  %vm678 = vcmp.eq.f32.partialorder %v611, %v650
  %vm679 = vcmp.eq.f32.partialorder %v612, %v653
  %vm680 = vcmp.eq.f32.partialorder %v613, %v656
  %vm681 = vcmp.eq.f32.partialorder %v614, %v659
  %vm682 = vcmp.eq.f32.partialorder %v615, %v662
  %vm683 = vcmp.eq.f32.partialorder %v616, %v665
  %vm684 = vcmp.eq.f32.partialorder %v617, %v668
  %v685 = vsel %vm669, %v619, 32
  %v686 = vsel %vm670, %v619, 32
  %v687 = vsel %vm671, %v619, 32
  %v688 = vsel %vm672, %v619, 32
  %v689 = vsel %vm673, %v619, 32
  %v690 = vsel %vm674, %v619, 32
  %v691 = vsel %vm675, %v619, 32
  %v692 = vsel %vm676, %v619, 32
  %v693 = vsel %vm677, %v619, 32
  %v694 = vsel %vm678, %v619, 32
  %v695 = vsel %vm679, %v619, 32
  %v696 = vsel %vm680, %v619, 32
  %v697 = vsel %vm681, %v619, 32
  %v698 = vsel %vm682, %v619, 32
  %v699 = vsel %vm683, %v619, 32
  %v700 = vsel %vm684, %v619, 32
  %v701 = vsel %vm620, %v685, 2147483647
  %v702 = vand.u32 %v701, 65535
  %v703 = vshra.s32 %v701, 16
  %v704 = vcvt.s32.f32 %v702
  %v705 = vcvt.s32.f32 %v703
  %706 = vmin.xlane.f32.xlu0 %v705
  %v707 = vpop.xlane.xlu0 %706
  %vm708 = vcmp.eq.f32.partialorder %v705, %v707
  %v709 = vsel %vm708, %v704, inf
  %710 = vmin.xlane.f32.xlu0 %v709
  %v711 = vpop.xlane.xlu0 %710
  %v712 = vcvt.f32.s32 %v711
  %v713 = vcvt.f32.s32 %v707
  %v714 = vshll.u32 %v713, 16
  %v715 = vadd.s32 %v714, %v712
  %v716 = vsel %vm620, %v686, 2147483647
  %v717 = vand.u32 %v716, 65535
  %v718 = vshra.s32 %v716, 16
  %v719 = vcvt.s32.f32 %v717
  %v720 = vcvt.s32.f32 %v718
  %721 = vmin.xlane.f32.xlu0 %v720
  %v722 = vpop.xlane.xlu0 %721
  %vm723 = vcmp.eq.f32.partialorder %v720, %v722
  %v724 = vsel %vm723, %v719, inf
  %725 = vmin.xlane.f32.xlu0 %v724
  %v726 = vpop.xlane.xlu0 %725
  %v727 = vcvt.f32.s32 %v726
  %v728 = vcvt.f32.s32 %v722
  %v729 = vshll.u32 %v728, 16
  %v730 = vadd.s32 %v729, %v727
  %v731 = vsel %vm620, %v687, 2147483647
  %v732 = vand.u32 %v731, 65535
  %v733 = vshra.s32 %v731, 16
  %v734 = vcvt.s32.f32 %v732
  %v735 = vcvt.s32.f32 %v733
  %736 = vmin.xlane.f32.xlu0 %v735
  %v737 = vpop.xlane.xlu0 %736
  %vm738 = vcmp.eq.f32.partialorder %v735, %v737
  %v739 = vsel %vm738, %v734, inf
  %740 = vmin.xlane.f32.xlu0 %v739
  %v741 = vpop.xlane.xlu0 %740
  %v742 = vcvt.f32.s32 %v741
  %v743 = vcvt.f32.s32 %v737
  %v744 = vshll.u32 %v743, 16
  %v745 = vadd.s32 %v744, %v742
  %v746 = vsel %vm620, %v688, 2147483647
  %v747 = vand.u32 %v746, 65535
  %v748 = vshra.s32 %v746, 16
  %v749 = vcvt.s32.f32 %v747
  %v750 = vcvt.s32.f32 %v748
  %751 = vmin.xlane.f32.xlu0 %v750
  %v752 = vpop.xlane.xlu0 %751
  %vm753 = vcmp.eq.f32.partialorder %v750, %v752
  %v754 = vsel %vm753, %v749, inf
  %755 = vmin.xlane.f32.xlu0 %v754
  %v756 = vpop.xlane.xlu0 %755
  %v757 = vcvt.f32.s32 %v756
  %v758 = vcvt.f32.s32 %v752
  %v759 = vshll.u32 %v758, 16
  %v760 = vadd.s32 %v759, %v757
  %v761 = vsel %vm620, %v689, 2147483647
  %v762 = vand.u32 %v761, 65535
  %v763 = vshra.s32 %v761, 16
  %v764 = vcvt.s32.f32 %v762
  %v765 = vcvt.s32.f32 %v763
  %766 = vmin.xlane.f32.xlu0 %v765
  %v767 = vpop.xlane.xlu0 %766
  %vm768 = vcmp.eq.f32.partialorder %v765, %v767
  %v769 = vsel %vm768, %v764, inf
  %770 = vmin.xlane.f32.xlu0 %v769
  %v771 = vpop.xlane.xlu0 %770
  %v772 = vcvt.f32.s32 %v771
  %v773 = vcvt.f32.s32 %v767
  %v774 = vshll.u32 %v773, 16
  %v775 = vadd.s32 %v774, %v772
  %v776 = vsel %vm620, %v690, 2147483647
  %v777 = vand.u32 %v776, 65535
  %v778 = vshra.s32 %v776, 16
  %v779 = vcvt.s32.f32 %v777
  %v780 = vcvt.s32.f32 %v778
  %781 = vmin.xlane.f32.xlu0 %v780
  %v782 = vpop.xlane.xlu0 %781
  %vm783 = vcmp.eq.f32.partialorder %v780, %v782
  %v784 = vsel %vm783, %v779, inf
  %785 = vmin.xlane.f32.xlu0 %v784
  %v786 = vpop.xlane.xlu0 %785
  %v787 = vcvt.f32.s32 %v786
  %v788 = vcvt.f32.s32 %v782
  %v789 = vshll.u32 %v788, 16
  %v790 = vadd.s32 %v789, %v787
  %v791 = vsel %vm620, %v691, 2147483647
  %v792 = vand.u32 %v791, 65535
  %v793 = vshra.s32 %v791, 16
  %v794 = vcvt.s32.f32 %v792
  %v795 = vcvt.s32.f32 %v793
  %796 = vmin.xlane.f32.xlu0 %v795
  %v797 = vpop.xlane.xlu0 %796
  %vm798 = vcmp.eq.f32.partialorder %v795, %v797
  %v799 = vsel %vm798, %v794, inf
  %800 = vmin.xlane.f32.xlu0 %v799
  %v801 = vpop.xlane.xlu0 %800
  %v802 = vcvt.f32.s32 %v801
  %v803 = vcvt.f32.s32 %v797
  %v804 = vshll.u32 %v803, 16
  %v805 = vadd.s32 %v804, %v802
  %v806 = vsel %vm620, %v692, 2147483647
  %v807 = vand.u32 %v806, 65535
  %v808 = vshra.s32 %v806, 16
  %v809 = vcvt.s32.f32 %v807
  %v810 = vcvt.s32.f32 %v808
  %811 = vmin.xlane.f32.xlu0 %v810
  %v812 = vpop.xlane.xlu0 %811
  %vm813 = vcmp.eq.f32.partialorder %v810, %v812
  %v814 = vsel %vm813, %v809, inf
  %815 = vmin.xlane.f32.xlu0 %v814
  %v816 = vpop.xlane.xlu0 %815
  %v817 = vcvt.f32.s32 %v816
  %v818 = vcvt.f32.s32 %v812
  %v819 = vshll.u32 %v818, 16
  %v820 = vadd.s32 %v819, %v817
  %v821 = vsel %vm620, %v693, 2147483647
  %v822 = vand.u32 %v821, 65535
  %v823 = vshra.s32 %v821, 16
  %v824 = vcvt.s32.f32 %v822
  %v825 = vcvt.s32.f32 %v823
  %826 = vmin.xlane.f32.xlu0 %v825
  %v827 = vpop.xlane.xlu0 %826
  %vm828 = vcmp.eq.f32.partialorder %v825, %v827
  %v829 = vsel %vm828, %v824, inf
  %830 = vmin.xlane.f32.xlu0 %v829
  %v831 = vpop.xlane.xlu0 %830
  %v832 = vcvt.f32.s32 %v831
  %v833 = vcvt.f32.s32 %v827
  %v834 = vshll.u32 %v833, 16
  %v835 = vadd.s32 %v834, %v832
  %v836 = vsel %vm620, %v694, 2147483647
  %v837 = vand.u32 %v836, 65535
  %v838 = vshra.s32 %v836, 16
  %v839 = vcvt.s32.f32 %v837
  %v840 = vcvt.s32.f32 %v838
  %841 = vmin.xlane.f32.xlu0 %v840
  %v842 = vpop.xlane.xlu0 %841
  %vm843 = vcmp.eq.f32.partialorder %v840, %v842
  %v844 = vsel %vm843, %v839, inf
  %845 = vmin.xlane.f32.xlu0 %v844
  %v846 = vpop.xlane.xlu0 %845
  %v847 = vcvt.f32.s32 %v846
  %v848 = vcvt.f32.s32 %v842
  %v849 = vshll.u32 %v848, 16
  %v850 = vadd.s32 %v849, %v847
  %v851 = vsel %vm620, %v695, 2147483647
  %v852 = vand.u32 %v851, 65535
  %v853 = vshra.s32 %v851, 16
  %v854 = vcvt.s32.f32 %v852
  %v855 = vcvt.s32.f32 %v853
  %856 = vmin.xlane.f32.xlu0 %v855
  %v857 = vpop.xlane.xlu0 %856
  %vm858 = vcmp.eq.f32.partialorder %v855, %v857
  %v859 = vsel %vm858, %v854, inf
  %860 = vmin.xlane.f32.xlu0 %v859
  %v861 = vpop.xlane.xlu0 %860
  %v862 = vcvt.f32.s32 %v861
  %v863 = vcvt.f32.s32 %v857
  %v864 = vshll.u32 %v863, 16
  %v865 = vadd.s32 %v864, %v862
  %v866 = vsel %vm620, %v696, 2147483647
  %v867 = vand.u32 %v866, 65535
  %v868 = vshra.s32 %v866, 16
  %v869 = vcvt.s32.f32 %v867
  %v870 = vcvt.s32.f32 %v868
  %871 = vmin.xlane.f32.xlu0 %v870
  %v872 = vpop.xlane.xlu0 %871
  %vm873 = vcmp.eq.f32.partialorder %v870, %v872
  %v874 = vsel %vm873, %v869, inf
  %875 = vmin.xlane.f32.xlu0 %v874
  %v876 = vpop.xlane.xlu0 %875
  %v877 = vcvt.f32.s32 %v876
  %v878 = vcvt.f32.s32 %v872
  %v879 = vshll.u32 %v878, 16
  %v880 = vadd.s32 %v879, %v877
  %v881 = vsel %vm620, %v697, 2147483647
  %v882 = vand.u32 %v881, 65535
  %v883 = vshra.s32 %v881, 16
  %v884 = vcvt.s32.f32 %v882
  %v885 = vcvt.s32.f32 %v883
  %886 = vmin.xlane.f32.xlu0 %v885
  %v887 = vpop.xlane.xlu0 %886
  %vm888 = vcmp.eq.f32.partialorder %v885, %v887
  %v889 = vsel %vm888, %v884, inf
  %890 = vmin.xlane.f32.xlu0 %v889
  %v891 = vpop.xlane.xlu0 %890
  %v892 = vcvt.f32.s32 %v891
  %v893 = vcvt.f32.s32 %v887
  %v894 = vshll.u32 %v893, 16
  %v895 = vadd.s32 %v894, %v892
  %v896 = vsel %vm620, %v698, 2147483647
  %v897 = vand.u32 %v896, 65535
  %v898 = vshra.s32 %v896, 16
  %v899 = vcvt.s32.f32 %v897
  %v900 = vcvt.s32.f32 %v898
  %901 = vmin.xlane.f32.xlu0 %v900
  %v902 = vpop.xlane.xlu0 %901
  %vm903 = vcmp.eq.f32.partialorder %v900, %v902
  %v904 = vsel %vm903, %v899, inf
  %905 = vmin.xlane.f32.xlu0 %v904
  %v906 = vpop.xlane.xlu0 %905
  %v907 = vcvt.f32.s32 %v906
  %v908 = vcvt.f32.s32 %v902
  %v909 = vshll.u32 %v908, 16
  %v910 = vadd.s32 %v909, %v907
  %v911 = vsel %vm620, %v699, 2147483647
  %v912 = vand.u32 %v911, 65535
  %v913 = vshra.s32 %v911, 16
  %v914 = vcvt.s32.f32 %v912
  %v915 = vcvt.s32.f32 %v913
  %916 = vmin.xlane.f32.xlu0 %v915
  %v917 = vpop.xlane.xlu0 %916
  %vm918 = vcmp.eq.f32.partialorder %v915, %v917
  %v919 = vsel %vm918, %v914, inf
  %920 = vmin.xlane.f32.xlu0 %v919
  %v921 = vpop.xlane.xlu0 %920
  %v922 = vcvt.f32.s32 %v921
  %v923 = vcvt.f32.s32 %v917
  %v924 = vshll.u32 %v923, 16
  %v925 = vadd.s32 %v924, %v922
  %v926 = vsel %vm620, %v700, 2147483647
  %v927 = vand.u32 %v926, 65535
  %v928 = vshra.s32 %v926, 16
  %v929 = vcvt.s32.f32 %v927
  %v930 = vcvt.s32.f32 %v928
  %931 = vmin.xlane.f32.xlu0 %v930
  %v932 = vpop.xlane.xlu0 %931
  %vm933 = vcmp.eq.f32.partialorder %v930, %v932
  %v934 = vsel %vm933, %v929, inf
  %935 = vmin.xlane.f32.xlu0 %v934
  %v936 = vpop.xlane.xlu0 %935
  %v937 = vcvt.f32.s32 %v936
  %v938 = vcvt.f32.s32 %v932
  %v939 = vshll.u32 %v938, 16
  %v940 = vadd.s32 %v939, %v937
  %vm941 = vcmp.eq.s32.totalorder %v619, %v715
  %vm942 = vcmp.eq.s32.totalorder %v619, %v730
  %vm943 = vcmp.eq.s32.totalorder %v619, %v745
  %vm944 = vcmp.eq.s32.totalorder %v619, %v760
  %vm945 = vcmp.eq.s32.totalorder %v619, %v775
  %vm946 = vcmp.eq.s32.totalorder %v619, %v790
  %vm947 = vcmp.eq.s32.totalorder %v619, %v805
  %vm948 = vcmp.eq.s32.totalorder %v619, %v820
  %vm949 = vcmp.eq.s32.totalorder %v619, %v835
  %vm950 = vcmp.eq.s32.totalorder %v619, %v850
  %vm951 = vcmp.eq.s32.totalorder %v619, %v865
  %vm952 = vcmp.eq.s32.totalorder %v619, %v880
  %vm953 = vcmp.eq.s32.totalorder %v619, %v895
  %vm954 = vcmp.eq.s32.totalorder %v619, %v910
  %vm955 = vcmp.eq.s32.totalorder %v619, %v925
  %vm956 = vcmp.eq.s32.totalorder %v619, %v940
  %v957 = vsel %vm941, %v623, 0.0
  %v958 = vsel %vm942, %v626, 0.0
  %v959 = vsel %vm943, %v629, 0.0
  %v960 = vsel %vm944, %v632, 0.0
  %v961 = vsel %vm945, %v635, 0.0
  %v962 = vsel %vm946, %v638, 0.0
  %v963 = vsel %vm947, %v641, 0.0
  %v964 = vsel %vm948, %v644, 0.0
  %v965 = vsel %vm949, %v647, 0.0
  %v966 = vsel %vm950, %v650, 0.0
  %v967 = vsel %vm951, %v653, 0.0
  %v968 = vsel %vm952, %v656, 0.0
  %v969 = vsel %vm953, %v659, 0.0
  %v970 = vsel %vm954, %v662, 0.0
  %v971 = vsel %vm955, %v665, 0.0
  %v972 = vsel %vm956, %v668, 0.0
  %v973 = vsel %vm941, -inf, %v602
  %v974 = vsel %vm942, -inf, %v603
  %v975 = vsel %vm943, -inf, %v604
  %v976 = vsel %vm944, -inf, %v605
  %v977 = vsel %vm945, -inf, %v606
  %v978 = vsel %vm946, -inf, %v607
  %v979 = vsel %vm947, -inf, %v608
  %v980 = vsel %vm948, -inf, %v609
  %v981 = vsel %vm949, -inf, %v610
  %v982 = vsel %vm950, -inf, %v611
  %v983 = vsel %vm951, -inf, %v612
  %v984 = vsel %vm952, -inf, %v613
  %v985 = vsel %vm953, -inf, %v614
  %v986 = vsel %vm954, -inf, %v615
  %v987 = vsel %vm955, -inf, %v616
  %v988 = vsel %vm956, -inf, %v617
  %v989 = vsel %vm620, %v973, -inf
  %990 = vmax.xlane.f32.xlu0 %v989
  %v991 = vpop.xlane.xlu0 %990
  %v992 = vsel %vm620, %v974, -inf
  %993 = vmax.xlane.f32.xlu0 %v992
  %v994 = vpop.xlane.xlu0 %993
  %v995 = vsel %vm620, %v975, -inf
  %996 = vmax.xlane.f32.xlu0 %v995
  %v997 = vpop.xlane.xlu0 %996
  %v998 = vsel %vm620, %v976, -inf
  %999 = vmax.xlane.f32.xlu0 %v998
  %v1000 = vpop.xlane.xlu0 %999
  %v1001 = vsel %vm620, %v977, -inf
  %1002 = vmax.xlane.f32.xlu0 %v1001
  %v1003 = vpop.xlane.xlu0 %1002
  %v1004 = vsel %vm620, %v978, -inf
  %1005 = vmax.xlane.f32.xlu0 %v1004
  %v1006 = vpop.xlane.xlu0 %1005
  %v1007 = vsel %vm620, %v979, -inf
  %1008 = vmax.xlane.f32.xlu0 %v1007
  %v1009 = vpop.xlane.xlu0 %1008
  %v1010 = vsel %vm620, %v980, -inf
  %1011 = vmax.xlane.f32.xlu0 %v1010
  %v1012 = vpop.xlane.xlu0 %1011
  %v1013 = vsel %vm620, %v981, -inf
  %1014 = vmax.xlane.f32.xlu0 %v1013
  %v1015 = vpop.xlane.xlu0 %1014
  %v1016 = vsel %vm620, %v982, -inf
  %1017 = vmax.xlane.f32.xlu0 %v1016
  %v1018 = vpop.xlane.xlu0 %1017
  %v1019 = vsel %vm620, %v983, -inf
  %1020 = vmax.xlane.f32.xlu0 %v1019
  %v1021 = vpop.xlane.xlu0 %1020
  %v1022 = vsel %vm620, %v984, -inf
  %1023 = vmax.xlane.f32.xlu0 %v1022
  %v1024 = vpop.xlane.xlu0 %1023
  %v1025 = vsel %vm620, %v985, -inf
  %1026 = vmax.xlane.f32.xlu0 %v1025
  %v1027 = vpop.xlane.xlu0 %1026
  %v1028 = vsel %vm620, %v986, -inf
  %1029 = vmax.xlane.f32.xlu0 %v1028
  %v1030 = vpop.xlane.xlu0 %1029
  %v1031 = vsel %vm620, %v987, -inf
  %1032 = vmax.xlane.f32.xlu0 %v1031
  %v1033 = vpop.xlane.xlu0 %1032
  %v1034 = vsel %vm620, %v988, -inf
  %1035 = vmax.xlane.f32.xlu0 %v1034
  %v1036 = vpop.xlane.xlu0 %1035
  %vm1037 = vcmp.eq.f32.partialorder %v973, %v991
  %vm1038 = vcmp.eq.f32.partialorder %v974, %v994
  %vm1039 = vcmp.eq.f32.partialorder %v975, %v997
  %vm1040 = vcmp.eq.f32.partialorder %v976, %v1000
  %vm1041 = vcmp.eq.f32.partialorder %v977, %v1003
  %vm1042 = vcmp.eq.f32.partialorder %v978, %v1006
  %vm1043 = vcmp.eq.f32.partialorder %v979, %v1009
  %vm1044 = vcmp.eq.f32.partialorder %v980, %v1012
  %vm1045 = vcmp.eq.f32.partialorder %v981, %v1015
  %vm1046 = vcmp.eq.f32.partialorder %v982, %v1018
  %vm1047 = vcmp.eq.f32.partialorder %v983, %v1021
  %vm1048 = vcmp.eq.f32.partialorder %v984, %v1024
  %vm1049 = vcmp.eq.f32.partialorder %v985, %v1027
  %vm1050 = vcmp.eq.f32.partialorder %v986, %v1030
  %vm1051 = vcmp.eq.f32.partialorder %v987, %v1033
  %vm1052 = vcmp.eq.f32.partialorder %v988, %v1036
  %v1053 = vsel %vm1037, %v619, 32
  %v1054 = vsel %vm1038, %v619, 32
  %v1055 = vsel %vm1039, %v619, 32
  %v1056 = vsel %vm1040, %v619, 32
  %v1057 = vsel %vm1041, %v619, 32
  %v1058 = vsel %vm1042, %v619, 32
  %v1059 = vsel %vm1043, %v619, 32
  %v1060 = vsel %vm1044, %v619, 32
  %v1061 = vsel %vm1045, %v619, 32
  %v1062 = vsel %vm1046, %v619, 32
  %v1063 = vsel %vm1047, %v619, 32
  %v1064 = vsel %vm1048, %v619, 32
  %v1065 = vsel %vm1049, %v619, 32
  %v1066 = vsel %vm1050, %v619, 32
  %v1067 = vsel %vm1051, %v619, 32
  %v1068 = vsel %vm1052, %v619, 32
  %v1069 = vsel %vm620, %v1053, 2147483647
  %v1070 = vand.u32 %v1069, 65535
  %v1071 = vshra.s32 %v1069, 16
  %v1072 = vcvt.s32.f32 %v1070
  %v1073 = vcvt.s32.f32 %v1071
  %1074 = vmin.xlane.f32.xlu0 %v1073
  %v1075 = vpop.xlane.xlu0 %1074
  %vm1076 = vcmp.eq.f32.partialorder %v1073, %v1075
  %v1077 = vsel %vm1076, %v1072, inf
  %1078 = vmin.xlane.f32.xlu0 %v1077
  %v1079 = vpop.xlane.xlu0 %1078
  %v1080 = vcvt.f32.s32 %v1079
  %v1081 = vcvt.f32.s32 %v1075
  %v1082 = vshll.u32 %v1081, 16
  %v1083 = vadd.s32 %v1082, %v1080
  %v1084 = vsel %vm620, %v1054, 2147483647
  %v1085 = vand.u32 %v1084, 65535
  %v1086 = vshra.s32 %v1084, 16
  %v1087 = vcvt.s32.f32 %v1085
  %v1088 = vcvt.s32.f32 %v1086
  %1089 = vmin.xlane.f32.xlu0 %v1088
  %v1090 = vpop.xlane.xlu0 %1089
  %vm1091 = vcmp.eq.f32.partialorder %v1088, %v1090
  %v1092 = vsel %vm1091, %v1087, inf
  %1093 = vmin.xlane.f32.xlu0 %v1092
  %v1094 = vpop.xlane.xlu0 %1093
  %v1095 = vcvt.f32.s32 %v1094
  %v1096 = vcvt.f32.s32 %v1090
  %v1097 = vshll.u32 %v1096, 16
  %v1098 = vadd.s32 %v1097, %v1095
  %v1099 = vsel %vm620, %v1055, 2147483647
  %v1100 = vand.u32 %v1099, 65535
  %v1101 = vshra.s32 %v1099, 16
  %v1102 = vcvt.s32.f32 %v1100
  %v1103 = vcvt.s32.f32 %v1101
  %1104 = vmin.xlane.f32.xlu0 %v1103
  %v1105 = vpop.xlane.xlu0 %1104
  %vm1106 = vcmp.eq.f32.partialorder %v1103, %v1105
  %v1107 = vsel %vm1106, %v1102, inf
  %1108 = vmin.xlane.f32.xlu0 %v1107
  %v1109 = vpop.xlane.xlu0 %1108
  %v1110 = vcvt.f32.s32 %v1109
  %v1111 = vcvt.f32.s32 %v1105
  %v1112 = vshll.u32 %v1111, 16
  %v1113 = vadd.s32 %v1112, %v1110
  %v1114 = vsel %vm620, %v1056, 2147483647
  %v1115 = vand.u32 %v1114, 65535
  %v1116 = vshra.s32 %v1114, 16
  %v1117 = vcvt.s32.f32 %v1115
  %v1118 = vcvt.s32.f32 %v1116
  %1119 = vmin.xlane.f32.xlu0 %v1118
  %v1120 = vpop.xlane.xlu0 %1119
  %vm1121 = vcmp.eq.f32.partialorder %v1118, %v1120
  %v1122 = vsel %vm1121, %v1117, inf
  %1123 = vmin.xlane.f32.xlu0 %v1122
  %v1124 = vpop.xlane.xlu0 %1123
  %v1125 = vcvt.f32.s32 %v1124
  %v1126 = vcvt.f32.s32 %v1120
  %v1127 = vshll.u32 %v1126, 16
  %v1128 = vadd.s32 %v1127, %v1125
  %v1129 = vsel %vm620, %v1057, 2147483647
  %v1130 = vand.u32 %v1129, 65535
  %v1131 = vshra.s32 %v1129, 16
  %v1132 = vcvt.s32.f32 %v1130
  %v1133 = vcvt.s32.f32 %v1131
  %1134 = vmin.xlane.f32.xlu0 %v1133
  %v1135 = vpop.xlane.xlu0 %1134
  %vm1136 = vcmp.eq.f32.partialorder %v1133, %v1135
  %v1137 = vsel %vm1136, %v1132, inf
  %1138 = vmin.xlane.f32.xlu0 %v1137
  %v1139 = vpop.xlane.xlu0 %1138
  %v1140 = vcvt.f32.s32 %v1139
  %v1141 = vcvt.f32.s32 %v1135
  %v1142 = vshll.u32 %v1141, 16
  %v1143 = vadd.s32 %v1142, %v1140
  %v1144 = vsel %vm620, %v1058, 2147483647
  %v1145 = vand.u32 %v1144, 65535
  %v1146 = vshra.s32 %v1144, 16
  %v1147 = vcvt.s32.f32 %v1145
  %v1148 = vcvt.s32.f32 %v1146
  %1149 = vmin.xlane.f32.xlu0 %v1148
  %v1150 = vpop.xlane.xlu0 %1149
  %vm1151 = vcmp.eq.f32.partialorder %v1148, %v1150
  %v1152 = vsel %vm1151, %v1147, inf
  %1153 = vmin.xlane.f32.xlu0 %v1152
  %v1154 = vpop.xlane.xlu0 %1153
  %v1155 = vcvt.f32.s32 %v1154
  %v1156 = vcvt.f32.s32 %v1150
  %v1157 = vshll.u32 %v1156, 16
  %v1158 = vadd.s32 %v1157, %v1155
  %v1159 = vsel %vm620, %v1059, 2147483647
  %v1160 = vand.u32 %v1159, 65535
  %v1161 = vshra.s32 %v1159, 16
  %v1162 = vcvt.s32.f32 %v1160
  %v1163 = vcvt.s32.f32 %v1161
  %1164 = vmin.xlane.f32.xlu0 %v1163
  %v1165 = vpop.xlane.xlu0 %1164
  %vm1166 = vcmp.eq.f32.partialorder %v1163, %v1165
  %v1167 = vsel %vm1166, %v1162, inf
  %1168 = vmin.xlane.f32.xlu0 %v1167
  %v1169 = vpop.xlane.xlu0 %1168
  %v1170 = vcvt.f32.s32 %v1169
  %v1171 = vcvt.f32.s32 %v1165
  %v1172 = vshll.u32 %v1171, 16
  %v1173 = vadd.s32 %v1172, %v1170
  %v1174 = vsel %vm620, %v1060, 2147483647
  %v1175 = vand.u32 %v1174, 65535
  %v1176 = vshra.s32 %v1174, 16
  %v1177 = vcvt.s32.f32 %v1175
  %v1178 = vcvt.s32.f32 %v1176
  %1179 = vmin.xlane.f32.xlu0 %v1178
  %v1180 = vpop.xlane.xlu0 %1179
  %vm1181 = vcmp.eq.f32.partialorder %v1178, %v1180
  %v1182 = vsel %vm1181, %v1177, inf
  %1183 = vmin.xlane.f32.xlu0 %v1182
  %v1184 = vpop.xlane.xlu0 %1183
  %v1185 = vcvt.f32.s32 %v1184
  %v1186 = vcvt.f32.s32 %v1180
  %v1187 = vshll.u32 %v1186, 16
  %v1188 = vadd.s32 %v1187, %v1185
  %v1189 = vsel %vm620, %v1061, 2147483647
  %v1190 = vand.u32 %v1189, 65535
  %v1191 = vshra.s32 %v1189, 16
  %v1192 = vcvt.s32.f32 %v1190
  %v1193 = vcvt.s32.f32 %v1191
  %1194 = vmin.xlane.f32.xlu0 %v1193
  %v1195 = vpop.xlane.xlu0 %1194
  %vm1196 = vcmp.eq.f32.partialorder %v1193, %v1195
  %v1197 = vsel %vm1196, %v1192, inf
  %1198 = vmin.xlane.f32.xlu0 %v1197
  %v1199 = vpop.xlane.xlu0 %1198
  %v1200 = vcvt.f32.s32 %v1199
  %v1201 = vcvt.f32.s32 %v1195
  %v1202 = vshll.u32 %v1201, 16
  %v1203 = vadd.s32 %v1202, %v1200
  %v1204 = vsel %vm620, %v1062, 2147483647
  %v1205 = vand.u32 %v1204, 65535
  %v1206 = vshra.s32 %v1204, 16
  %v1207 = vcvt.s32.f32 %v1205
  %v1208 = vcvt.s32.f32 %v1206
  %1209 = vmin.xlane.f32.xlu0 %v1208
  %v1210 = vpop.xlane.xlu0 %1209
  %vm1211 = vcmp.eq.f32.partialorder %v1208, %v1210
  %v1212 = vsel %vm1211, %v1207, inf
  %1213 = vmin.xlane.f32.xlu0 %v1212
  %v1214 = vpop.xlane.xlu0 %1213
  %v1215 = vcvt.f32.s32 %v1214
  %v1216 = vcvt.f32.s32 %v1210
  %v1217 = vshll.u32 %v1216, 16
  %v1218 = vadd.s32 %v1217, %v1215
  %v1219 = vsel %vm620, %v1063, 2147483647
  %v1220 = vand.u32 %v1219, 65535
  %v1221 = vshra.s32 %v1219, 16
  %v1222 = vcvt.s32.f32 %v1220
  %v1223 = vcvt.s32.f32 %v1221
  %1224 = vmin.xlane.f32.xlu0 %v1223
  %v1225 = vpop.xlane.xlu0 %1224
  %vm1226 = vcmp.eq.f32.partialorder %v1223, %v1225
  %v1227 = vsel %vm1226, %v1222, inf
  %1228 = vmin.xlane.f32.xlu0 %v1227
  %v1229 = vpop.xlane.xlu0 %1228
  %v1230 = vcvt.f32.s32 %v1229
  %v1231 = vcvt.f32.s32 %v1225
  %v1232 = vshll.u32 %v1231, 16
  %v1233 = vadd.s32 %v1232, %v1230
  %v1234 = vsel %vm620, %v1064, 2147483647
  %v1235 = vand.u32 %v1234, 65535
  %v1236 = vshra.s32 %v1234, 16
  %v1237 = vcvt.s32.f32 %v1235
  %v1238 = vcvt.s32.f32 %v1236
  %1239 = vmin.xlane.f32.xlu0 %v1238
  %v1240 = vpop.xlane.xlu0 %1239
  %vm1241 = vcmp.eq.f32.partialorder %v1238, %v1240
  %v1242 = vsel %vm1241, %v1237, inf
  %1243 = vmin.xlane.f32.xlu0 %v1242
  %v1244 = vpop.xlane.xlu0 %1243
  %v1245 = vcvt.f32.s32 %v1244
  %v1246 = vcvt.f32.s32 %v1240
  %v1247 = vshll.u32 %v1246, 16
  %v1248 = vadd.s32 %v1247, %v1245
  %v1249 = vsel %vm620, %v1065, 2147483647
  %v1250 = vand.u32 %v1249, 65535
  %v1251 = vshra.s32 %v1249, 16
  %v1252 = vcvt.s32.f32 %v1250
  %v1253 = vcvt.s32.f32 %v1251
  %1254 = vmin.xlane.f32.xlu0 %v1253
  %v1255 = vpop.xlane.xlu0 %1254
  %vm1256 = vcmp.eq.f32.partialorder %v1253, %v1255
  %v1257 = vsel %vm1256, %v1252, inf
  %1258 = vmin.xlane.f32.xlu0 %v1257
  %v1259 = vpop.xlane.xlu0 %1258
  %v1260 = vcvt.f32.s32 %v1259
  %v1261 = vcvt.f32.s32 %v1255
  %v1262 = vshll.u32 %v1261, 16
  %v1263 = vadd.s32 %v1262, %v1260
  %v1264 = vsel %vm620, %v1066, 2147483647
  %v1265 = vand.u32 %v1264, 65535
  %v1266 = vshra.s32 %v1264, 16
  %v1267 = vcvt.s32.f32 %v1265
  %v1268 = vcvt.s32.f32 %v1266
  %1269 = vmin.xlane.f32.xlu0 %v1268
  %v1270 = vpop.xlane.xlu0 %1269
  %vm1271 = vcmp.eq.f32.partialorder %v1268, %v1270
  %v1272 = vsel %vm1271, %v1267, inf
  %1273 = vmin.xlane.f32.xlu0 %v1272
  %v1274 = vpop.xlane.xlu0 %1273
  %v1275 = vcvt.f32.s32 %v1274
  %v1276 = vcvt.f32.s32 %v1270
  %v1277 = vshll.u32 %v1276, 16
  %v1278 = vadd.s32 %v1277, %v1275
  %v1279 = vsel %vm620, %v1067, 2147483647
  %v1280 = vand.u32 %v1279, 65535
  %v1281 = vshra.s32 %v1279, 16
  %v1282 = vcvt.s32.f32 %v1280
  %v1283 = vcvt.s32.f32 %v1281
  %1284 = vmin.xlane.f32.xlu0 %v1283
  %v1285 = vpop.xlane.xlu0 %1284
  %vm1286 = vcmp.eq.f32.partialorder %v1283, %v1285
  %v1287 = vsel %vm1286, %v1282, inf
  %1288 = vmin.xlane.f32.xlu0 %v1287
  %v1289 = vpop.xlane.xlu0 %1288
  %v1290 = vcvt.f32.s32 %v1289
  %v1291 = vcvt.f32.s32 %v1285
  %v1292 = vshll.u32 %v1291, 16
  %v1293 = vadd.s32 %v1292, %v1290
  %v1294 = vsel %vm620, %v1068, 2147483647
  %v1295 = vand.u32 %v1294, 65535
  %v1296 = vshra.s32 %v1294, 16
  %v1297 = vcvt.s32.f32 %v1295
  %v1298 = vcvt.s32.f32 %v1296
  %1299 = vmin.xlane.f32.xlu0 %v1298
  %v1300 = vpop.xlane.xlu0 %1299
  %vm1301 = vcmp.eq.f32.partialorder %v1298, %v1300
  %v1302 = vsel %vm1301, %v1297, inf
  %1303 = vmin.xlane.f32.xlu0 %v1302
  %v1304 = vpop.xlane.xlu0 %1303
  %v1305 = vcvt.f32.s32 %v1304
  %v1306 = vcvt.f32.s32 %v1300
  %v1307 = vshll.u32 %v1306, 16
  %v1308 = vadd.s32 %v1307, %v1305
  %vm1309 = vcmp.eq.s32.totalorder %v619, %v1083
  %vm1310 = vcmp.eq.s32.totalorder %v619, %v1098
  %vm1311 = vcmp.eq.s32.totalorder %v619, %v1113
  %vm1312 = vcmp.eq.s32.totalorder %v619, %v1128
  %vm1313 = vcmp.eq.s32.totalorder %v619, %v1143
  %vm1314 = vcmp.eq.s32.totalorder %v619, %v1158
  %vm1315 = vcmp.eq.s32.totalorder %v619, %v1173
  %vm1316 = vcmp.eq.s32.totalorder %v619, %v1188
  %vm1317 = vcmp.eq.s32.totalorder %v619, %v1203
  %vm1318 = vcmp.eq.s32.totalorder %v619, %v1218
  %vm1319 = vcmp.eq.s32.totalorder %v619, %v1233
  %vm1320 = vcmp.eq.s32.totalorder %v619, %v1248
  %vm1321 = vcmp.eq.s32.totalorder %v619, %v1263
  %vm1322 = vcmp.eq.s32.totalorder %v619, %v1278
  %vm1323 = vcmp.eq.s32.totalorder %v619, %v1293
  %vm1324 = vcmp.eq.s32.totalorder %v619, %v1308
  %v1325 = vsel %vm1309, %v991, %v957
  %v1326 = vsel %vm1310, %v994, %v958
  %v1327 = vsel %vm1311, %v997, %v959
  %v1328 = vsel %vm1312, %v1000, %v960
  %v1329 = vsel %vm1313, %v1003, %v961
  %v1330 = vsel %vm1314, %v1006, %v962
  %v1331 = vsel %vm1315, %v1009, %v963
  %v1332 = vsel %vm1316, %v1012, %v964
  %v1333 = vsel %vm1317, %v1015, %v965
  %v1334 = vsel %vm1318, %v1018, %v966
  %v1335 = vsel %vm1319, %v1021, %v967
  %v1336 = vsel %vm1320, %v1024, %v968
  %v1337 = vsel %vm1321, %v1027, %v969
  %v1338 = vsel %vm1322, %v1030, %v970
  %v1339 = vsel %vm1323, %v1033, %v971
  %v1340 = vsel %vm1324, %v1036, %v972
  %v1341 = vsel %vm1309, -inf, %v973
  %v1342 = vsel %vm1310, -inf, %v974
  %v1343 = vsel %vm1311, -inf, %v975
  %v1344 = vsel %vm1312, -inf, %v976
  %v1345 = vsel %vm1313, -inf, %v977
  %v1346 = vsel %vm1314, -inf, %v978
  %v1347 = vsel %vm1315, -inf, %v979
  %v1348 = vsel %vm1316, -inf, %v980
  %v1349 = vsel %vm1317, -inf, %v981
  %v1350 = vsel %vm1318, -inf, %v982
  %v1351 = vsel %vm1319, -inf, %v983
  %v1352 = vsel %vm1320, -inf, %v984
  %v1353 = vsel %vm1321, -inf, %v985
  %v1354 = vsel %vm1322, -inf, %v986
  %v1355 = vsel %vm1323, -inf, %v987
  %v1356 = vsel %vm1324, -inf, %v988
  %v1357 = vsel %vm620, %v1341, -inf
  %1358 = vmax.xlane.f32.xlu0 %v1357
  %v1359 = vpop.xlane.xlu0 %1358
  %v1360 = vsel %vm620, %v1342, -inf
  %1361 = vmax.xlane.f32.xlu0 %v1360
  %v1362 = vpop.xlane.xlu0 %1361
  %v1363 = vsel %vm620, %v1343, -inf
  %1364 = vmax.xlane.f32.xlu0 %v1363
  %v1365 = vpop.xlane.xlu0 %1364
  %v1366 = vsel %vm620, %v1344, -inf
  %1367 = vmax.xlane.f32.xlu0 %v1366
  %v1368 = vpop.xlane.xlu0 %1367
  %v1369 = vsel %vm620, %v1345, -inf
  %1370 = vmax.xlane.f32.xlu0 %v1369
  %v1371 = vpop.xlane.xlu0 %1370
  %v1372 = vsel %vm620, %v1346, -inf
  %1373 = vmax.xlane.f32.xlu0 %v1372
  %v1374 = vpop.xlane.xlu0 %1373
  %v1375 = vsel %vm620, %v1347, -inf
  %1376 = vmax.xlane.f32.xlu0 %v1375
  %v1377 = vpop.xlane.xlu0 %1376
  %v1378 = vsel %vm620, %v1348, -inf
  %1379 = vmax.xlane.f32.xlu0 %v1378
  %v1380 = vpop.xlane.xlu0 %1379
  %v1381 = vsel %vm620, %v1349, -inf
  %1382 = vmax.xlane.f32.xlu0 %v1381
  %v1383 = vpop.xlane.xlu0 %1382
  %v1384 = vsel %vm620, %v1350, -inf
  %1385 = vmax.xlane.f32.xlu0 %v1384
  %v1386 = vpop.xlane.xlu0 %1385
  %v1387 = vsel %vm620, %v1351, -inf
  %1388 = vmax.xlane.f32.xlu0 %v1387
  %v1389 = vpop.xlane.xlu0 %1388
  %v1390 = vsel %vm620, %v1352, -inf
  %1391 = vmax.xlane.f32.xlu0 %v1390
  %v1392 = vpop.xlane.xlu0 %1391
  %v1393 = vsel %vm620, %v1353, -inf
  %1394 = vmax.xlane.f32.xlu0 %v1393
  %v1395 = vpop.xlane.xlu0 %1394
  %v1396 = vsel %vm620, %v1354, -inf
  %1397 = vmax.xlane.f32.xlu0 %v1396
  %v1398 = vpop.xlane.xlu0 %1397
  %v1399 = vsel %vm620, %v1355, -inf
  %1400 = vmax.xlane.f32.xlu0 %v1399
  %v1401 = vpop.xlane.xlu0 %1400
  %v1402 = vsel %vm620, %v1356, -inf
  %1403 = vmax.xlane.f32.xlu0 %v1402
  %v1404 = vpop.xlane.xlu0 %1403
  %vm1405 = vcmp.eq.f32.partialorder %v1341, %v1359
  %vm1406 = vcmp.eq.f32.partialorder %v1342, %v1362
  %vm1407 = vcmp.eq.f32.partialorder %v1343, %v1365
  %vm1408 = vcmp.eq.f32.partialorder %v1344, %v1368
  %vm1409 = vcmp.eq.f32.partialorder %v1345, %v1371
  %vm1410 = vcmp.eq.f32.partialorder %v1346, %v1374
  %vm1411 = vcmp.eq.f32.partialorder %v1347, %v1377
  %vm1412 = vcmp.eq.f32.partialorder %v1348, %v1380
  %vm1413 = vcmp.eq.f32.partialorder %v1349, %v1383
  %vm1414 = vcmp.eq.f32.partialorder %v1350, %v1386
  %vm1415 = vcmp.eq.f32.partialorder %v1351, %v1389
  %vm1416 = vcmp.eq.f32.partialorder %v1352, %v1392
  %vm1417 = vcmp.eq.f32.partialorder %v1353, %v1395
  %vm1418 = vcmp.eq.f32.partialorder %v1354, %v1398
  %vm1419 = vcmp.eq.f32.partialorder %v1355, %v1401
  %vm1420 = vcmp.eq.f32.partialorder %v1356, %v1404
  %v1421 = vsel %vm1405, %v619, 32
  %v1422 = vsel %vm1406, %v619, 32
  %v1423 = vsel %vm1407, %v619, 32
  %v1424 = vsel %vm1408, %v619, 32
  %v1425 = vsel %vm1409, %v619, 32
  %v1426 = vsel %vm1410, %v619, 32
  %v1427 = vsel %vm1411, %v619, 32
  %v1428 = vsel %vm1412, %v619, 32
  %v1429 = vsel %vm1413, %v619, 32
  %v1430 = vsel %vm1414, %v619, 32
  %v1431 = vsel %vm1415, %v619, 32
  %v1432 = vsel %vm1416, %v619, 32
  %v1433 = vsel %vm1417, %v619, 32
  %v1434 = vsel %vm1418, %v619, 32
  %v1435 = vsel %vm1419, %v619, 32
  %v1436 = vsel %vm1420, %v619, 32
  %v1437 = vsel %vm620, %v1421, 2147483647
  %v1438 = vand.u32 %v1437, 65535
  %v1439 = vshra.s32 %v1437, 16
  %v1440 = vcvt.s32.f32 %v1438
  %v1441 = vcvt.s32.f32 %v1439
  %1442 = vmin.xlane.f32.xlu0 %v1441
  %v1443 = vpop.xlane.xlu0 %1442
  %vm1444 = vcmp.eq.f32.partialorder %v1441, %v1443
  %v1445 = vsel %vm1444, %v1440, inf
  %1446 = vmin.xlane.f32.xlu0 %v1445
  %v1447 = vpop.xlane.xlu0 %1446
  %v1448 = vcvt.f32.s32 %v1447
  %v1449 = vcvt.f32.s32 %v1443
  %v1450 = vshll.u32 %v1449, 16
  %v1451 = vadd.s32 %v1450, %v1448
  %v1452 = vsel %vm620, %v1422, 2147483647
  %v1453 = vand.u32 %v1452, 65535
  %v1454 = vshra.s32 %v1452, 16
  %v1455 = vcvt.s32.f32 %v1453
  %v1456 = vcvt.s32.f32 %v1454
  %1457 = vmin.xlane.f32.xlu0 %v1456
  %v1458 = vpop.xlane.xlu0 %1457
  %vm1459 = vcmp.eq.f32.partialorder %v1456, %v1458
  %v1460 = vsel %vm1459, %v1455, inf
  %1461 = vmin.xlane.f32.xlu0 %v1460
  %v1462 = vpop.xlane.xlu0 %1461
  %v1463 = vcvt.f32.s32 %v1462
  %v1464 = vcvt.f32.s32 %v1458
  %v1465 = vshll.u32 %v1464, 16
  %v1466 = vadd.s32 %v1465, %v1463
  %v1467 = vsel %vm620, %v1423, 2147483647
  %v1468 = vand.u32 %v1467, 65535
  %v1469 = vshra.s32 %v1467, 16
  %v1470 = vcvt.s32.f32 %v1468
  %v1471 = vcvt.s32.f32 %v1469
  %1472 = vmin.xlane.f32.xlu0 %v1471
  %v1473 = vpop.xlane.xlu0 %1472
  %vm1474 = vcmp.eq.f32.partialorder %v1471, %v1473
  %v1475 = vsel %vm1474, %v1470, inf
  %1476 = vmin.xlane.f32.xlu0 %v1475
  %v1477 = vpop.xlane.xlu0 %1476
  %v1478 = vcvt.f32.s32 %v1477
  %v1479 = vcvt.f32.s32 %v1473
  %v1480 = vshll.u32 %v1479, 16
  %v1481 = vadd.s32 %v1480, %v1478
  %v1482 = vsel %vm620, %v1424, 2147483647
  %v1483 = vand.u32 %v1482, 65535
  %v1484 = vshra.s32 %v1482, 16
  %v1485 = vcvt.s32.f32 %v1483
  %v1486 = vcvt.s32.f32 %v1484
  %1487 = vmin.xlane.f32.xlu0 %v1486
  %v1488 = vpop.xlane.xlu0 %1487
  %vm1489 = vcmp.eq.f32.partialorder %v1486, %v1488
  %v1490 = vsel %vm1489, %v1485, inf
  %1491 = vmin.xlane.f32.xlu0 %v1490
  %v1492 = vpop.xlane.xlu0 %1491
  %v1493 = vcvt.f32.s32 %v1492
  %v1494 = vcvt.f32.s32 %v1488
  %v1495 = vshll.u32 %v1494, 16
  %v1496 = vadd.s32 %v1495, %v1493
  %v1497 = vsel %vm620, %v1425, 2147483647
  %v1498 = vand.u32 %v1497, 65535
  %v1499 = vshra.s32 %v1497, 16
  %v1500 = vcvt.s32.f32 %v1498
  %v1501 = vcvt.s32.f32 %v1499
  %1502 = vmin.xlane.f32.xlu0 %v1501
  %v1503 = vpop.xlane.xlu0 %1502
  %vm1504 = vcmp.eq.f32.partialorder %v1501, %v1503
  %v1505 = vsel %vm1504, %v1500, inf
  %1506 = vmin.xlane.f32.xlu0 %v1505
  %v1507 = vpop.xlane.xlu0 %1506
  %v1508 = vcvt.f32.s32 %v1507
  %v1509 = vcvt.f32.s32 %v1503
  %v1510 = vshll.u32 %v1509, 16
  %v1511 = vadd.s32 %v1510, %v1508
  %v1512 = vsel %vm620, %v1426, 2147483647
  %v1513 = vand.u32 %v1512, 65535
  %v1514 = vshra.s32 %v1512, 16
  %v1515 = vcvt.s32.f32 %v1513
  %v1516 = vcvt.s32.f32 %v1514
  %1517 = vmin.xlane.f32.xlu0 %v1516
  %v1518 = vpop.xlane.xlu0 %1517
  %vm1519 = vcmp.eq.f32.partialorder %v1516, %v1518
  %v1520 = vsel %vm1519, %v1515, inf
  %1521 = vmin.xlane.f32.xlu0 %v1520
  %v1522 = vpop.xlane.xlu0 %1521
  %v1523 = vcvt.f32.s32 %v1522
  %v1524 = vcvt.f32.s32 %v1518
  %v1525 = vshll.u32 %v1524, 16
  %v1526 = vadd.s32 %v1525, %v1523
  %v1527 = vsel %vm620, %v1427, 2147483647
  %v1528 = vand.u32 %v1527, 65535
  %v1529 = vshra.s32 %v1527, 16
  %v1530 = vcvt.s32.f32 %v1528
  %v1531 = vcvt.s32.f32 %v1529
  %1532 = vmin.xlane.f32.xlu0 %v1531
  %v1533 = vpop.xlane.xlu0 %1532
  %vm1534 = vcmp.eq.f32.partialorder %v1531, %v1533
  %v1535 = vsel %vm1534, %v1530, inf
  %1536 = vmin.xlane.f32.xlu0 %v1535
  %v1537 = vpop.xlane.xlu0 %1536
  %v1538 = vcvt.f32.s32 %v1537
  %v1539 = vcvt.f32.s32 %v1533
  %v1540 = vshll.u32 %v1539, 16
  %v1541 = vadd.s32 %v1540, %v1538
  %v1542 = vsel %vm620, %v1428, 2147483647
  %v1543 = vand.u32 %v1542, 65535
  %v1544 = vshra.s32 %v1542, 16
  %v1545 = vcvt.s32.f32 %v1543
  %v1546 = vcvt.s32.f32 %v1544
  %1547 = vmin.xlane.f32.xlu0 %v1546
  %v1548 = vpop.xlane.xlu0 %1547
  %vm1549 = vcmp.eq.f32.partialorder %v1546, %v1548
  %v1550 = vsel %vm1549, %v1545, inf
  %1551 = vmin.xlane.f32.xlu0 %v1550
  %v1552 = vpop.xlane.xlu0 %1551
  %v1553 = vcvt.f32.s32 %v1552
  %v1554 = vcvt.f32.s32 %v1548
  %v1555 = vshll.u32 %v1554, 16
  %v1556 = vadd.s32 %v1555, %v1553
  %v1557 = vsel %vm620, %v1429, 2147483647
  %v1558 = vand.u32 %v1557, 65535
  %v1559 = vshra.s32 %v1557, 16
  %v1560 = vcvt.s32.f32 %v1558
  %v1561 = vcvt.s32.f32 %v1559
  %1562 = vmin.xlane.f32.xlu0 %v1561
  %v1563 = vpop.xlane.xlu0 %1562
  %vm1564 = vcmp.eq.f32.partialorder %v1561, %v1563
  %v1565 = vsel %vm1564, %v1560, inf
  %1566 = vmin.xlane.f32.xlu0 %v1565
  %v1567 = vpop.xlane.xlu0 %1566
  %v1568 = vcvt.f32.s32 %v1567
  %v1569 = vcvt.f32.s32 %v1563
  %v1570 = vshll.u32 %v1569, 16
  %v1571 = vadd.s32 %v1570, %v1568
  %v1572 = vsel %vm620, %v1430, 2147483647
  %v1573 = vand.u32 %v1572, 65535
  %v1574 = vshra.s32 %v1572, 16
  %v1575 = vcvt.s32.f32 %v1573
  %v1576 = vcvt.s32.f32 %v1574
  %1577 = vmin.xlane.f32.xlu0 %v1576
  %v1578 = vpop.xlane.xlu0 %1577
  %vm1579 = vcmp.eq.f32.partialorder %v1576, %v1578
  %v1580 = vsel %vm1579, %v1575, inf
  %1581 = vmin.xlane.f32.xlu0 %v1580
  %v1582 = vpop.xlane.xlu0 %1581
  %v1583 = vcvt.f32.s32 %v1582
  %v1584 = vcvt.f32.s32 %v1578
  %v1585 = vshll.u32 %v1584, 16
  %v1586 = vadd.s32 %v1585, %v1583
  %v1587 = vsel %vm620, %v1431, 2147483647
  %v1588 = vand.u32 %v1587, 65535
  %v1589 = vshra.s32 %v1587, 16
  %v1590 = vcvt.s32.f32 %v1588
  %v1591 = vcvt.s32.f32 %v1589
  %1592 = vmin.xlane.f32.xlu0 %v1591
  %v1593 = vpop.xlane.xlu0 %1592
  %vm1594 = vcmp.eq.f32.partialorder %v1591, %v1593
  %v1595 = vsel %vm1594, %v1590, inf
  %1596 = vmin.xlane.f32.xlu0 %v1595
  %v1597 = vpop.xlane.xlu0 %1596
  %v1598 = vcvt.f32.s32 %v1597
  %v1599 = vcvt.f32.s32 %v1593
  %v1600 = vshll.u32 %v1599, 16
  %v1601 = vadd.s32 %v1600, %v1598
  %v1602 = vsel %vm620, %v1432, 2147483647
  %v1603 = vand.u32 %v1602, 65535
  %v1604 = vshra.s32 %v1602, 16
  %v1605 = vcvt.s32.f32 %v1603
  %v1606 = vcvt.s32.f32 %v1604
  %1607 = vmin.xlane.f32.xlu0 %v1606
  %v1608 = vpop.xlane.xlu0 %1607
  %vm1609 = vcmp.eq.f32.partialorder %v1606, %v1608
  %v1610 = vsel %vm1609, %v1605, inf
  %1611 = vmin.xlane.f32.xlu0 %v1610
  %v1612 = vpop.xlane.xlu0 %1611
  %v1613 = vcvt.f32.s32 %v1612
  %v1614 = vcvt.f32.s32 %v1608
  %v1615 = vshll.u32 %v1614, 16
  %v1616 = vadd.s32 %v1615, %v1613
  %v1617 = vsel %vm620, %v1433, 2147483647
  %v1618 = vand.u32 %v1617, 65535
  %v1619 = vshra.s32 %v1617, 16
  %v1620 = vcvt.s32.f32 %v1618
  %v1621 = vcvt.s32.f32 %v1619
  %1622 = vmin.xlane.f32.xlu0 %v1621
  %v1623 = vpop.xlane.xlu0 %1622
  %vm1624 = vcmp.eq.f32.partialorder %v1621, %v1623
  %v1625 = vsel %vm1624, %v1620, inf
  %1626 = vmin.xlane.f32.xlu0 %v1625
  %v1627 = vpop.xlane.xlu0 %1626
  %v1628 = vcvt.f32.s32 %v1627
  %v1629 = vcvt.f32.s32 %v1623
  %v1630 = vshll.u32 %v1629, 16
  %v1631 = vadd.s32 %v1630, %v1628
  %v1632 = vsel %vm620, %v1434, 2147483647
  %v1633 = vand.u32 %v1632, 65535
  %v1634 = vshra.s32 %v1632, 16
  %v1635 = vcvt.s32.f32 %v1633
  %v1636 = vcvt.s32.f32 %v1634
  %1637 = vmin.xlane.f32.xlu0 %v1636
  %v1638 = vpop.xlane.xlu0 %1637
  %vm1639 = vcmp.eq.f32.partialorder %v1636, %v1638
  %v1640 = vsel %vm1639, %v1635, inf
  %1641 = vmin.xlane.f32.xlu0 %v1640
  %v1642 = vpop.xlane.xlu0 %1641
  %v1643 = vcvt.f32.s32 %v1642
  %v1644 = vcvt.f32.s32 %v1638
  %v1645 = vshll.u32 %v1644, 16
  %v1646 = vadd.s32 %v1645, %v1643
  %v1647 = vsel %vm620, %v1435, 2147483647
  %v1648 = vand.u32 %v1647, 65535
  %v1649 = vshra.s32 %v1647, 16
  %v1650 = vcvt.s32.f32 %v1648
  %v1651 = vcvt.s32.f32 %v1649
  %1652 = vmin.xlane.f32.xlu0 %v1651
  %v1653 = vpop.xlane.xlu0 %1652
  %vm1654 = vcmp.eq.f32.partialorder %v1651, %v1653
  %v1655 = vsel %vm1654, %v1650, inf
  %1656 = vmin.xlane.f32.xlu0 %v1655
  %v1657 = vpop.xlane.xlu0 %1656
  %v1658 = vcvt.f32.s32 %v1657
  %v1659 = vcvt.f32.s32 %v1653
  %v1660 = vshll.u32 %v1659, 16
  %v1661 = vadd.s32 %v1660, %v1658
  %v1662 = vsel %vm620, %v1436, 2147483647
  %v1663 = vand.u32 %v1662, 65535
  %v1664 = vshra.s32 %v1662, 16
  %v1665 = vcvt.s32.f32 %v1663
  %v1666 = vcvt.s32.f32 %v1664
  %1667 = vmin.xlane.f32.xlu0 %v1666
  %v1668 = vpop.xlane.xlu0 %1667
  %vm1669 = vcmp.eq.f32.partialorder %v1666, %v1668
  %v1670 = vsel %vm1669, %v1665, inf
  %1671 = vmin.xlane.f32.xlu0 %v1670
  %v1672 = vpop.xlane.xlu0 %1671
  %v1673 = vcvt.f32.s32 %v1672
  %v1674 = vcvt.f32.s32 %v1668
  %v1675 = vshll.u32 %v1674, 16
  %v1676 = vadd.s32 %v1675, %v1673
  %vm1677 = vcmp.eq.s32.totalorder %v619, %v1451
  %vm1678 = vcmp.eq.s32.totalorder %v619, %v1466
  %vm1679 = vcmp.eq.s32.totalorder %v619, %v1481
  %vm1680 = vcmp.eq.s32.totalorder %v619, %v1496
  %vm1681 = vcmp.eq.s32.totalorder %v619, %v1511
  %vm1682 = vcmp.eq.s32.totalorder %v619, %v1526
  %vm1683 = vcmp.eq.s32.totalorder %v619, %v1541
  %vm1684 = vcmp.eq.s32.totalorder %v619, %v1556
  %vm1685 = vcmp.eq.s32.totalorder %v619, %v1571
  %vm1686 = vcmp.eq.s32.totalorder %v619, %v1586
  %vm1687 = vcmp.eq.s32.totalorder %v619, %v1601
  %vm1688 = vcmp.eq.s32.totalorder %v619, %v1616
  %vm1689 = vcmp.eq.s32.totalorder %v619, %v1631
  %vm1690 = vcmp.eq.s32.totalorder %v619, %v1646
  %vm1691 = vcmp.eq.s32.totalorder %v619, %v1661
  %vm1692 = vcmp.eq.s32.totalorder %v619, %v1676
  %v1693 = vsel %vm1677, %v1359, %v1325
  %v1694 = vsel %vm1678, %v1362, %v1326
  %v1695 = vsel %vm1679, %v1365, %v1327
  %v1696 = vsel %vm1680, %v1368, %v1328
  %v1697 = vsel %vm1681, %v1371, %v1329
  %v1698 = vsel %vm1682, %v1374, %v1330
  %v1699 = vsel %vm1683, %v1377, %v1331
  %v1700 = vsel %vm1684, %v1380, %v1332
  %v1701 = vsel %vm1685, %v1383, %v1333
  %v1702 = vsel %vm1686, %v1386, %v1334
  %v1703 = vsel %vm1687, %v1389, %v1335
  %v1704 = vsel %vm1688, %v1392, %v1336
  %v1705 = vsel %vm1689, %v1395, %v1337
  %v1706 = vsel %vm1690, %v1398, %v1338
  %v1707 = vsel %vm1691, %v1401, %v1339
  %v1708 = vsel %vm1692, %v1404, %v1340
  %v1709 = vsel %vm1677, -inf, %v1341
  %v1710 = vsel %vm1678, -inf, %v1342
  %v1711 = vsel %vm1679, -inf, %v1343
  %v1712 = vsel %vm1680, -inf, %v1344
  %v1713 = vsel %vm1681, -inf, %v1345
  %v1714 = vsel %vm1682, -inf, %v1346
  %v1715 = vsel %vm1683, -inf, %v1347
  %v1716 = vsel %vm1684, -inf, %v1348
  %v1717 = vsel %vm1685, -inf, %v1349
  %v1718 = vsel %vm1686, -inf, %v1350
  %v1719 = vsel %vm1687, -inf, %v1351
  %v1720 = vsel %vm1688, -inf, %v1352
  %v1721 = vsel %vm1689, -inf, %v1353
  %v1722 = vsel %vm1690, -inf, %v1354
  %v1723 = vsel %vm1691, -inf, %v1355
  %v1724 = vsel %vm1692, -inf, %v1356
  %v1725 = vsel %vm620, %v1709, -inf
  %1726 = vmax.xlane.f32.xlu0 %v1725
  %v1727 = vpop.xlane.xlu0 %1726
  %v1728 = vsel %vm620, %v1710, -inf
  %1729 = vmax.xlane.f32.xlu0 %v1728
  %v1730 = vpop.xlane.xlu0 %1729
  %v1731 = vsel %vm620, %v1711, -inf
  %1732 = vmax.xlane.f32.xlu0 %v1731
  %v1733 = vpop.xlane.xlu0 %1732
  %v1734 = vsel %vm620, %v1712, -inf
  %1735 = vmax.xlane.f32.xlu0 %v1734
  %v1736 = vpop.xlane.xlu0 %1735
  %v1737 = vsel %vm620, %v1713, -inf
  %1738 = vmax.xlane.f32.xlu0 %v1737
  %v1739 = vpop.xlane.xlu0 %1738
  %v1740 = vsel %vm620, %v1714, -inf
  %1741 = vmax.xlane.f32.xlu0 %v1740
  %v1742 = vpop.xlane.xlu0 %1741
  %v1743 = vsel %vm620, %v1715, -inf
  %1744 = vmax.xlane.f32.xlu0 %v1743
  %v1745 = vpop.xlane.xlu0 %1744
  %v1746 = vsel %vm620, %v1716, -inf
  %1747 = vmax.xlane.f32.xlu0 %v1746
  %v1748 = vpop.xlane.xlu0 %1747
  %v1749 = vsel %vm620, %v1717, -inf
  %1750 = vmax.xlane.f32.xlu0 %v1749
  %v1751 = vpop.xlane.xlu0 %1750
  %v1752 = vsel %vm620, %v1718, -inf
  %1753 = vmax.xlane.f32.xlu0 %v1752
  %v1754 = vpop.xlane.xlu0 %1753
  %v1755 = vsel %vm620, %v1719, -inf
  %1756 = vmax.xlane.f32.xlu0 %v1755
  %v1757 = vpop.xlane.xlu0 %1756
  %v1758 = vsel %vm620, %v1720, -inf
  %1759 = vmax.xlane.f32.xlu0 %v1758
  %v1760 = vpop.xlane.xlu0 %1759
  %v1761 = vsel %vm620, %v1721, -inf
  %1762 = vmax.xlane.f32.xlu0 %v1761
  %v1763 = vpop.xlane.xlu0 %1762
  %v1764 = vsel %vm620, %v1722, -inf
  %1765 = vmax.xlane.f32.xlu0 %v1764
  %v1766 = vpop.xlane.xlu0 %1765
  %v1767 = vsel %vm620, %v1723, -inf
  %1768 = vmax.xlane.f32.xlu0 %v1767
  %v1769 = vpop.xlane.xlu0 %1768
  %v1770 = vsel %vm620, %v1724, -inf
  %1771 = vmax.xlane.f32.xlu0 %v1770
  %v1772 = vpop.xlane.xlu0 %1771
  %vm1773 = vcmp.eq.f32.partialorder %v1709, %v1727
  %vm1774 = vcmp.eq.f32.partialorder %v1710, %v1730
  %vm1775 = vcmp.eq.f32.partialorder %v1711, %v1733
  %vm1776 = vcmp.eq.f32.partialorder %v1712, %v1736
  %vm1777 = vcmp.eq.f32.partialorder %v1713, %v1739
  %vm1778 = vcmp.eq.f32.partialorder %v1714, %v1742
  %vm1779 = vcmp.eq.f32.partialorder %v1715, %v1745
  %vm1780 = vcmp.eq.f32.partialorder %v1716, %v1748
  %vm1781 = vcmp.eq.f32.partialorder %v1717, %v1751
  %vm1782 = vcmp.eq.f32.partialorder %v1718, %v1754
  %vm1783 = vcmp.eq.f32.partialorder %v1719, %v1757
  %vm1784 = vcmp.eq.f32.partialorder %v1720, %v1760
  %vm1785 = vcmp.eq.f32.partialorder %v1721, %v1763
  %vm1786 = vcmp.eq.f32.partialorder %v1722, %v1766
  %vm1787 = vcmp.eq.f32.partialorder %v1723, %v1769
  %vm1788 = vcmp.eq.f32.partialorder %v1724, %v1772
  %v1789 = vsel %vm1773, %v619, 32
  %v1790 = vsel %vm1774, %v619, 32
  %v1791 = vsel %vm1775, %v619, 32
  %v1792 = vsel %vm1776, %v619, 32
  %v1793 = vsel %vm1777, %v619, 32
  %v1794 = vsel %vm1778, %v619, 32
  %v1795 = vsel %vm1779, %v619, 32
  %v1796 = vsel %vm1780, %v619, 32
  %v1797 = vsel %vm1781, %v619, 32
  %v1798 = vsel %vm1782, %v619, 32
  %v1799 = vsel %vm1783, %v619, 32
  %v1800 = vsel %vm1784, %v619, 32
  %v1801 = vsel %vm1785, %v619, 32
  %v1802 = vsel %vm1786, %v619, 32
  %v1803 = vsel %vm1787, %v619, 32
  %v1804 = vsel %vm1788, %v619, 32
  %v1805 = vsel %vm620, %v1789, 2147483647
  %v1806 = vand.u32 %v1805, 65535
  %v1807 = vshra.s32 %v1805, 16
  %v1808 = vcvt.s32.f32 %v1806
  %v1809 = vcvt.s32.f32 %v1807
  %1810 = vmin.xlane.f32.xlu0 %v1809
  %v1811 = vpop.xlane.xlu0 %1810
  %vm1812 = vcmp.eq.f32.partialorder %v1809, %v1811
  %v1813 = vsel %vm1812, %v1808, inf
  %1814 = vmin.xlane.f32.xlu0 %v1813
  %v1815 = vpop.xlane.xlu0 %1814
  %v1816 = vcvt.f32.s32 %v1815
  %v1817 = vcvt.f32.s32 %v1811
  %v1818 = vshll.u32 %v1817, 16
  %v1819 = vadd.s32 %v1818, %v1816
  %v1820 = vsel %vm620, %v1790, 2147483647
  %v1821 = vand.u32 %v1820, 65535
  %v1822 = vshra.s32 %v1820, 16
  %v1823 = vcvt.s32.f32 %v1821
  %v1824 = vcvt.s32.f32 %v1822
  %1825 = vmin.xlane.f32.xlu0 %v1824
  %v1826 = vpop.xlane.xlu0 %1825
  %vm1827 = vcmp.eq.f32.partialorder %v1824, %v1826
  %v1828 = vsel %vm1827, %v1823, inf
  %1829 = vmin.xlane.f32.xlu0 %v1828
  %v1830 = vpop.xlane.xlu0 %1829
  %v1831 = vcvt.f32.s32 %v1830
  %v1832 = vcvt.f32.s32 %v1826
  %v1833 = vshll.u32 %v1832, 16
  %v1834 = vadd.s32 %v1833, %v1831
  %v1835 = vsel %vm620, %v1791, 2147483647
  %v1836 = vand.u32 %v1835, 65535
  %v1837 = vshra.s32 %v1835, 16
  %v1838 = vcvt.s32.f32 %v1836
  %v1839 = vcvt.s32.f32 %v1837
  %1840 = vmin.xlane.f32.xlu0 %v1839
  %v1841 = vpop.xlane.xlu0 %1840
  %vm1842 = vcmp.eq.f32.partialorder %v1839, %v1841
  %v1843 = vsel %vm1842, %v1838, inf
  %1844 = vmin.xlane.f32.xlu0 %v1843
  %v1845 = vpop.xlane.xlu0 %1844
  %v1846 = vcvt.f32.s32 %v1845
  %v1847 = vcvt.f32.s32 %v1841
  %v1848 = vshll.u32 %v1847, 16
  %v1849 = vadd.s32 %v1848, %v1846
  %v1850 = vsel %vm620, %v1792, 2147483647
  %v1851 = vand.u32 %v1850, 65535
  %v1852 = vshra.s32 %v1850, 16
  %v1853 = vcvt.s32.f32 %v1851
  %v1854 = vcvt.s32.f32 %v1852
  %1855 = vmin.xlane.f32.xlu0 %v1854
  %v1856 = vpop.xlane.xlu0 %1855
  %vm1857 = vcmp.eq.f32.partialorder %v1854, %v1856
  %v1858 = vsel %vm1857, %v1853, inf
  %1859 = vmin.xlane.f32.xlu0 %v1858
  %v1860 = vpop.xlane.xlu0 %1859
  %v1861 = vcvt.f32.s32 %v1860
  %v1862 = vcvt.f32.s32 %v1856
  %v1863 = vshll.u32 %v1862, 16
  %v1864 = vadd.s32 %v1863, %v1861
  %v1865 = vsel %vm620, %v1793, 2147483647
  %v1866 = vand.u32 %v1865, 65535
  %v1867 = vshra.s32 %v1865, 16
  %v1868 = vcvt.s32.f32 %v1866
  %v1869 = vcvt.s32.f32 %v1867
  %1870 = vmin.xlane.f32.xlu0 %v1869
  %v1871 = vpop.xlane.xlu0 %1870
  %vm1872 = vcmp.eq.f32.partialorder %v1869, %v1871
  %v1873 = vsel %vm1872, %v1868, inf
  %1874 = vmin.xlane.f32.xlu0 %v1873
  %v1875 = vpop.xlane.xlu0 %1874
  %v1876 = vcvt.f32.s32 %v1875
  %v1877 = vcvt.f32.s32 %v1871
  %v1878 = vshll.u32 %v1877, 16
  %v1879 = vadd.s32 %v1878, %v1876
  %v1880 = vsel %vm620, %v1794, 2147483647
  %v1881 = vand.u32 %v1880, 65535
  %v1882 = vshra.s32 %v1880, 16
  %v1883 = vcvt.s32.f32 %v1881
  %v1884 = vcvt.s32.f32 %v1882
  %1885 = vmin.xlane.f32.xlu0 %v1884
  %v1886 = vpop.xlane.xlu0 %1885
  %vm1887 = vcmp.eq.f32.partialorder %v1884, %v1886
  %v1888 = vsel %vm1887, %v1883, inf
  %1889 = vmin.xlane.f32.xlu0 %v1888
  %v1890 = vpop.xlane.xlu0 %1889
  %v1891 = vcvt.f32.s32 %v1890
  %v1892 = vcvt.f32.s32 %v1886
  %v1893 = vshll.u32 %v1892, 16
  %v1894 = vadd.s32 %v1893, %v1891
  %v1895 = vsel %vm620, %v1795, 2147483647
  %v1896 = vand.u32 %v1895, 65535
  %v1897 = vshra.s32 %v1895, 16
  %v1898 = vcvt.s32.f32 %v1896
  %v1899 = vcvt.s32.f32 %v1897
  %1900 = vmin.xlane.f32.xlu0 %v1899
  %v1901 = vpop.xlane.xlu0 %1900
  %vm1902 = vcmp.eq.f32.partialorder %v1899, %v1901
  %v1903 = vsel %vm1902, %v1898, inf
  %1904 = vmin.xlane.f32.xlu0 %v1903
  %v1905 = vpop.xlane.xlu0 %1904
  %v1906 = vcvt.f32.s32 %v1905
  %v1907 = vcvt.f32.s32 %v1901
  %v1908 = vshll.u32 %v1907, 16
  %v1909 = vadd.s32 %v1908, %v1906
  %v1910 = vsel %vm620, %v1796, 2147483647
  %v1911 = vand.u32 %v1910, 65535
  %v1912 = vshra.s32 %v1910, 16
  %v1913 = vcvt.s32.f32 %v1911
  %v1914 = vcvt.s32.f32 %v1912
  %1915 = vmin.xlane.f32.xlu0 %v1914
  %v1916 = vpop.xlane.xlu0 %1915
  %vm1917 = vcmp.eq.f32.partialorder %v1914, %v1916
  %v1918 = vsel %vm1917, %v1913, inf
  %1919 = vmin.xlane.f32.xlu0 %v1918
  %v1920 = vpop.xlane.xlu0 %1919
  %v1921 = vcvt.f32.s32 %v1920
  %v1922 = vcvt.f32.s32 %v1916
  %v1923 = vshll.u32 %v1922, 16
  %v1924 = vadd.s32 %v1923, %v1921
  %v1925 = vsel %vm620, %v1797, 2147483647
  %v1926 = vand.u32 %v1925, 65535
  %v1927 = vshra.s32 %v1925, 16
  %v1928 = vcvt.s32.f32 %v1926
  %v1929 = vcvt.s32.f32 %v1927
  %1930 = vmin.xlane.f32.xlu0 %v1929
  %v1931 = vpop.xlane.xlu0 %1930
  %vm1932 = vcmp.eq.f32.partialorder %v1929, %v1931
  %v1933 = vsel %vm1932, %v1928, inf
  %1934 = vmin.xlane.f32.xlu0 %v1933
  %v1935 = vpop.xlane.xlu0 %1934
  %v1936 = vcvt.f32.s32 %v1935
  %v1937 = vcvt.f32.s32 %v1931
  %v1938 = vshll.u32 %v1937, 16
  %v1939 = vadd.s32 %v1938, %v1936
  %v1940 = vsel %vm620, %v1798, 2147483647
  %v1941 = vand.u32 %v1940, 65535
  %v1942 = vshra.s32 %v1940, 16
  %v1943 = vcvt.s32.f32 %v1941
  %v1944 = vcvt.s32.f32 %v1942
  %1945 = vmin.xlane.f32.xlu0 %v1944
  %v1946 = vpop.xlane.xlu0 %1945
  %vm1947 = vcmp.eq.f32.partialorder %v1944, %v1946
  %v1948 = vsel %vm1947, %v1943, inf
  %1949 = vmin.xlane.f32.xlu0 %v1948
  %v1950 = vpop.xlane.xlu0 %1949
  %v1951 = vcvt.f32.s32 %v1950
  %v1952 = vcvt.f32.s32 %v1946
  %v1953 = vshll.u32 %v1952, 16
  %v1954 = vadd.s32 %v1953, %v1951
  %v1955 = vsel %vm620, %v1799, 2147483647
  %v1956 = vand.u32 %v1955, 65535
  %v1957 = vshra.s32 %v1955, 16
  %v1958 = vcvt.s32.f32 %v1956
  %v1959 = vcvt.s32.f32 %v1957
  %1960 = vmin.xlane.f32.xlu0 %v1959
  %v1961 = vpop.xlane.xlu0 %1960
  %vm1962 = vcmp.eq.f32.partialorder %v1959, %v1961
  %v1963 = vsel %vm1962, %v1958, inf
  %1964 = vmin.xlane.f32.xlu0 %v1963
  %v1965 = vpop.xlane.xlu0 %1964
  %v1966 = vcvt.f32.s32 %v1965
  %v1967 = vcvt.f32.s32 %v1961
  %v1968 = vshll.u32 %v1967, 16
  %v1969 = vadd.s32 %v1968, %v1966
  %v1970 = vsel %vm620, %v1800, 2147483647
  %v1971 = vand.u32 %v1970, 65535
  %v1972 = vshra.s32 %v1970, 16
  %v1973 = vcvt.s32.f32 %v1971
  %v1974 = vcvt.s32.f32 %v1972
  %1975 = vmin.xlane.f32.xlu0 %v1974
  %v1976 = vpop.xlane.xlu0 %1975
  %vm1977 = vcmp.eq.f32.partialorder %v1974, %v1976
  %v1978 = vsel %vm1977, %v1973, inf
  %1979 = vmin.xlane.f32.xlu0 %v1978
  %v1980 = vpop.xlane.xlu0 %1979
  %v1981 = vcvt.f32.s32 %v1980
  %v1982 = vcvt.f32.s32 %v1976
  %v1983 = vshll.u32 %v1982, 16
  %v1984 = vadd.s32 %v1983, %v1981
  %v1985 = vsel %vm620, %v1801, 2147483647
  %v1986 = vand.u32 %v1985, 65535
  %v1987 = vshra.s32 %v1985, 16
  %v1988 = vcvt.s32.f32 %v1986
  %v1989 = vcvt.s32.f32 %v1987
  %1990 = vmin.xlane.f32.xlu0 %v1989
  %v1991 = vpop.xlane.xlu0 %1990
  %vm1992 = vcmp.eq.f32.partialorder %v1989, %v1991
  %v1993 = vsel %vm1992, %v1988, inf
  %1994 = vmin.xlane.f32.xlu0 %v1993
  %v1995 = vpop.xlane.xlu0 %1994
  %v1996 = vcvt.f32.s32 %v1995
  %v1997 = vcvt.f32.s32 %v1991
  %v1998 = vshll.u32 %v1997, 16
  %v1999 = vadd.s32 %v1998, %v1996
  %v2000 = vsel %vm620, %v1802, 2147483647
  %v2001 = vand.u32 %v2000, 65535
  %v2002 = vshra.s32 %v2000, 16
  %v2003 = vcvt.s32.f32 %v2001
  %v2004 = vcvt.s32.f32 %v2002
  %2005 = vmin.xlane.f32.xlu0 %v2004
  %v2006 = vpop.xlane.xlu0 %2005
  %vm2007 = vcmp.eq.f32.partialorder %v2004, %v2006
  %v2008 = vsel %vm2007, %v2003, inf
  %2009 = vmin.xlane.f32.xlu0 %v2008
  %v2010 = vpop.xlane.xlu0 %2009
  %v2011 = vcvt.f32.s32 %v2010
  %v2012 = vcvt.f32.s32 %v2006
  %v2013 = vshll.u32 %v2012, 16
  %v2014 = vadd.s32 %v2013, %v2011
  %v2015 = vsel %vm620, %v1803, 2147483647
  %v2016 = vand.u32 %v2015, 65535
  %v2017 = vshra.s32 %v2015, 16
  %v2018 = vcvt.s32.f32 %v2016
  %v2019 = vcvt.s32.f32 %v2017
  %2020 = vmin.xlane.f32.xlu0 %v2019
  %v2021 = vpop.xlane.xlu0 %2020
  %vm2022 = vcmp.eq.f32.partialorder %v2019, %v2021
  %v2023 = vsel %vm2022, %v2018, inf
  %2024 = vmin.xlane.f32.xlu0 %v2023
  %v2025 = vpop.xlane.xlu0 %2024
  %v2026 = vcvt.f32.s32 %v2025
  %v2027 = vcvt.f32.s32 %v2021
  %v2028 = vshll.u32 %v2027, 16
  %v2029 = vadd.s32 %v2028, %v2026
  %v2030 = vsel %vm620, %v1804, 2147483647
  %v2031 = vand.u32 %v2030, 65535
  %v2032 = vshra.s32 %v2030, 16
  %v2033 = vcvt.s32.f32 %v2031
  %v2034 = vcvt.s32.f32 %v2032
  %2035 = vmin.xlane.f32.xlu0 %v2034
  %v2036 = vpop.xlane.xlu0 %2035
  %vm2037 = vcmp.eq.f32.partialorder %v2034, %v2036
  %v2038 = vsel %vm2037, %v2033, inf
  %2039 = vmin.xlane.f32.xlu0 %v2038
  %v2040 = vpop.xlane.xlu0 %2039
  %v2041 = vcvt.f32.s32 %v2040
  %v2042 = vcvt.f32.s32 %v2036
  %v2043 = vshll.u32 %v2042, 16
  %v2044 = vadd.s32 %v2043, %v2041
  %vm2045 = vcmp.eq.s32.totalorder %v619, %v1819
  %vm2046 = vcmp.eq.s32.totalorder %v619, %v1834
  %vm2047 = vcmp.eq.s32.totalorder %v619, %v1849
  %vm2048 = vcmp.eq.s32.totalorder %v619, %v1864
  %vm2049 = vcmp.eq.s32.totalorder %v619, %v1879
  %vm2050 = vcmp.eq.s32.totalorder %v619, %v1894
  %vm2051 = vcmp.eq.s32.totalorder %v619, %v1909
  %vm2052 = vcmp.eq.s32.totalorder %v619, %v1924
  %vm2053 = vcmp.eq.s32.totalorder %v619, %v1939
  %vm2054 = vcmp.eq.s32.totalorder %v619, %v1954
  %vm2055 = vcmp.eq.s32.totalorder %v619, %v1969
  %vm2056 = vcmp.eq.s32.totalorder %v619, %v1984
  %vm2057 = vcmp.eq.s32.totalorder %v619, %v1999
  %vm2058 = vcmp.eq.s32.totalorder %v619, %v2014
  %vm2059 = vcmp.eq.s32.totalorder %v619, %v2029
  %vm2060 = vcmp.eq.s32.totalorder %v619, %v2044
  %v2061 = vsel %vm2045, %v1727, %v1693
  %v2062 = vsel %vm2046, %v1730, %v1694
  %v2063 = vsel %vm2047, %v1733, %v1695
  %v2064 = vsel %vm2048, %v1736, %v1696
  %v2065 = vsel %vm2049, %v1739, %v1697
  %v2066 = vsel %vm2050, %v1742, %v1698
  %v2067 = vsel %vm2051, %v1745, %v1699
  %v2068 = vsel %vm2052, %v1748, %v1700
  %v2069 = vsel %vm2053, %v1751, %v1701
  %v2070 = vsel %vm2054, %v1754, %v1702
  %v2071 = vsel %vm2055, %v1757, %v1703
  %v2072 = vsel %vm2056, %v1760, %v1704
  %v2073 = vsel %vm2057, %v1763, %v1705
  %v2074 = vsel %vm2058, %v1766, %v1706
  %v2075 = vsel %vm2059, %v1769, %v1707
  %v2076 = vsel %vm2060, %v1772, %v1708
  %v2077 = vsel %vm2045, -inf, %v1709
  %v2078 = vsel %vm2046, -inf, %v1710
  %v2079 = vsel %vm2047, -inf, %v1711
  %v2080 = vsel %vm2048, -inf, %v1712
  %v2081 = vsel %vm2049, -inf, %v1713
  %v2082 = vsel %vm2050, -inf, %v1714
  %v2083 = vsel %vm2051, -inf, %v1715
  %v2084 = vsel %vm2052, -inf, %v1716
  %v2085 = vsel %vm2053, -inf, %v1717
  %v2086 = vsel %vm2054, -inf, %v1718
  %v2087 = vsel %vm2055, -inf, %v1719
  %v2088 = vsel %vm2056, -inf, %v1720
  %v2089 = vsel %vm2057, -inf, %v1721
  %v2090 = vsel %vm2058, -inf, %v1722
  %v2091 = vsel %vm2059, -inf, %v1723
  %v2092 = vsel %vm2060, -inf, %v1724
  %v2093 = vsel %vm620, %v2077, -inf
  %2094 = vmax.xlane.f32.xlu0 %v2093
  %v2095 = vpop.xlane.xlu0 %2094
  %v2096 = vsel %vm620, %v2078, -inf
  %2097 = vmax.xlane.f32.xlu0 %v2096
  %v2098 = vpop.xlane.xlu0 %2097
  %v2099 = vsel %vm620, %v2079, -inf
  %2100 = vmax.xlane.f32.xlu0 %v2099
  %v2101 = vpop.xlane.xlu0 %2100
  %v2102 = vsel %vm620, %v2080, -inf
  %2103 = vmax.xlane.f32.xlu0 %v2102
  %v2104 = vpop.xlane.xlu0 %2103
  %v2105 = vsel %vm620, %v2081, -inf
  %2106 = vmax.xlane.f32.xlu0 %v2105
  %v2107 = vpop.xlane.xlu0 %2106
  %v2108 = vsel %vm620, %v2082, -inf
  %2109 = vmax.xlane.f32.xlu0 %v2108
  %v2110 = vpop.xlane.xlu0 %2109
  %v2111 = vsel %vm620, %v2083, -inf
  %2112 = vmax.xlane.f32.xlu0 %v2111
  %v2113 = vpop.xlane.xlu0 %2112
  %v2114 = vsel %vm620, %v2084, -inf
  %2115 = vmax.xlane.f32.xlu0 %v2114
  %v2116 = vpop.xlane.xlu0 %2115
  %v2117 = vsel %vm620, %v2085, -inf
  %2118 = vmax.xlane.f32.xlu0 %v2117
  %v2119 = vpop.xlane.xlu0 %2118
  %v2120 = vsel %vm620, %v2086, -inf
  %2121 = vmax.xlane.f32.xlu0 %v2120
  %v2122 = vpop.xlane.xlu0 %2121
  %v2123 = vsel %vm620, %v2087, -inf
  %2124 = vmax.xlane.f32.xlu0 %v2123
  %v2125 = vpop.xlane.xlu0 %2124
  %v2126 = vsel %vm620, %v2088, -inf
  %2127 = vmax.xlane.f32.xlu0 %v2126
  %v2128 = vpop.xlane.xlu0 %2127
  %v2129 = vsel %vm620, %v2089, -inf
  %2130 = vmax.xlane.f32.xlu0 %v2129
  %v2131 = vpop.xlane.xlu0 %2130
  %v2132 = vsel %vm620, %v2090, -inf
  %2133 = vmax.xlane.f32.xlu0 %v2132
  %v2134 = vpop.xlane.xlu0 %2133
  %v2135 = vsel %vm620, %v2091, -inf
  %2136 = vmax.xlane.f32.xlu0 %v2135
  %v2137 = vpop.xlane.xlu0 %2136
  %v2138 = vsel %vm620, %v2092, -inf
  %2139 = vmax.xlane.f32.xlu0 %v2138
  %v2140 = vpop.xlane.xlu0 %2139
  %vm2141 = vcmp.eq.f32.partialorder %v2077, %v2095
  %vm2142 = vcmp.eq.f32.partialorder %v2078, %v2098
  %vm2143 = vcmp.eq.f32.partialorder %v2079, %v2101
  %vm2144 = vcmp.eq.f32.partialorder %v2080, %v2104
  %vm2145 = vcmp.eq.f32.partialorder %v2081, %v2107
  %vm2146 = vcmp.eq.f32.partialorder %v2082, %v2110
  %vm2147 = vcmp.eq.f32.partialorder %v2083, %v2113
  %vm2148 = vcmp.eq.f32.partialorder %v2084, %v2116
  %vm2149 = vcmp.eq.f32.partialorder %v2085, %v2119
  %vm2150 = vcmp.eq.f32.partialorder %v2086, %v2122
  %vm2151 = vcmp.eq.f32.partialorder %v2087, %v2125
  %vm2152 = vcmp.eq.f32.partialorder %v2088, %v2128
  %vm2153 = vcmp.eq.f32.partialorder %v2089, %v2131
  %vm2154 = vcmp.eq.f32.partialorder %v2090, %v2134
  %vm2155 = vcmp.eq.f32.partialorder %v2091, %v2137
  %vm2156 = vcmp.eq.f32.partialorder %v2092, %v2140
  %v2157 = vsel %vm2141, %v619, 32
  %v2158 = vsel %vm2142, %v619, 32
  %v2159 = vsel %vm2143, %v619, 32
  %v2160 = vsel %vm2144, %v619, 32
  %v2161 = vsel %vm2145, %v619, 32
  %v2162 = vsel %vm2146, %v619, 32
  %v2163 = vsel %vm2147, %v619, 32
  %v2164 = vsel %vm2148, %v619, 32
  %v2165 = vsel %vm2149, %v619, 32
  %v2166 = vsel %vm2150, %v619, 32
  %v2167 = vsel %vm2151, %v619, 32
  %v2168 = vsel %vm2152, %v619, 32
  %v2169 = vsel %vm2153, %v619, 32
  %v2170 = vsel %vm2154, %v619, 32
  %v2171 = vsel %vm2155, %v619, 32
  %v2172 = vsel %vm2156, %v619, 32
  %v2173 = vsel %vm620, %v2157, 2147483647
  %v2174 = vand.u32 %v2173, 65535
  %v2175 = vshra.s32 %v2173, 16
  %v2176 = vcvt.s32.f32 %v2174
  %v2177 = vcvt.s32.f32 %v2175
  %2178 = vmin.xlane.f32.xlu0 %v2177
  %v2179 = vpop.xlane.xlu0 %2178
  %vm2180 = vcmp.eq.f32.partialorder %v2177, %v2179
  %v2181 = vsel %vm2180, %v2176, inf
  %2182 = vmin.xlane.f32.xlu0 %v2181
  %v2183 = vpop.xlane.xlu0 %2182
  %v2184 = vcvt.f32.s32 %v2183
  %v2185 = vcvt.f32.s32 %v2179
  %v2186 = vshll.u32 %v2185, 16
  %v2187 = vadd.s32 %v2186, %v2184
  %v2188 = vsel %vm620, %v2158, 2147483647
  %v2189 = vand.u32 %v2188, 65535
  %v2190 = vshra.s32 %v2188, 16
  %v2191 = vcvt.s32.f32 %v2189
  %v2192 = vcvt.s32.f32 %v2190
  %2193 = vmin.xlane.f32.xlu0 %v2192
  %v2194 = vpop.xlane.xlu0 %2193
  %vm2195 = vcmp.eq.f32.partialorder %v2192, %v2194
  %v2196 = vsel %vm2195, %v2191, inf
  %2197 = vmin.xlane.f32.xlu0 %v2196
  %v2198 = vpop.xlane.xlu0 %2197
  %v2199 = vcvt.f32.s32 %v2198
  %v2200 = vcvt.f32.s32 %v2194
  %v2201 = vshll.u32 %v2200, 16
  %v2202 = vadd.s32 %v2201, %v2199
  %v2203 = vsel %vm620, %v2159, 2147483647
  %v2204 = vand.u32 %v2203, 65535
  %v2205 = vshra.s32 %v2203, 16
  %v2206 = vcvt.s32.f32 %v2204
  %v2207 = vcvt.s32.f32 %v2205
  %2208 = vmin.xlane.f32.xlu0 %v2207
  %v2209 = vpop.xlane.xlu0 %2208
  %vm2210 = vcmp.eq.f32.partialorder %v2207, %v2209
  %v2211 = vsel %vm2210, %v2206, inf
  %2212 = vmin.xlane.f32.xlu0 %v2211
  %v2213 = vpop.xlane.xlu0 %2212
  %v2214 = vcvt.f32.s32 %v2213
  %v2215 = vcvt.f32.s32 %v2209
  %v2216 = vshll.u32 %v2215, 16
  %v2217 = vadd.s32 %v2216, %v2214
  %v2218 = vsel %vm620, %v2160, 2147483647
  %v2219 = vand.u32 %v2218, 65535
  %v2220 = vshra.s32 %v2218, 16
  %v2221 = vcvt.s32.f32 %v2219
  %v2222 = vcvt.s32.f32 %v2220
  %2223 = vmin.xlane.f32.xlu0 %v2222
  %v2224 = vpop.xlane.xlu0 %2223
  %vm2225 = vcmp.eq.f32.partialorder %v2222, %v2224
  %v2226 = vsel %vm2225, %v2221, inf
  %2227 = vmin.xlane.f32.xlu0 %v2226
  %v2228 = vpop.xlane.xlu0 %2227
  %v2229 = vcvt.f32.s32 %v2228
  %v2230 = vcvt.f32.s32 %v2224
  %v2231 = vshll.u32 %v2230, 16
  %v2232 = vadd.s32 %v2231, %v2229
  %v2233 = vsel %vm620, %v2161, 2147483647
  %v2234 = vand.u32 %v2233, 65535
  %v2235 = vshra.s32 %v2233, 16
  %v2236 = vcvt.s32.f32 %v2234
  %v2237 = vcvt.s32.f32 %v2235
  %2238 = vmin.xlane.f32.xlu0 %v2237
  %v2239 = vpop.xlane.xlu0 %2238
  %vm2240 = vcmp.eq.f32.partialorder %v2237, %v2239
  %v2241 = vsel %vm2240, %v2236, inf
  %2242 = vmin.xlane.f32.xlu0 %v2241
  %v2243 = vpop.xlane.xlu0 %2242
  %v2244 = vcvt.f32.s32 %v2243
  %v2245 = vcvt.f32.s32 %v2239
  %v2246 = vshll.u32 %v2245, 16
  %v2247 = vadd.s32 %v2246, %v2244
  %v2248 = vsel %vm620, %v2162, 2147483647
  %v2249 = vand.u32 %v2248, 65535
  %v2250 = vshra.s32 %v2248, 16
  %v2251 = vcvt.s32.f32 %v2249
  %v2252 = vcvt.s32.f32 %v2250
  %2253 = vmin.xlane.f32.xlu0 %v2252
  %v2254 = vpop.xlane.xlu0 %2253
  %vm2255 = vcmp.eq.f32.partialorder %v2252, %v2254
  %v2256 = vsel %vm2255, %v2251, inf
  %2257 = vmin.xlane.f32.xlu0 %v2256
  %v2258 = vpop.xlane.xlu0 %2257
  %v2259 = vcvt.f32.s32 %v2258
  %v2260 = vcvt.f32.s32 %v2254
  %v2261 = vshll.u32 %v2260, 16
  %v2262 = vadd.s32 %v2261, %v2259
  %v2263 = vsel %vm620, %v2163, 2147483647
  %v2264 = vand.u32 %v2263, 65535
  %v2265 = vshra.s32 %v2263, 16
  %v2266 = vcvt.s32.f32 %v2264
  %v2267 = vcvt.s32.f32 %v2265
  %2268 = vmin.xlane.f32.xlu0 %v2267
  %v2269 = vpop.xlane.xlu0 %2268
  %vm2270 = vcmp.eq.f32.partialorder %v2267, %v2269
  %v2271 = vsel %vm2270, %v2266, inf
  %2272 = vmin.xlane.f32.xlu0 %v2271
  %v2273 = vpop.xlane.xlu0 %2272
  %v2274 = vcvt.f32.s32 %v2273
  %v2275 = vcvt.f32.s32 %v2269
  %v2276 = vshll.u32 %v2275, 16
  %v2277 = vadd.s32 %v2276, %v2274
  %v2278 = vsel %vm620, %v2164, 2147483647
  %v2279 = vand.u32 %v2278, 65535
  %v2280 = vshra.s32 %v2278, 16
  %v2281 = vcvt.s32.f32 %v2279
  %v2282 = vcvt.s32.f32 %v2280
  %2283 = vmin.xlane.f32.xlu0 %v2282
  %v2284 = vpop.xlane.xlu0 %2283
  %vm2285 = vcmp.eq.f32.partialorder %v2282, %v2284
  %v2286 = vsel %vm2285, %v2281, inf
  %2287 = vmin.xlane.f32.xlu0 %v2286
  %v2288 = vpop.xlane.xlu0 %2287
  %v2289 = vcvt.f32.s32 %v2288
  %v2290 = vcvt.f32.s32 %v2284
  %v2291 = vshll.u32 %v2290, 16
  %v2292 = vadd.s32 %v2291, %v2289
  %v2293 = vsel %vm620, %v2165, 2147483647
  %v2294 = vand.u32 %v2293, 65535
  %v2295 = vshra.s32 %v2293, 16
  %v2296 = vcvt.s32.f32 %v2294
  %v2297 = vcvt.s32.f32 %v2295
  %2298 = vmin.xlane.f32.xlu0 %v2297
  %v2299 = vpop.xlane.xlu0 %2298
  %vm2300 = vcmp.eq.f32.partialorder %v2297, %v2299
  %v2301 = vsel %vm2300, %v2296, inf
  %2302 = vmin.xlane.f32.xlu0 %v2301
  %v2303 = vpop.xlane.xlu0 %2302
  %v2304 = vcvt.f32.s32 %v2303
  %v2305 = vcvt.f32.s32 %v2299
  %v2306 = vshll.u32 %v2305, 16
  %v2307 = vadd.s32 %v2306, %v2304
  %v2308 = vsel %vm620, %v2166, 2147483647
  %v2309 = vand.u32 %v2308, 65535
  %v2310 = vshra.s32 %v2308, 16
  %v2311 = vcvt.s32.f32 %v2309
  %v2312 = vcvt.s32.f32 %v2310
  %2313 = vmin.xlane.f32.xlu0 %v2312
  %v2314 = vpop.xlane.xlu0 %2313
  %vm2315 = vcmp.eq.f32.partialorder %v2312, %v2314
  %v2316 = vsel %vm2315, %v2311, inf
  %2317 = vmin.xlane.f32.xlu0 %v2316
  %v2318 = vpop.xlane.xlu0 %2317
  %v2319 = vcvt.f32.s32 %v2318
  %v2320 = vcvt.f32.s32 %v2314
  %v2321 = vshll.u32 %v2320, 16
  %v2322 = vadd.s32 %v2321, %v2319
  %v2323 = vsel %vm620, %v2167, 2147483647
  %v2324 = vand.u32 %v2323, 65535
  %v2325 = vshra.s32 %v2323, 16
  %v2326 = vcvt.s32.f32 %v2324
  %v2327 = vcvt.s32.f32 %v2325
  %2328 = vmin.xlane.f32.xlu0 %v2327
  %v2329 = vpop.xlane.xlu0 %2328
  %vm2330 = vcmp.eq.f32.partialorder %v2327, %v2329
  %v2331 = vsel %vm2330, %v2326, inf
  %2332 = vmin.xlane.f32.xlu0 %v2331
  %v2333 = vpop.xlane.xlu0 %2332
  %v2334 = vcvt.f32.s32 %v2333
  %v2335 = vcvt.f32.s32 %v2329
  %v2336 = vshll.u32 %v2335, 16
  %v2337 = vadd.s32 %v2336, %v2334
  %v2338 = vsel %vm620, %v2168, 2147483647
  %v2339 = vand.u32 %v2338, 65535
  %v2340 = vshra.s32 %v2338, 16
  %v2341 = vcvt.s32.f32 %v2339
  %v2342 = vcvt.s32.f32 %v2340
  %2343 = vmin.xlane.f32.xlu0 %v2342
  %v2344 = vpop.xlane.xlu0 %2343
  %vm2345 = vcmp.eq.f32.partialorder %v2342, %v2344
  %v2346 = vsel %vm2345, %v2341, inf
  %2347 = vmin.xlane.f32.xlu0 %v2346
  %v2348 = vpop.xlane.xlu0 %2347
  %v2349 = vcvt.f32.s32 %v2348
  %v2350 = vcvt.f32.s32 %v2344
  %v2351 = vshll.u32 %v2350, 16
  %v2352 = vadd.s32 %v2351, %v2349
  %v2353 = vsel %vm620, %v2169, 2147483647
  %v2354 = vand.u32 %v2353, 65535
  %v2355 = vshra.s32 %v2353, 16
  %v2356 = vcvt.s32.f32 %v2354
  %v2357 = vcvt.s32.f32 %v2355
  %2358 = vmin.xlane.f32.xlu0 %v2357
  %v2359 = vpop.xlane.xlu0 %2358
  %vm2360 = vcmp.eq.f32.partialorder %v2357, %v2359
  %v2361 = vsel %vm2360, %v2356, inf
  %2362 = vmin.xlane.f32.xlu0 %v2361
  %v2363 = vpop.xlane.xlu0 %2362
  %v2364 = vcvt.f32.s32 %v2363
  %v2365 = vcvt.f32.s32 %v2359
  %v2366 = vshll.u32 %v2365, 16
  %v2367 = vadd.s32 %v2366, %v2364
  %v2368 = vsel %vm620, %v2170, 2147483647
  %v2369 = vand.u32 %v2368, 65535
  %v2370 = vshra.s32 %v2368, 16
  %v2371 = vcvt.s32.f32 %v2369
  %v2372 = vcvt.s32.f32 %v2370
  %2373 = vmin.xlane.f32.xlu0 %v2372
  %v2374 = vpop.xlane.xlu0 %2373
  %vm2375 = vcmp.eq.f32.partialorder %v2372, %v2374
  %v2376 = vsel %vm2375, %v2371, inf
  %2377 = vmin.xlane.f32.xlu0 %v2376
  %v2378 = vpop.xlane.xlu0 %2377
  %v2379 = vcvt.f32.s32 %v2378
  %v2380 = vcvt.f32.s32 %v2374
  %v2381 = vshll.u32 %v2380, 16
  %v2382 = vadd.s32 %v2381, %v2379
  %v2383 = vsel %vm620, %v2171, 2147483647
  %v2384 = vand.u32 %v2383, 65535
  %v2385 = vshra.s32 %v2383, 16
  %v2386 = vcvt.s32.f32 %v2384
  %v2387 = vcvt.s32.f32 %v2385
  %2388 = vmin.xlane.f32.xlu0 %v2387
  %v2389 = vpop.xlane.xlu0 %2388
  %vm2390 = vcmp.eq.f32.partialorder %v2387, %v2389
  %v2391 = vsel %vm2390, %v2386, inf
  %2392 = vmin.xlane.f32.xlu0 %v2391
  %v2393 = vpop.xlane.xlu0 %2392
  %v2394 = vcvt.f32.s32 %v2393
  %v2395 = vcvt.f32.s32 %v2389
  %v2396 = vshll.u32 %v2395, 16
  %v2397 = vadd.s32 %v2396, %v2394
  %v2398 = vsel %vm620, %v2172, 2147483647
  %v2399 = vand.u32 %v2398, 65535
  %v2400 = vshra.s32 %v2398, 16
  %v2401 = vcvt.s32.f32 %v2399
  %v2402 = vcvt.s32.f32 %v2400
  %2403 = vmin.xlane.f32.xlu0 %v2402
  %v2404 = vpop.xlane.xlu0 %2403
  %vm2405 = vcmp.eq.f32.partialorder %v2402, %v2404
  %v2406 = vsel %vm2405, %v2401, inf
  %2407 = vmin.xlane.f32.xlu0 %v2406
  %v2408 = vpop.xlane.xlu0 %2407
  %v2409 = vcvt.f32.s32 %v2408
  %v2410 = vcvt.f32.s32 %v2404
  %v2411 = vshll.u32 %v2410, 16
  %v2412 = vadd.s32 %v2411, %v2409
  %vm2413 = vcmp.eq.s32.totalorder %v619, %v2187
  %vm2414 = vcmp.eq.s32.totalorder %v619, %v2202
  %vm2415 = vcmp.eq.s32.totalorder %v619, %v2217
  %vm2416 = vcmp.eq.s32.totalorder %v619, %v2232
  %vm2417 = vcmp.eq.s32.totalorder %v619, %v2247
  %vm2418 = vcmp.eq.s32.totalorder %v619, %v2262
  %vm2419 = vcmp.eq.s32.totalorder %v619, %v2277
  %vm2420 = vcmp.eq.s32.totalorder %v619, %v2292
  %vm2421 = vcmp.eq.s32.totalorder %v619, %v2307
  %vm2422 = vcmp.eq.s32.totalorder %v619, %v2322
  %vm2423 = vcmp.eq.s32.totalorder %v619, %v2337
  %vm2424 = vcmp.eq.s32.totalorder %v619, %v2352
  %vm2425 = vcmp.eq.s32.totalorder %v619, %v2367
  %vm2426 = vcmp.eq.s32.totalorder %v619, %v2382
  %vm2427 = vcmp.eq.s32.totalorder %v619, %v2397
  %vm2428 = vcmp.eq.s32.totalorder %v619, %v2412
  %v2429 = vsel %vm2413, %v2095, %v2061
  %v2430 = vsel %vm2414, %v2098, %v2062
  %v2431 = vsel %vm2415, %v2101, %v2063
  %v2432 = vsel %vm2416, %v2104, %v2064
  %v2433 = vsel %vm2417, %v2107, %v2065
  %v2434 = vsel %vm2418, %v2110, %v2066
  %v2435 = vsel %vm2419, %v2113, %v2067
  %v2436 = vsel %vm2420, %v2116, %v2068
  %v2437 = vsel %vm2421, %v2119, %v2069
  %v2438 = vsel %vm2422, %v2122, %v2070
  %v2439 = vsel %vm2423, %v2125, %v2071
  %v2440 = vsel %vm2424, %v2128, %v2072
  %v2441 = vsel %vm2425, %v2131, %v2073
  %v2442 = vsel %vm2426, %v2134, %v2074
  %v2443 = vsel %vm2427, %v2137, %v2075
  %v2444 = vsel %vm2428, %v2140, %v2076
  %v2445 = vsel %vm620, %v2429, -inf
  %2446 = vmax.xlane.f32.xlu0 %v2445
  %v2447 = vpop.xlane.xlu0 %2446
  %v2448 = vsel %vm620, %v2430, -inf
  %2449 = vmax.xlane.f32.xlu0 %v2448
  %v2450 = vpop.xlane.xlu0 %2449
  %v2451 = vsel %vm620, %v2431, -inf
  %2452 = vmax.xlane.f32.xlu0 %v2451
  %v2453 = vpop.xlane.xlu0 %2452
  %v2454 = vsel %vm620, %v2432, -inf
  %2455 = vmax.xlane.f32.xlu0 %v2454
  %v2456 = vpop.xlane.xlu0 %2455
  %v2457 = vsel %vm620, %v2433, -inf
  %2458 = vmax.xlane.f32.xlu0 %v2457
  %v2459 = vpop.xlane.xlu0 %2458
  %v2460 = vsel %vm620, %v2434, -inf
  %2461 = vmax.xlane.f32.xlu0 %v2460
  %v2462 = vpop.xlane.xlu0 %2461
  %v2463 = vsel %vm620, %v2435, -inf
  %2464 = vmax.xlane.f32.xlu0 %v2463
  %v2465 = vpop.xlane.xlu0 %2464
  %v2466 = vsel %vm620, %v2436, -inf
  %2467 = vmax.xlane.f32.xlu0 %v2466
  %v2468 = vpop.xlane.xlu0 %2467
  %v2469 = vsel %vm620, %v2437, -inf
  %2470 = vmax.xlane.f32.xlu0 %v2469
  %v2471 = vpop.xlane.xlu0 %2470
  %v2472 = vsel %vm620, %v2438, -inf
  %2473 = vmax.xlane.f32.xlu0 %v2472
  %v2474 = vpop.xlane.xlu0 %2473
  %v2475 = vsel %vm620, %v2439, -inf
  %2476 = vmax.xlane.f32.xlu0 %v2475
  %v2477 = vpop.xlane.xlu0 %2476
  %v2478 = vsel %vm620, %v2440, -inf
  %2479 = vmax.xlane.f32.xlu0 %v2478
  %v2480 = vpop.xlane.xlu0 %2479
  %v2481 = vsel %vm620, %v2441, -inf
  %2482 = vmax.xlane.f32.xlu0 %v2481
  %v2483 = vpop.xlane.xlu0 %2482
  %v2484 = vsel %vm620, %v2442, -inf
  %2485 = vmax.xlane.f32.xlu0 %v2484
  %v2486 = vpop.xlane.xlu0 %2485
  %v2487 = vsel %vm620, %v2443, -inf
  %2488 = vmax.xlane.f32.xlu0 %v2487
  %v2489 = vpop.xlane.xlu0 %2488
  %v2490 = vsel %vm620, %v2444, -inf
  %2491 = vmax.xlane.f32.xlu0 %v2490
  %v2492 = vpop.xlane.xlu0 %2491
  %v2493 = vsub.f32 %v2429, %v2447
  %v2494 = vsub.f32 %v2430, %v2450
  %v2495 = vsub.f32 %v2431, %v2453
  %v2496 = vsub.f32 %v2432, %v2456
  %v2497 = vsub.f32 %v2433, %v2459
  %v2498 = vsub.f32 %v2434, %v2462
  %v2499 = vsub.f32 %v2435, %v2465
  %v2500 = vsub.f32 %v2436, %v2468
  %v2501 = vsub.f32 %v2437, %v2471
  %v2502 = vsub.f32 %v2438, %v2474
  %v2503 = vsub.f32 %v2439, %v2477
  %v2504 = vsub.f32 %v2440, %v2480
  %v2505 = vsub.f32 %v2441, %v2483
  %v2506 = vsub.f32 %v2442, %v2486
  %v2507 = vsub.f32 %v2443, %v2489
  %v2508 = vsub.f32 %v2444, %v2492
  %v2509 = vmul.f32 %v2493, 1.442695
  %v2510 = vpow.pop %v2509
  %v2511 = vmul.f32 %v2494, 1.442695
  %v2512 = vpow.pop %v2511
  %v2513 = vmul.f32 %v2495, 1.442695
  %v2514 = vpow.pop %v2513
  %v2515 = vmul.f32 %v2496, 1.442695
  %v2516 = vpow.pop %v2515
  %v2517 = vmul.f32 %v2497, 1.442695
  %v2518 = vpow.pop %v2517
  %v2519 = vmul.f32 %v2498, 1.442695
  %v2520 = vpow.pop %v2519
  %v2521 = vmul.f32 %v2499, 1.442695
  %v2522 = vpow.pop %v2521
  %v2523 = vmul.f32 %v2500, 1.442695
  %v2524 = vpow.pop %v2523
  %v2525 = vmul.f32 %v2501, 1.442695
  %v2526 = vpow.pop %v2525
  %v2527 = vmul.f32 %v2502, 1.442695
  %v2528 = vpow.pop %v2527
  %v2529 = vmul.f32 %v2503, 1.442695
  %v2530 = vpow.pop %v2529
  %v2531 = vmul.f32 %v2504, 1.442695
  %v2532 = vpow.pop %v2531
  %v2533 = vmul.f32 %v2505, 1.442695
  %v2534 = vpow.pop %v2533
  %v2535 = vmul.f32 %v2506, 1.442695
  %v2536 = vpow.pop %v2535
  %v2537 = vmul.f32 %v2507, 1.442695
  %v2538 = vpow.pop %v2537
  %v2539 = vmul.f32 %v2508, 1.442695
  %v2540 = vpow.pop %v2539
  %v2541 = vsel %vm620, %v2510, 0.0
  %2542 = vadd.xlane.f32.xlu0 %v2541
  %v2543 = vpop.xlane.xlu0 %2542
  %v2544 = vsel %vm620, %v2512, 0.0
  %2545 = vadd.xlane.f32.xlu0 %v2544
  %v2546 = vpop.xlane.xlu0 %2545
  %v2547 = vsel %vm620, %v2514, 0.0
  %2548 = vadd.xlane.f32.xlu0 %v2547
  %v2549 = vpop.xlane.xlu0 %2548
  %v2550 = vsel %vm620, %v2516, 0.0
  %2551 = vadd.xlane.f32.xlu0 %v2550
  %v2552 = vpop.xlane.xlu0 %2551
  %v2553 = vsel %vm620, %v2518, 0.0
  %2554 = vadd.xlane.f32.xlu0 %v2553
  %v2555 = vpop.xlane.xlu0 %2554
  %v2556 = vsel %vm620, %v2520, 0.0
  %2557 = vadd.xlane.f32.xlu0 %v2556
  %v2558 = vpop.xlane.xlu0 %2557
  %v2559 = vsel %vm620, %v2522, 0.0
  %2560 = vadd.xlane.f32.xlu0 %v2559
  %v2561 = vpop.xlane.xlu0 %2560
  %v2562 = vsel %vm620, %v2524, 0.0
  %2563 = vadd.xlane.f32.xlu0 %v2562
  %v2564 = vpop.xlane.xlu0 %2563
  %v2565 = vsel %vm620, %v2526, 0.0
  %2566 = vadd.xlane.f32.xlu0 %v2565
  %v2567 = vpop.xlane.xlu0 %2566
  %v2568 = vsel %vm620, %v2528, 0.0
  %2569 = vadd.xlane.f32.xlu0 %v2568
  %v2570 = vpop.xlane.xlu0 %2569
  %v2571 = vsel %vm620, %v2530, 0.0
  %2572 = vadd.xlane.f32.xlu0 %v2571
  %v2573 = vpop.xlane.xlu0 %2572
  %v2574 = vsel %vm620, %v2532, 0.0
  %2575 = vadd.xlane.f32.xlu0 %v2574
  %v2576 = vpop.xlane.xlu0 %2575
  %v2577 = vsel %vm620, %v2534, 0.0
  %2578 = vadd.xlane.f32.xlu0 %v2577
  %v2579 = vpop.xlane.xlu0 %2578
  %v2580 = vsel %vm620, %v2536, 0.0
  %2581 = vadd.xlane.f32.xlu0 %v2580
  %v2582 = vpop.xlane.xlu0 %2581
  %v2583 = vsel %vm620, %v2538, 0.0
  %2584 = vadd.xlane.f32.xlu0 %v2583
  %v2585 = vpop.xlane.xlu0 %2584
  %v2586 = vsel %vm620, %v2540, 0.0
  %2587 = vadd.xlane.f32.xlu0 %v2586
  %v2588 = vpop.xlane.xlu0 %2587
  %v2589 = vrcp.pop %v2543
  %v2590 = vmul.f32 %v2510, %v2589
  %v2591 = vrcp.pop %v2546
  %v2592 = vmul.f32 %v2512, %v2591
  %v2593 = vrcp.pop %v2549
  %v2594 = vmul.f32 %v2514, %v2593
  %v2595 = vrcp.pop %v2552
  %v2596 = vmul.f32 %v2516, %v2595
  %v2597 = vrcp.pop %v2555
  %v2598 = vmul.f32 %v2518, %v2597
  %v2599 = vrcp.pop %v2558
  %v2600 = vmul.f32 %v2520, %v2599
  %v2601 = vrcp.pop %v2561
  %v2602 = vmul.f32 %v2522, %v2601
  %v2603 = vrcp.pop %v2564
  %v2604 = vmul.f32 %v2524, %v2603
  %v2605 = vrcp.pop %v2567
  %v2606 = vmul.f32 %v2526, %v2605
  %v2607 = vrcp.pop %v2570
  %v2608 = vmul.f32 %v2528, %v2607
  %v2609 = vrcp.pop %v2573
  %v2610 = vmul.f32 %v2530, %v2609
  %v2611 = vrcp.pop %v2576
  %v2612 = vmul.f32 %v2532, %v2611
  %v2613 = vrcp.pop %v2579
  %v2614 = vmul.f32 %v2534, %v2613
  %v2615 = vrcp.pop %v2582
  %v2616 = vmul.f32 %v2536, %v2615
  %v2617 = vrcp.pop %v2585
  %v2618 = vmul.f32 %v2538, %v2617
  %v2619 = vrcp.pop %v2588
  %v2620 = vmul.f32 %v2540, %v2619
  %v2621 = vld [vmem:[%s5] sm:$0xff]
  %v2622 = vld [vmem:[%s5 + $0x8] sm:$0xff]
  %v2623 = vld [vmem:[%s5 + $0x10] sm:$0xff]
  %v2624 = vld [vmem:[%s5 + $0x18] sm:$0xff]
  %v2625 = vld [vmem:[%s5 + $0x20] sm:$0xff]
  %v2626 = vld [vmem:[%s5 + $0x28] sm:$0xff]
  %v2627 = vld [vmem:[%s5 + $0x30] sm:$0xff]
  %v2628 = vld [vmem:[%s5 + $0x38] sm:$0xff]
  %v2629 = vld [vmem:[%s6] sm:$0x3]
  %v2631 = vlaneseq
  %v2632 = vshrl.u32 %v2631, 7
  %v2633 = vsub.s32 0, %v2632
  %v2634 = vrot.slane %v2629, %v2633
  %v2635 = vlaneseq
  %v2636 = vshrl.u32 %v2635, 7
  %v2637 = vsub.s32 1, %v2636
  %v2638 = vrot.slane %v2629, %v2637
  %v2642 = vsel %vm620, %v2590, 0
  %v2645 = vsel %vm620, %v2592, 0
  %v2648 = vsel %vm620, %v2594, 0
  %v2651 = vsel %vm620, %v2596, 0
  %v2654 = vsel %vm620, %v2598, 0
  %v2657 = vsel %vm620, %v2600, 0
  %v2660 = vsel %vm620, %v2602, 0
  %v2663 = vsel %vm620, %v2604, 0
  %v2666 = vsel %vm620, %v2606, 0
  %v2669 = vsel %vm620, %v2608, 0
  %v2672 = vsel %vm620, %v2610, 0
  %v2675 = vsel %vm620, %v2612, 0
  %v2678 = vsel %vm620, %v2614, 0
  %v2681 = vsel %vm620, %v2616, 0
  %v2684 = vsel %vm620, %v2618, 0
  %v2687 = vsel %vm620, %v2620, 0
  %2689 = vmatprep.subr.mxu0 0.0
  %2690 = vmatpush1.msra.mxu0 0.0
  %2691 = vmatprep.subr.mxu0 0.0
  %2692 = vmatpush1.msra.mxu0 0.0
  %2693 = vmatprep.subr.mxu0 0.0
  %2694 = vmatpush1.msra.mxu0 0.0
  %2695 = vmatprep.subr.mxu0 0.0
  %2696 = vmatpush1.msra.mxu0 0.0
  %2697 = vmatprep.subr.mxu0 0.0
  %2698 = vmatpush1.msra.mxu0 0.0
  %2699 = vmatprep.subr.mxu0 0.0
  %2700 = vmatpush1.msra.mxu0 0.0
  %2701 = vmatprep.subr.mxu0 0.0
  %2702 = vmatpush1.msra.mxu0 0.0
  %2703 = vmatprep.subr.mxu0 0.0
  %2704 = vmatpush1.msra.mxu0 0.0
  %2705 = vmatprep.subr.mxu0 0.0
  %2706 = vmatpush1.msra.mxu0 0.0
  %2707 = vmatprep.subr.mxu0 0.0
  %2708 = vmatpush1.msra.mxu0 0.0
  %2709 = vmatprep.subr.mxu0 0.0
  %2710 = vmatpush1.msra.mxu0 0.0
  %2711 = vmatprep.subr.mxu0 0.0
  %2712 = vmatpush1.msra.mxu0 0.0
  %2713 = vmatprep.subr.mxu0 %v2628
  %2714 = vmatpush1.msra.mxu0 %v2627
  %2715 = vmatprep.subr.mxu0 %v2626
  %2716 = vmatpush1.msra.mxu0 %v2625
  %2717 = vmatprep.subr.mxu0 %v2624
  %2718 = vmatpush1.msra.mxu0 %v2623
  %2719 = vmatprep.subr.mxu0 %v2622
  %2720 = vmatpush1.msra.mxu0 %v2621
  %2721 = vmatprep.subr.mxu0 0.0
  %2722 = vmatpush2.msra.mxu0 0.0
  %2723 = vmatprep.subr.mxu0 0.0
  %2724 = vmatpush2.msra.mxu0 0.0
  %2725 = vmatprep.subr.mxu0 0.0
  %2726 = vmatpush2.msra.mxu0 0.0
  %2727 = vmatprep.subr.mxu0 0.0
  %2728 = vmatpush2.msra.mxu0 0.0
  %2729 = vmatprep.subr.mxu0 0.0
  %2730 = vmatpush2.msra.mxu0 0.0
  %2731 = vmatprep.subr.mxu0 0.0
  %2732 = vmatpush2.msra.mxu0 0.0
  %2733 = vmatprep.subr.mxu0 0.0
  %2734 = vmatpush2.msra.mxu0 0.0
  %2735 = vmatprep.subr.mxu0 0.0
  %2736 = vmatpush2.msra.mxu0 0.0
  %2737 = vmatprep.subr.mxu0 0.0
  %2738 = vmatpush2.msra.mxu0 0.0
  %2739 = vmatprep.subr.mxu0 0.0
  %2740 = vmatpush2.msra.mxu0 0.0
  %2741 = vmatprep.subr.mxu0 0.0
  %2742 = vmatpush2.msra.mxu0 0.0
  %2743 = vmatprep.subr.mxu0 0.0
  %2744 = vmatpush2.msra.mxu0 0.0
  %2745 = vmatprep.subr.mxu0 0.0
  %2746 = vmatpush2.msra.mxu0 0.0
  %2747 = vmatprep.subr.mxu0 0.0
  %2748 = vmatpush2.msra.mxu0 0.0
  %2749 = vmatprep.subr.mxu0 0.0
  %2750 = vmatpush2.msra.mxu0 0.0
  %2751 = vmatprep.subr.mxu0 0.0
  %2752 = vmatpush2.msra.mxu0 0.0
  %2753 = vmatprep.mubr.f32.mxu0 0.0
  %2754 = vmatmul.mubr.f32.gmra.mxu0 %v2642
  %v2755 = vpop.f32.mrf.mxu0
  %v2756 = vadd.f32 %v2634, %v2755
  %v2757 = vpop.f32.mrf.mxu0
  %v2758 = vadd.f32 %v2638, %v2757
  %2759 = vmatprep.mubr.f32.mxu0 0.0
  %2760 = vmatmul.mubr.f32.gmra.mxu0 %v2645
  %v2761 = vpop.f32.mrf.mxu0
  %v2762 = vadd.f32 %v2634, %v2761
  %v2763 = vpop.f32.mrf.mxu0
  %v2764 = vadd.f32 %v2638, %v2763
  %2765 = vmatprep.mubr.f32.mxu0 0.0
  %2766 = vmatmul.mubr.f32.gmra.mxu0 %v2648
  %v2767 = vpop.f32.mrf.mxu0
  %v2768 = vadd.f32 %v2634, %v2767
  %v2769 = vpop.f32.mrf.mxu0
  %v2770 = vadd.f32 %v2638, %v2769
  %2771 = vmatprep.mubr.f32.mxu0 0.0
  %2772 = vmatmul.mubr.f32.gmra.mxu0 %v2651
  %v2773 = vpop.f32.mrf.mxu0
  %v2774 = vadd.f32 %v2634, %v2773
  %v2775 = vpop.f32.mrf.mxu0
  %v2776 = vadd.f32 %v2638, %v2775
  %2777 = vmatprep.mubr.f32.mxu0 0.0
  %2778 = vmatmul.mubr.f32.gmra.mxu0 %v2654
  %v2779 = vpop.f32.mrf.mxu0
  %v2780 = vadd.f32 %v2634, %v2779
  %v2781 = vpop.f32.mrf.mxu0
  %v2782 = vadd.f32 %v2638, %v2781
  %2783 = vmatprep.mubr.f32.mxu0 0.0
  %2784 = vmatmul.mubr.f32.gmra.mxu0 %v2657
  %v2785 = vpop.f32.mrf.mxu0
  %v2786 = vadd.f32 %v2634, %v2785
  %v2787 = vpop.f32.mrf.mxu0
  %v2788 = vadd.f32 %v2638, %v2787
  %2789 = vmatprep.mubr.f32.mxu0 0.0
  %2790 = vmatmul.mubr.f32.gmra.mxu0 %v2660
  %v2791 = vpop.f32.mrf.mxu0
  %v2792 = vadd.f32 %v2634, %v2791
  %v2793 = vpop.f32.mrf.mxu0
  %v2794 = vadd.f32 %v2638, %v2793
  %2795 = vmatprep.mubr.f32.mxu0 0.0
  %2796 = vmatmul.mubr.f32.gmra.mxu0 %v2663
  %v2797 = vpop.f32.mrf.mxu0
  %v2798 = vadd.f32 %v2634, %v2797
  %v2799 = vpop.f32.mrf.mxu0
  %v2800 = vadd.f32 %v2638, %v2799
  %2801 = vmatprep.mubr.f32.mxu0 0.0
  %2802 = vmatmul.mubr.f32.gmra.mxu0 %v2666
  %v2803 = vpop.f32.mrf.mxu0
  %v2804 = vadd.f32 %v2634, %v2803
  %v2805 = vpop.f32.mrf.mxu0
  %v2806 = vadd.f32 %v2638, %v2805
  %2807 = vmatprep.mubr.f32.mxu0 0.0
  %2808 = vmatmul.mubr.f32.gmra.mxu0 %v2669
  %v2809 = vpop.f32.mrf.mxu0
  %v2810 = vadd.f32 %v2634, %v2809
  %v2811 = vpop.f32.mrf.mxu0
  %v2812 = vadd.f32 %v2638, %v2811
  %2813 = vmatprep.mubr.f32.mxu0 0.0
  %2814 = vmatmul.mubr.f32.gmra.mxu0 %v2672
  %v2815 = vpop.f32.mrf.mxu0
  %v2816 = vadd.f32 %v2634, %v2815
  %v2817 = vpop.f32.mrf.mxu0
  %v2818 = vadd.f32 %v2638, %v2817
  %2819 = vmatprep.mubr.f32.mxu0 0.0
  %2820 = vmatmul.mubr.f32.gmra.mxu0 %v2675
  %v2821 = vpop.f32.mrf.mxu0
  %v2822 = vadd.f32 %v2634, %v2821
  %v2823 = vpop.f32.mrf.mxu0
  %v2824 = vadd.f32 %v2638, %v2823
  %2825 = vmatprep.mubr.f32.mxu0 0.0
  %2826 = vmatmul.mubr.f32.gmra.mxu0 %v2678
  %v2827 = vpop.f32.mrf.mxu0
  %v2828 = vadd.f32 %v2634, %v2827
  %v2829 = vpop.f32.mrf.mxu0
  %v2830 = vadd.f32 %v2638, %v2829
  %2831 = vmatprep.mubr.f32.mxu0 0.0
  %2832 = vmatmul.mubr.f32.gmra.mxu0 %v2681
  %v2833 = vpop.f32.mrf.mxu0
  %v2834 = vadd.f32 %v2634, %v2833
  %v2835 = vpop.f32.mrf.mxu0
  %v2836 = vadd.f32 %v2638, %v2835
  %2837 = vmatprep.mubr.f32.mxu0 0.0
  %2838 = vmatmul.mubr.f32.gmra.mxu0 %v2684
  %v2839 = vpop.f32.mrf.mxu0
  %v2840 = vadd.f32 %v2634, %v2839
  %v2841 = vpop.f32.mrf.mxu0
  %v2842 = vadd.f32 %v2638, %v2841
  %2843 = vmatprep.mubr.f32.mxu0 0.0
  %2844 = vmatmul.mubr.f32.gmra.mxu0 %v2687
  %v2845 = vpop.f32.mrf.mxu0
  %v2846 = vadd.f32 %v2634, %v2845
  %v2847 = vpop.f32.mrf.mxu0
  %v2848 = vadd.f32 %v2638, %v2847
  %2849 = vdwg.mxu0
  %v2850 = vmax.f32 %v2756, 0.0
  %v2851 = vmax.f32 %v2758, 0.0
  %v2852 = vmax.f32 %v2762, 0.0
  %v2853 = vmax.f32 %v2764, 0.0
  %v2854 = vmax.f32 %v2768, 0.0
  %v2855 = vmax.f32 %v2770, 0.0
  %v2856 = vmax.f32 %v2774, 0.0
  %v2857 = vmax.f32 %v2776, 0.0
  %v2858 = vmax.f32 %v2780, 0.0
  %v2859 = vmax.f32 %v2782, 0.0
  %v2860 = vmax.f32 %v2786, 0.0
  %v2861 = vmax.f32 %v2788, 0.0
  %v2862 = vmax.f32 %v2792, 0.0
  %v2863 = vmax.f32 %v2794, 0.0
  %v2864 = vmax.f32 %v2798, 0.0
  %v2865 = vmax.f32 %v2800, 0.0
  %v2866 = vmax.f32 %v2804, 0.0
  %v2867 = vmax.f32 %v2806, 0.0
  %v2868 = vmax.f32 %v2810, 0.0
  %v2869 = vmax.f32 %v2812, 0.0
  %v2870 = vmax.f32 %v2816, 0.0
  %v2871 = vmax.f32 %v2818, 0.0
  %v2872 = vmax.f32 %v2822, 0.0
  %v2873 = vmax.f32 %v2824, 0.0
  %v2874 = vmax.f32 %v2828, 0.0
  %v2875 = vmax.f32 %v2830, 0.0
  %v2876 = vmax.f32 %v2834, 0.0
  %v2877 = vmax.f32 %v2836, 0.0
  %v2878 = vmax.f32 %v2840, 0.0
  %v2879 = vmax.f32 %v2842, 0.0
  %v2880 = vmax.f32 %v2846, 0.0
  %v2881 = vmax.f32 %v2848, 0.0
  %v2882 = vld [vmem:[%s7] sm:$0xff]
  %v2883 = vld [vmem:[%s7 + $0x8] sm:$0xff]
  %v2884 = vld [vmem:[%s7 + $0x10] sm:$0xff]
  %v2885 = vld [vmem:[%s7 + $0x18] sm:$0xff]
  %v2886 = vld [vmem:[%s7 + $0x20] sm:$0xff]
  %v2887 = vld [vmem:[%s7 + $0x28] sm:$0xff]
  %v2888 = vld [vmem:[%s7 + $0x30] sm:$0xff]
  %v2889 = vld [vmem:[%s7 + $0x38] sm:$0xff]
  %v2890 = vld [vmem:[%s7 + $0x40] sm:$0xff]
  %v2891 = vld [vmem:[%s7 + $0x48] sm:$0xff]
  %v2892 = vld [vmem:[%s7 + $0x50] sm:$0xff]
  %v2893 = vld [vmem:[%s7 + $0x58] sm:$0xff]
  %v2894 = vld [vmem:[%s7 + $0x60] sm:$0xff]
  %v2895 = vld [vmem:[%s7 + $0x68] sm:$0xff]
  %v2896 = vld [vmem:[%s7 + $0x70] sm:$0xff]
  %v2897 = vld [vmem:[%s7 + $0x78] sm:$0xff]
  %v2898 = vld [vmem:[%s7 + $0x80] sm:$0xff]
  %v2899 = vld [vmem:[%s7 + $0x88] sm:$0xff]
  %v2900 = vld [vmem:[%s7 + $0x90] sm:$0xff]
  %v2901 = vld [vmem:[%s7 + $0x98] sm:$0xff]
  %v2902 = vld [vmem:[%s7 + $0xa0] sm:$0xff]
  %v2903 = vld [vmem:[%s7 + $0xa8] sm:$0xff]
  %v2904 = vld [vmem:[%s7 + $0xb0] sm:$0xff]
  %v2905 = vld [vmem:[%s7 + $0xb8] sm:$0xff]
  %v2906 = vld [vmem:[%s7 + $0xc0] sm:$0xff]
  %v2907 = vld [vmem:[%s7 + $0xc8] sm:$0xff]
  %v2908 = vld [vmem:[%s7 + $0xd0] sm:$0xff]
  %v2909 = vld [vmem:[%s7 + $0xd8] sm:$0xff]
  %v2910 = vld [vmem:[%s7 + $0xe0] sm:$0xff]
  %v2911 = vld [vmem:[%s7 + $0xe8] sm:$0xff]
  %v2912 = vld [vmem:[%s7 + $0xf0] sm:$0xff]
  %v2913 = vld [vmem:[%s7 + $0xf8] sm:$0xff]
  %v2914 = vld [vmem:[%s8] sm:$0x1]
  %v2916 = vlaneseq
  %v2917 = vshrl.u32 %v2916, 7
  %v2918 = vsub.s32 0, %v2917
  %v2919 = vrot.slane %v2914, %v2918
  %2921 = vmatprep.subr.mxu0 0.0
  %2922 = vmatpush1.msra.mxu0 %v2897
  %2923 = vmatprep.subr.mxu0 0.0
  %2924 = vmatpush1.msra.mxu0 %v2896
  %2925 = vmatprep.subr.mxu0 0.0
  %2926 = vmatpush1.msra.mxu0 %v2895
  %2927 = vmatprep.subr.mxu0 0.0
  %2928 = vmatpush1.msra.mxu0 %v2894
  %2929 = vmatprep.subr.mxu0 0.0
  %2930 = vmatpush1.msra.mxu0 %v2893
  %2931 = vmatprep.subr.mxu0 0.0
  %2932 = vmatpush1.msra.mxu0 %v2892
  %2933 = vmatprep.subr.mxu0 0.0
  %2934 = vmatpush1.msra.mxu0 %v2891
  %2935 = vmatprep.subr.mxu0 0.0
  %2936 = vmatpush1.msra.mxu0 %v2890
  %2937 = vmatprep.subr.mxu0 0.0
  %2938 = vmatpush1.msra.mxu0 %v2889
  %2939 = vmatprep.subr.mxu0 0.0
  %2940 = vmatpush1.msra.mxu0 %v2888
  %2941 = vmatprep.subr.mxu0 0.0
  %2942 = vmatpush1.msra.mxu0 %v2887
  %2943 = vmatprep.subr.mxu0 0.0
  %2944 = vmatpush1.msra.mxu0 %v2886
  %2945 = vmatprep.subr.mxu0 0.0
  %2946 = vmatpush1.msra.mxu0 %v2885
  %2947 = vmatprep.subr.mxu0 0.0
  %2948 = vmatpush1.msra.mxu0 %v2884
  %2949 = vmatprep.subr.mxu0 0.0
  %2950 = vmatpush1.msra.mxu0 %v2883
  %2951 = vmatprep.subr.mxu0 0.0
  %2952 = vmatpush1.msra.mxu0 %v2882
  %2953 = vmatprep.subr.mxu0 0.0
  %2954 = vmatpush2.msra.mxu0 %v2913
  %2955 = vmatprep.subr.mxu0 0.0
  %2956 = vmatpush2.msra.mxu0 %v2912
  %2957 = vmatprep.subr.mxu0 0.0
  %2958 = vmatpush2.msra.mxu0 %v2911
  %2959 = vmatprep.subr.mxu0 0.0
  %2960 = vmatpush2.msra.mxu0 %v2910
  %2961 = vmatprep.subr.mxu0 0.0
  %2962 = vmatpush2.msra.mxu0 %v2909
  %2963 = vmatprep.subr.mxu0 0.0
  %2964 = vmatpush2.msra.mxu0 %v2908
  %2965 = vmatprep.subr.mxu0 0.0
  %2966 = vmatpush2.msra.mxu0 %v2907
  %2967 = vmatprep.subr.mxu0 0.0
  %2968 = vmatpush2.msra.mxu0 %v2906
  %2969 = vmatprep.subr.mxu0 0.0
  %2970 = vmatpush2.msra.mxu0 %v2905
  %2971 = vmatprep.subr.mxu0 0.0
  %2972 = vmatpush2.msra.mxu0 %v2904
  %2973 = vmatprep.subr.mxu0 0.0
  %2974 = vmatpush2.msra.mxu0 %v2903
  %2975 = vmatprep.subr.mxu0 0.0
  %2976 = vmatpush2.msra.mxu0 %v2902
  %2977 = vmatprep.subr.mxu0 0.0
  %2978 = vmatpush2.msra.mxu0 %v2901
  %2979 = vmatprep.subr.mxu0 0.0
  %2980 = vmatpush2.msra.mxu0 %v2900
  %2981 = vmatprep.subr.mxu0 0.0
  %2982 = vmatpush2.msra.mxu0 %v2899
  %2983 = vmatprep.subr.mxu0 0.0
  %2984 = vmatpush2.msra.mxu0 %v2898
  %2985 = vmatprep.mubr.f32.mxu0 %v2851
  %2986 = vmatmul.mubr.f32.gmra.mxu0 %v2850
  %v2987 = vpop.f32.mrf.mxu0
  %v2988 = vadd.f32 %v2919, %v2987
  %v2989 = vpop.f32.mrf.mxu0
  %2990 = vmatprep.mubr.f32.mxu0 %v2853
  %2991 = vmatmul.mubr.f32.gmra.mxu0 %v2852
  %v2992 = vpop.f32.mrf.mxu0
  %v2993 = vadd.f32 %v2919, %v2992
  %v2994 = vpop.f32.mrf.mxu0
  %2995 = vmatprep.mubr.f32.mxu0 %v2855
  %2996 = vmatmul.mubr.f32.gmra.mxu0 %v2854
  %v2997 = vpop.f32.mrf.mxu0
  %v2998 = vadd.f32 %v2919, %v2997
  %v2999 = vpop.f32.mrf.mxu0
  %3000 = vmatprep.mubr.f32.mxu0 %v2857
  %3001 = vmatmul.mubr.f32.gmra.mxu0 %v2856
  %v3002 = vpop.f32.mrf.mxu0
  %v3003 = vadd.f32 %v2919, %v3002
  %v3004 = vpop.f32.mrf.mxu0
  %3005 = vmatprep.mubr.f32.mxu0 %v2859
  %3006 = vmatmul.mubr.f32.gmra.mxu0 %v2858
  %v3007 = vpop.f32.mrf.mxu0
  %v3008 = vadd.f32 %v2919, %v3007
  %v3009 = vpop.f32.mrf.mxu0
  %3010 = vmatprep.mubr.f32.mxu0 %v2861
  %3011 = vmatmul.mubr.f32.gmra.mxu0 %v2860
  %v3012 = vpop.f32.mrf.mxu0
  %v3013 = vadd.f32 %v2919, %v3012
  %v3014 = vpop.f32.mrf.mxu0
  %3015 = vmatprep.mubr.f32.mxu0 %v2863
  %3016 = vmatmul.mubr.f32.gmra.mxu0 %v2862
  %v3017 = vpop.f32.mrf.mxu0
  %v3018 = vadd.f32 %v2919, %v3017
  %v3019 = vpop.f32.mrf.mxu0
  %3020 = vmatprep.mubr.f32.mxu0 %v2865
  %3021 = vmatmul.mubr.f32.gmra.mxu0 %v2864
  %v3022 = vpop.f32.mrf.mxu0
  %v3023 = vadd.f32 %v2919, %v3022
  %v3024 = vpop.f32.mrf.mxu0
  %3025 = vmatprep.mubr.f32.mxu0 %v2867
  %3026 = vmatmul.mubr.f32.gmra.mxu0 %v2866
  %v3027 = vpop.f32.mrf.mxu0
  %v3028 = vadd.f32 %v2919, %v3027
  %v3029 = vpop.f32.mrf.mxu0
  %3030 = vmatprep.mubr.f32.mxu0 %v2869
  %3031 = vmatmul.mubr.f32.gmra.mxu0 %v2868
  %v3032 = vpop.f32.mrf.mxu0
  %v3033 = vadd.f32 %v2919, %v3032
  %v3034 = vpop.f32.mrf.mxu0
  %3035 = vmatprep.mubr.f32.mxu0 %v2871
  %3036 = vmatmul.mubr.f32.gmra.mxu0 %v2870
  %v3037 = vpop.f32.mrf.mxu0
  %v3038 = vadd.f32 %v2919, %v3037
  %v3039 = vpop.f32.mrf.mxu0
  %3040 = vmatprep.mubr.f32.mxu0 %v2873
  %3041 = vmatmul.mubr.f32.gmra.mxu0 %v2872
  %v3042 = vpop.f32.mrf.mxu0
  %v3043 = vadd.f32 %v2919, %v3042
  %v3044 = vpop.f32.mrf.mxu0
  %3045 = vmatprep.mubr.f32.mxu0 %v2875
  %3046 = vmatmul.mubr.f32.gmra.mxu0 %v2874
  %v3047 = vpop.f32.mrf.mxu0
  %v3048 = vadd.f32 %v2919, %v3047
  %v3049 = vpop.f32.mrf.mxu0
  %3050 = vmatprep.mubr.f32.mxu0 %v2877
  %3051 = vmatmul.mubr.f32.gmra.mxu0 %v2876
  %v3052 = vpop.f32.mrf.mxu0
  %v3053 = vadd.f32 %v2919, %v3052
  %v3054 = vpop.f32.mrf.mxu0
  %3055 = vmatprep.mubr.f32.mxu0 %v2879
  %3056 = vmatmul.mubr.f32.gmra.mxu0 %v2878
  %v3057 = vpop.f32.mrf.mxu0
  %v3058 = vadd.f32 %v2919, %v3057
  %v3059 = vpop.f32.mrf.mxu0
  %3060 = vmatprep.mubr.f32.mxu0 %v2881
  %3061 = vmatmul.mubr.f32.gmra.mxu0 %v2880
  %v3062 = vpop.f32.mrf.mxu0
  %v3063 = vadd.f32 %v2919, %v3062
  %v3064 = vpop.f32.mrf.mxu0
  %3065 = vdwg.mxu0
  %v3066 = vxor.u32 %v2988, 2147483648
  %v3067 = vxor.u32 %v2993, 2147483648
  %v3068 = vxor.u32 %v2998, 2147483648
  %v3069 = vxor.u32 %v3003, 2147483648
  %v3070 = vxor.u32 %v3008, 2147483648
  %v3071 = vxor.u32 %v3013, 2147483648
  %v3072 = vxor.u32 %v3018, 2147483648
  %v3073 = vxor.u32 %v3023, 2147483648
  %v3074 = vxor.u32 %v3028, 2147483648
  %v3075 = vxor.u32 %v3033, 2147483648
  %v3076 = vxor.u32 %v3038, 2147483648
  %v3077 = vxor.u32 %v3043, 2147483648
  %v3078 = vxor.u32 %v3048, 2147483648
  %v3079 = vxor.u32 %v3053, 2147483648
  %v3080 = vxor.u32 %v3058, 2147483648
  %v3081 = vxor.u32 %v3063, 2147483648
  %v3082 = vmul.f32 %v3066, 1.442695
  %v3083 = vpow.pop %v3082
  %v3084 = vmul.f32 %v3067, 1.442695
  %v3085 = vpow.pop %v3084
  %v3086 = vmul.f32 %v3068, 1.442695
  %v3087 = vpow.pop %v3086
  %v3088 = vmul.f32 %v3069, 1.442695
  %v3089 = vpow.pop %v3088
  %v3090 = vmul.f32 %v3070, 1.442695
  %v3091 = vpow.pop %v3090
  %v3092 = vmul.f32 %v3071, 1.442695
  %v3093 = vpow.pop %v3092
  %v3094 = vmul.f32 %v3072, 1.442695
  %v3095 = vpow.pop %v3094
  %v3096 = vmul.f32 %v3073, 1.442695
  %v3097 = vpow.pop %v3096
  %v3098 = vmul.f32 %v3074, 1.442695
  %v3099 = vpow.pop %v3098
  %v3100 = vmul.f32 %v3075, 1.442695
  %v3101 = vpow.pop %v3100
  %v3102 = vmul.f32 %v3076, 1.442695
  %v3103 = vpow.pop %v3102
  %v3104 = vmul.f32 %v3077, 1.442695
  %v3105 = vpow.pop %v3104
  %v3106 = vmul.f32 %v3078, 1.442695
  %v3107 = vpow.pop %v3106
  %v3108 = vmul.f32 %v3079, 1.442695
  %v3109 = vpow.pop %v3108
  %v3110 = vmul.f32 %v3080, 1.442695
  %v3111 = vpow.pop %v3110
  %v3112 = vmul.f32 %v3081, 1.442695
  %v3113 = vpow.pop %v3112
  %v3114 = vadd.f32 %v3083, 1.0
  %v3115 = vadd.f32 %v3085, 1.0
  %v3116 = vadd.f32 %v3087, 1.0
  %v3117 = vadd.f32 %v3089, 1.0
  %v3118 = vadd.f32 %v3091, 1.0
  %v3119 = vadd.f32 %v3093, 1.0
  %v3120 = vadd.f32 %v3095, 1.0
  %v3121 = vadd.f32 %v3097, 1.0
  %v3122 = vadd.f32 %v3099, 1.0
  %v3123 = vadd.f32 %v3101, 1.0
  %v3124 = vadd.f32 %v3103, 1.0
  %v3125 = vadd.f32 %v3105, 1.0
  %v3126 = vadd.f32 %v3107, 1.0
  %v3127 = vadd.f32 %v3109, 1.0
  %v3128 = vadd.f32 %v3111, 1.0
  %v3129 = vadd.f32 %v3113, 1.0
  %v3130 = vrcp.pop %v3114
  %v3131 = vmul.f32 1.0, %v3130
  %v3132 = vrcp.pop %v3115
  %v3133 = vmul.f32 1.0, %v3132
  %v3134 = vrcp.pop %v3116
  %v3135 = vmul.f32 1.0, %v3134
  %v3136 = vrcp.pop %v3117
  %v3137 = vmul.f32 1.0, %v3136
  %v3138 = vrcp.pop %v3118
  %v3139 = vmul.f32 1.0, %v3138
  %v3140 = vrcp.pop %v3119
  %v3141 = vmul.f32 1.0, %v3140
  %v3142 = vrcp.pop %v3120
  %v3143 = vmul.f32 1.0, %v3142
  %v3144 = vrcp.pop %v3121
  %v3145 = vmul.f32 1.0, %v3144
  %v3146 = vrcp.pop %v3122
  %v3147 = vmul.f32 1.0, %v3146
  %v3148 = vrcp.pop %v3123
  %v3149 = vmul.f32 1.0, %v3148
  %v3150 = vrcp.pop %v3124
  %v3151 = vmul.f32 1.0, %v3150
  %v3152 = vrcp.pop %v3125
  %v3153 = vmul.f32 1.0, %v3152
  %v3154 = vrcp.pop %v3126
  %v3155 = vmul.f32 1.0, %v3154
  %v3156 = vrcp.pop %v3127
  %v3157 = vmul.f32 1.0, %v3156
  %v3158 = vrcp.pop %v3128
  %v3159 = vmul.f32 1.0, %v3158
  %v3160 = vrcp.pop %v3129
  %v3161 = vmul.f32 1.0, %v3160
  %3162 = vst [vmem:[%s9] sm:$0xff] %v3131
  %3163 = vst [vmem:[%s9 + $0x8] sm:$0xff] %v3133
  %3164 = vst [vmem:[%s9 + $0x10] sm:$0xff] %v3135
  %3165 = vst [vmem:[%s9 + $0x18] sm:$0xff] %v3137
  %3166 = vst [vmem:[%s9 + $0x20] sm:$0xff] %v3139
  %3167 = vst [vmem:[%s9 + $0x28] sm:$0xff] %v3141
  %3168 = vst [vmem:[%s9 + $0x30] sm:$0xff] %v3143
  %3169 = vst [vmem:[%s9 + $0x38] sm:$0xff] %v3145
  %3170 = vst [vmem:[%s9 + $0x40] sm:$0xff] %v3147
  %3171 = vst [vmem:[%s9 + $0x48] sm:$0xff] %v3149
  %3172 = vst [vmem:[%s9 + $0x50] sm:$0xff] %v3151
  %3173 = vst [vmem:[%s9 + $0x58] sm:$0xff] %v3153
  %3174 = vst [vmem:[%s9 + $0x60] sm:$0xff] %v3155
  %3175 = vst [vmem:[%s9 + $0x68] sm:$0xff] %v3157
  %3176 = vst [vmem:[%s9 + $0x70] sm:$0xff] %v3159
  %3177 = vst [vmem:[%s9 + $0x78] sm:$0xff] %v3161
  // Predicated region
  $region38: #{hard_attention_memory_ae.1} parent=0 // pred_check
    _
  $region39: #{hard_attention_memory_ae.1} parent=0 // pred_check_branch
    %3179 = sbr.rel (0) target = $region41
  $region40: #{hard_attention_memory_ae.1} parent=0 // pred_region
    _
  $region41: #{hard_attention_memory_ae.1} parent=0 // pred_fallthru
    _
  // Predicated region
  $region42: #{hard_attention_memory_ae.1} parent=0 // pred_check
    _
  $region43: #{hard_attention_memory_ae.1} parent=0 // pred_check_branch
    %3181 = sbr.rel (0) target = $region45
  $region44: #{hard_attention_memory_ae.1} parent=0 // pred_region
    _
  $region45: #{hard_attention_memory_ae.1} parent=0 // pred_fallthru
    _

</llo_original>
